<compile_context>
chip_gen: v5e
topology: v5e:2x2
jax: 0.10.0
libtpu: 0.0.40
codegen_flags: <defaults>
</compile_context>

<pallas_src>
import functools

import jax
import jax.numpy as jnp
from jax.experimental import pallas as pl
from jax.experimental.pallas import tpu as pltpu  # noqa: F401  (used when scaling up)


NEG_BIG = -1e30  # additive mask; exp(NEG_BIG - rowmax) underflows to exactly 0 in f32


def _fused_gat_kernel(x_ref, bias_ref, rep_i_ref, rep_j_ref, sum_i_ref, *rest,
                      layer_heads, layer_relu, num_nodes, hidden_dim):
    """Fused 3-layer GATv2 forward.

    rest = 6 prepared weight refs per layer (w_lr, b_lr, att_blk, expand,
    mean_mat, out_bias) followed by the output ref.
    """
    o_ref = rest[-1]
    wrefs = rest[:-1]
    N, D = num_nodes, hidden_dim
    f32 = jnp.float32

    bias_flat = bias_ref[...]     # [N*N, 1]  0 for edge (incl. self-loop) else -1e30
    rep_i = rep_i_ref[...]        # [N*N, N]  row (i,j) -> one-hot(i)
    rep_j = rep_j_ref[...]        # [N*N, N]  row (i,j) -> one-hot(j)
    sum_i = sum_i_ref[...]        # [N, N*N]  sums rows of a (i,j)-indexed slab over j

    h_act = x_ref[...].astype(f32)            # [N, D] activation carried across layers

    idx = 0
    for H, do_relu in zip(layer_heads, layer_relu):
        w_lr_ref, b_lr_ref, att_ref, expand_ref, mean_ref, obias_ref = wrefs[idx:idx + 6]
        idx += 6
        HD = H * D
        x_in = h_act                          # layer input (residual)

        # One lane-dense projection for all heads, source & target at once.
        g = jnp.dot(x_in, w_lr_ref[...], preferred_element_type=f32) + b_lr_ref[...]
        gl = g[:, :HD]                        # [N, H*D] source / message features
        gr = g[:, HD:]                        # [N, H*D] target features

        # Pairwise slab s[(i,j), h*D+d] = gr[i] + gl[j]  (replication on the MXU).
        gl_rep = jnp.dot(rep_j, gl, preferred_element_type=f32)     # [N*N, H*D]
        gr_rep = jnp.dot(rep_i, gr, preferred_element_type=f32)     # [N*N, H*D]
        s = gr_rep + gl_rep
        s = jnp.maximum(s, f32(0.2) * s)      # LeakyReLU(0.2), no select

        # GATv2 logits for all heads: one matmul with block-diagonal att.
        e = jnp.dot(s, att_ref[...], preferred_element_type=f32)    # [N*N, H]
        e = e + bias_flat                                            # mask as an add

        # Masked softmax over incoming edges j, per target i, all heads at once.
        m = jnp.max(e.reshape(N, N, H), axis=1)                      # [N, H] row max
        p = jnp.exp(e - jnp.dot(rep_i, m, preferred_element_type=f32))   # [N*N, H]
        denom = jnp.dot(sum_i, p, preferred_element_type=f32)        # [N, H] sum_j
        inv = pl.reciprocal(denom, approx=True)                      # EUP, ~free slot
        alpha = p * jnp.dot(rep_i, inv, preferred_element_type=f32)  # [N*N, H]

        # out[i] = (1/H) sum_h sum_j alpha[i,j,h] * gl[j, h*D:...]  -- fused pass.
        a_exp = jnp.dot(alpha, expand_ref[...], preferred_element_type=f32)   # [N*N, H*D]
        weighted = a_exp * gl_rep                                             # [N*N, H*D]
        out_all = jnp.dot(sum_i, weighted, preferred_element_type=f32)        # [N, H*D]
        out = jnp.dot(out_all, mean_ref[...], preferred_element_type=f32) + obias_ref[...]
        if do_relu:
            out = jnp.maximum(out, f32(0.0))
        h_act = out + x_in                    # residual

    o_ref[...] = h_act.astype(o_ref.dtype)


# ------------------------------ host-side prep ------------------------------
def _one_hot_adjacency(edge_index, num_nodes):
    """Dense adjacency counts adj[dst, src] + self-loops, built WITHOUT scatter."""
    r = jnp.arange(num_nodes)
    dst = (edge_index[1][:, None] == r[None, :]).astype(jnp.float32)   # [E, N]
    src = (edge_index[0][:, None] == r[None, :]).astype(jnp.float32)   # [E, N]
    return dst.T @ src + jnp.eye(num_nodes, dtype=jnp.float32)


def _prep_layer(p):
    """Per-head params -> head-fused, lane-dense matrices used by the kernel."""
    H, D, _ = p["wl"].shape
    f32 = jnp.float32
    wl = jnp.transpose(p["wl"], (1, 0, 2)).reshape(D, H * D)
    wr = jnp.transpose(p["wr"], (1, 0, 2)).reshape(D, H * D)
    w_lr = jnp.concatenate([wl, wr], axis=1)                              # [D, 2*H*D]
    b_lr = jnp.concatenate(
        [p["bl"].reshape(1, H * D), p["br"].reshape(1, H * D)], axis=1)   # [1, 2*H*D]
    att = p["att"].reshape(H, D)
    att_blk = (att[:, None, :] * jnp.eye(H, dtype=f32)[:, :, None])       # [H, H, D]
    att_blk = jnp.transpose(att_blk, (0, 2, 1)).reshape(H * D, H)         # blockdiag(att)
    expand = jnp.repeat(jnp.eye(H, dtype=f32), D, axis=1)                 # [H, H*D]
    mean_mat = jnp.tile(jnp.eye(D, dtype=f32) / H, (H, 1))                # [H*D, D]
    return (w_lr, b_lr, att_blk, expand, mean_mat, p["bias"])


def paragraph_gat_inference(x, edge_index, params):
    """Forward pass of ParagraphGATInference.  x: [N, D], edge_index: [2, E]."""
    N, D = x.shape

    adj = _one_hot_adjacency(edge_index, N)
    bias_flat = jnp.where(adj > 0, 0.0, NEG_BIG).astype(jnp.float32).reshape(N * N, 1)

    eye = jnp.eye(N, dtype=jnp.float32)
    rep_i = jnp.repeat(eye, N, axis=0)        # [N*N, N]: row (i,j) -> one-hot(i)
    rep_j = jnp.tile(eye, (N, 1))             # [N*N, N]: row (i,j) -> one-hot(j)
    sum_i = jnp.repeat(eye, N, axis=1)        # [N, N*N]: sum over j within group i

    flat, heads = [], []
    for name in ("conv1", "conv2", "conv3"):
        flat.extend(_prep_layer(params[name]))
        heads.append(params[name]["wl"].shape[0])

    kernel = functools.partial(
        _fused_gat_kernel,
        layer_heads=tuple(heads),
        layer_relu=(True, True, False),
        num_nodes=N,
        hidden_dim=D,
    )
    # Grid-less call: every operand is a single whole-array VMEM block.
    return pl.pallas_call(
        kernel,
        out_shape=jax.ShapeDtypeStruct((N, D), x.dtype),
    )(x, bias_flat, rep_i, rep_j, sum_i, *flat)


# ----------------------------- pure-JAX reference -----------------------------
def _gatv2_ref(x, adj, p, apply_relu):
    H, D, _ = p["wl"].shape
    gl = jnp.einsum("nd,hde->nhe", x, p["wl"]) + p["bl"].reshape(1, H, D)
    gr = jnp.einsum("nd,hde->nhe", x, p["wr"]) + p["br"].reshape(1, H, D)
    s = gr[:, None] + gl[None, :]                              # [N, N, H, D]
    s = jnp.where(s >= 0, s, 0.2 * s)
    e = jnp.sum(s * p["att"].reshape(1, 1, H, D), axis=-1)     # [N, N, H]
    mask = (adj > 0)[..., None]
    e = jnp.where(mask, e, -1e30)
    e = e - e.max(axis=1, keepdims=True)
    w = jnp.where(mask, jnp.exp(e), 0.0)
    alpha = w / w.sum(axis=1, keepdims=True)
    out = jnp.einsum("ijh,jhd->ihd", alpha, gl).mean(axis=1) + p["bias"][0]
    if apply_relu:
        out = jnp.maximum(out, 0.0)
    return out + x


def paragraph_gat_inference_ref(x, edge_index, params):
    adj = _one_hot_adjacency(edge_index, x.shape[0])
    h = _gatv2_ref(x, adj, params["conv1"], True)
    h = _gatv2_ref(h, adj, params["conv2"], True)
    h = _gatv2_ref(h, adj, params["conv3"], False)
    return h


# ------------------------------- parameter init -------------------------------
def init_gatv2_params(key, dim, heads, scale=0.2):
    ks = jax.random.split(key, 6)
    return dict(
        wl=scale * jax.random.normal(ks[0], (heads, dim, dim), jnp.float32),
        bl=scale * jax.random.normal(ks[1], (heads, 1, dim), jnp.float32),
        wr=scale * jax.random.normal(ks[2], (heads, dim, dim), jnp.float32),
        br=scale * jax.random.normal(ks[3], (heads, 1, dim), jnp.float32),
        att=scale * jax.random.normal(ks[4], (heads, 1, dim), jnp.float32),
        bias=scale * jax.random.normal(ks[5], (1, dim), jnp.float32),
    )


if __name__ == "__main__":
    N, D = 16, 32          # nodes, hidden_dim
    HEADS, FINAL_HEADS = 8, 4
    E = 40                 # number of (directed) edges

    root = jax.random.PRNGKey(0)
    kx, ke, k1, k2, k3 = jax.random.split(root, 5)

    x = jax.random.normal(kx, (N, D), jnp.float32)
    edge_index = jax.random.randint(ke, (2, E), 0, N, dtype=jnp.int32)

    params = {
        "conv1": init_gatv2_params(k1, D, HEADS),
        "conv2": init_gatv2_params(k2, D, HEADS),
        "conv3": init_gatv2_params(k3, D, FINAL_HEADS),
    }

    out = jax.block_until_ready(paragraph_gat_inference(x, edge_index, params))
    ref = jax.block_until_ready(paragraph_gat_inference_ref(x, edge_index, params))

    assert out.shape == (N, D) and out.dtype == jnp.float32
    # slightly relaxed tolerance to accommodate the EUP approx reciprocal
    assert jnp.allclose(out, ref, rtol=5e-3, atol=5e-3), "mismatch vs JAX reference"
    print("KERNEL_OK")
</pallas_src>

<mosaic_0001>
module attributes {stable_mosaic.version = 11 : i64} {
  func.func @_fused_gat_kernel(%arg0: memref<16x32xf32, #tpu.memory_space<vmem>>, %arg1: memref<256x1xf32, #tpu.memory_space<vmem>>, %arg2: memref<256x16xf32, #tpu.memory_space<vmem>>, %arg3: memref<256x16xf32, #tpu.memory_space<vmem>>, %arg4: memref<16x256xf32, #tpu.memory_space<vmem>>, %arg5: memref<32x512xf32, #tpu.memory_space<vmem>>, %arg6: memref<1x512xf32, #tpu.memory_space<vmem>>, %arg7: memref<256x8xf32, #tpu.memory_space<vmem>>, %arg8: memref<8x256xf32, #tpu.memory_space<vmem>>, %arg9: memref<256x32xf32, #tpu.memory_space<vmem>>, %arg10: memref<1x32xf32, #tpu.memory_space<vmem>>, %arg11: memref<32x512xf32, #tpu.memory_space<vmem>>, %arg12: memref<1x512xf32, #tpu.memory_space<vmem>>, %arg13: memref<256x8xf32, #tpu.memory_space<vmem>>, %arg14: memref<8x256xf32, #tpu.memory_space<vmem>>, %arg15: memref<256x32xf32, #tpu.memory_space<vmem>>, %arg16: memref<1x32xf32, #tpu.memory_space<vmem>>, %arg17: memref<32x256xf32, #tpu.memory_space<vmem>>, %arg18: memref<1x256xf32, #tpu.memory_space<vmem>>, %arg19: memref<128x4xf32, #tpu.memory_space<vmem>>, %arg20: memref<4x128xf32, #tpu.memory_space<vmem>>, %arg21: memref<128x32xf32, #tpu.memory_space<vmem>>, %arg22: memref<1x32xf32, #tpu.memory_space<vmem>>, %arg23: memref<16x32xf32, #tpu.memory_space<vmem>>) attributes {dimension_semantics = [], scalar_prefetch = 0 : i64, scratch_operands = 0 : i64, tpu.core_type = #tpu.core_type<tc>} {
    %c0 = arith.constant 0 : index
    %c0_0 = arith.constant 0 : index
    %0 = vector.load %arg1[%c0, %c0_0] : memref<256x1xf32, #tpu.memory_space<vmem>>, vector<256x1xf32>
    %c0_1 = arith.constant 0 : index
    %c0_2 = arith.constant 0 : index
    %1 = vector.load %arg2[%c0_1, %c0_2] : memref<256x16xf32, #tpu.memory_space<vmem>>, vector<256x16xf32>
    %c0_3 = arith.constant 0 : index
    %c0_4 = arith.constant 0 : index
    %2 = vector.load %arg3[%c0_3, %c0_4] : memref<256x16xf32, #tpu.memory_space<vmem>>, vector<256x16xf32>
    %c0_5 = arith.constant 0 : index
    %c0_6 = arith.constant 0 : index
    %3 = vector.load %arg4[%c0_5, %c0_6] : memref<16x256xf32, #tpu.memory_space<vmem>>, vector<16x256xf32>
    %c0_7 = arith.constant 0 : index
    %c0_8 = arith.constant 0 : index
    %4 = vector.load %arg0[%c0_7, %c0_8] : memref<16x32xf32, #tpu.memory_space<vmem>>, vector<16x32xf32>
    %c0_9 = arith.constant 0 : index
    %c0_10 = arith.constant 0 : index
    %5 = vector.load %arg5[%c0_9, %c0_10] : memref<32x512xf32, #tpu.memory_space<vmem>>, vector<32x512xf32>
    %cst = arith.constant dense<0.000000e+00> : vector<16x512xf32>
    %6 = tpu.matmul %4, %5, %cst {dimension_numbers = #tpu.dot_dimension_numbers<[1], [0], [0], [1], [0, 0, 1, 1], [], []>} : vector<16x32xf32>, vector<32x512xf32>, vector<16x512xf32> -> vector<16x512xf32>
    %c0_11 = arith.constant 0 : index
    %c0_12 = arith.constant 0 : index
    %7 = vector.load %arg6[%c0_11, %c0_12] : memref<1x512xf32, #tpu.memory_space<vmem>>, vector<1x512xf32>
    %8 = vector.broadcast %7 : vector<1x512xf32> to vector<16x512xf32>
    %9 = arith.addf %6, %8 : vector<16x512xf32>
    %10 = vector.extract_strided_slice %9 {offsets = [0, 0], sizes = [16, 256], strides = [1, 1]} : vector<16x512xf32> to vector<16x256xf32>
    %11 = vector.extract_strided_slice %9 {offsets = [0, 256], sizes = [16, 256], strides = [1, 1]} : vector<16x512xf32> to vector<16x256xf32>
    %cst_13 = arith.constant dense<0.000000e+00> : vector<256x256xf32>
    %12 = tpu.matmul %2, %10, %cst_13 {dimension_numbers = #tpu.dot_dimension_numbers<[1], [0], [0], [1], [0, 0, 1, 1], [], []>} : vector<256x16xf32>, vector<16x256xf32>, vector<256x256xf32> -> vector<256x256xf32>
    %cst_14 = arith.constant dense<0.000000e+00> : vector<256x256xf32>
    %13 = tpu.matmul %1, %11, %cst_14 {dimension_numbers = #tpu.dot_dimension_numbers<[1], [0], [0], [1], [0, 0, 1, 1], [], []>} : vector<256x16xf32>, vector<16x256xf32>, vector<256x256xf32> -> vector<256x256xf32>
    %14 = arith.addf %13, %12 : vector<256x256xf32>
    %cst_15 = arith.constant 2.000000e-01 : f32
    %15 = vector.broadcast %cst_15 : f32 to vector<256x256xf32>
    %16 = arith.mulf %15, %14 : vector<256x256xf32>
    %17 = arith.maximumf %14, %16 : vector<256x256xf32>
    %c0_16 = arith.constant 0 : index
    %c0_17 = arith.constant 0 : index
    %18 = vector.load %arg7[%c0_16, %c0_17] : memref<256x8xf32, #tpu.memory_space<vmem>>, vector<256x8xf32>
    %cst_18 = arith.constant dense<0.000000e+00> : vector<256x8xf32>
    %19 = tpu.matmul %17, %18, %cst_18 {dimension_numbers = #tpu.dot_dimension_numbers<[1], [0], [0], [1], [0, 0, 1, 1], [], []>} : vector<256x256xf32>, vector<256x8xf32>, vector<256x8xf32> -> vector<256x8xf32>
    %20 = vector.broadcast %0 : vector<256x1xf32> to vector<256x8xf32>
    %21 = arith.addf %19, %20 : vector<256x8xf32>
    %22 = vector.shape_cast %21 : vector<256x8xf32> to vector<16x16x8xf32>
    %cst_19 = arith.constant dense<0xFF800000> : vector<16x8xf32>
    %23 = vector.multi_reduction <maximumf>, %22, %cst_19 [1] : vector<16x16x8xf32> to vector<16x8xf32>
    %cst_20 = arith.constant dense<0.000000e+00> : vector<256x8xf32>
    %24 = tpu.matmul %1, %23, %cst_20 {dimension_numbers = #tpu.dot_dimension_numbers<[1], [0], [0], [1], [0, 0, 1, 1], [], []>} : vector<256x16xf32>, vector<16x8xf32>, vector<256x8xf32> -> vector<256x8xf32>
    %25 = arith.subf %21, %24 : vector<256x8xf32>
    %26 = math.exp %25 : vector<256x8xf32>
    %cst_21 = arith.constant dense<0.000000e+00> : vector<16x8xf32>
    %27 = tpu.matmul %3, %26, %cst_21 {dimension_numbers = #tpu.dot_dimension_numbers<[1], [0], [0], [1], [0, 0, 1, 1], [], []>} : vector<16x256xf32>, vector<256x8xf32>, vector<16x8xf32> -> vector<16x8xf32>
    %28 = tpu.reciprocal %27 {approx = true} : vector<16x8xf32> -> vector<16x8xf32>
    %cst_22 = arith.constant dense<0.000000e+00> : vector<256x8xf32>
    %29 = tpu.matmul %1, %28, %cst_22 {dimension_numbers = #tpu.dot_dimension_numbers<[1], [0], [0], [1], [0, 0, 1, 1], [], []>} : vector<256x16xf32>, vector<16x8xf32>, vector<256x8xf32> -> vector<256x8xf32>
    %30 = arith.mulf %26, %29 : vector<256x8xf32>
    %c0_23 = arith.constant 0 : index
    %c0_24 = arith.constant 0 : index
    %31 = vector.load %arg8[%c0_23, %c0_24] : memref<8x256xf32, #tpu.memory_space<vmem>>, vector<8x256xf32>
    %cst_25 = arith.constant dense<0.000000e+00> : vector<256x256xf32>
    %32 = tpu.matmul %30, %31, %cst_25 {dimension_numbers = #tpu.dot_dimension_numbers<[1], [0], [0], [1], [0, 0, 1, 1], [], []>} : vector<256x8xf32>, vector<8x256xf32>, vector<256x256xf32> -> vector<256x256xf32>
    %33 = arith.mulf %32, %12 : vector<256x256xf32>
    %cst_26 = arith.constant dense<0.000000e+00> : vector<16x256xf32>
    %34 = tpu.matmul %3, %33, %cst_26 {dimension_numbers = #tpu.dot_dimension_numbers<[1], [0], [0], [1], [0, 0, 1, 1], [], []>} : vector<16x256xf32>, vector<256x256xf32>, vector<16x256xf32> -> vector<16x256xf32>
    %c0_27 = arith.constant 0 : index
    %c0_28 = arith.constant 0 : index
    %35 = vector.load %arg9[%c0_27, %c0_28] : memref<256x32xf32, #tpu.memory_space<vmem>>, vector<256x32xf32>
    %cst_29 = arith.constant dense<0.000000e+00> : vector<16x32xf32>
    %36 = tpu.matmul %34, %35, %cst_29 {dimension_numbers = #tpu.dot_dimension_numbers<[1], [0], [0], [1], [0, 0, 1, 1], [], []>} : vector<16x256xf32>, vector<256x32xf32>, vector<16x32xf32> -> vector<16x32xf32>
    %c0_30 = arith.constant 0 : index
    %c0_31 = arith.constant 0 : index
    %37 = vector.load %arg10[%c0_30, %c0_31] : memref<1x32xf32, #tpu.memory_space<vmem>>, vector<1x32xf32>
    %38 = vector.broadcast %37 : vector<1x32xf32> to vector<16x32xf32>
    %39 = arith.addf %36, %38 : vector<16x32xf32>
    %cst_32 = arith.constant 0.000000e+00 : f32
    %40 = vector.broadcast %cst_32 : f32 to vector<16x32xf32>
    %41 = arith.maximumf %39, %40 : vector<16x32xf32>
    %42 = arith.addf %41, %4 : vector<16x32xf32>
    %c0_33 = arith.constant 0 : index
    %c0_34 = arith.constant 0 : index
    %43 = vector.load %arg11[%c0_33, %c0_34] : memref<32x512xf32, #tpu.memory_space<vmem>>, vector<32x512xf32>
    %cst_35 = arith.constant dense<0.000000e+00> : vector<16x512xf32>
    %44 = tpu.matmul %42, %43, %cst_35 {dimension_numbers = #tpu.dot_dimension_numbers<[1], [0], [0], [1], [0, 0, 1, 1], [], []>} : vector<16x32xf32>, vector<32x512xf32>, vector<16x512xf32> -> vector<16x512xf32>
    %c0_36 = arith.constant 0 : index
    %c0_37 = arith.constant 0 : index
    %45 = vector.load %arg12[%c0_36, %c0_37] : memref<1x512xf32, #tpu.memory_space<vmem>>, vector<1x512xf32>
    %46 = vector.broadcast %45 : vector<1x512xf32> to vector<16x512xf32>
    %47 = arith.addf %44, %46 : vector<16x512xf32>
    %48 = vector.extract_strided_slice %47 {offsets = [0, 0], sizes = [16, 256], strides = [1, 1]} : vector<16x512xf32> to vector<16x256xf32>
    %49 = vector.extract_strided_slice %47 {offsets = [0, 256], sizes = [16, 256], strides = [1, 1]} : vector<16x512xf32> to vector<16x256xf32>
    %cst_38 = arith.constant dense<0.000000e+00> : vector<256x256xf32>
    %50 = tpu.matmul %2, %48, %cst_38 {dimension_numbers = #tpu.dot_dimension_numbers<[1], [0], [0], [1], [0, 0, 1, 1], [], []>} : vector<256x16xf32>, vector<16x256xf32>, vector<256x256xf32> -> vector<256x256xf32>
    %cst_39 = arith.constant dense<0.000000e+00> : vector<256x256xf32>
    %51 = tpu.matmul %1, %49, %cst_39 {dimension_numbers = #tpu.dot_dimension_numbers<[1], [0], [0], [1], [0, 0, 1, 1], [], []>} : vector<256x16xf32>, vector<16x256xf32>, vector<256x256xf32> -> vector<256x256xf32>
    %52 = arith.addf %51, %50 : vector<256x256xf32>
    %cst_40 = arith.constant 2.000000e-01 : f32
    %53 = vector.broadcast %cst_40 : f32 to vector<256x256xf32>
    %54 = arith.mulf %53, %52 : vector<256x256xf32>
    %55 = arith.maximumf %52, %54 : vector<256x256xf32>
    %c0_41 = arith.constant 0 : index
    %c0_42 = arith.constant 0 : index
    %56 = vector.load %arg13[%c0_41, %c0_42] : memref<256x8xf32, #tpu.memory_space<vmem>>, vector<256x8xf32>
    %cst_43 = arith.constant dense<0.000000e+00> : vector<256x8xf32>
    %57 = tpu.matmul %55, %56, %cst_43 {dimension_numbers = #tpu.dot_dimension_numbers<[1], [0], [0], [1], [0, 0, 1, 1], [], []>} : vector<256x256xf32>, vector<256x8xf32>, vector<256x8xf32> -> vector<256x8xf32>
    %58 = vector.broadcast %0 : vector<256x1xf32> to vector<256x8xf32>
    %59 = arith.addf %57, %58 : vector<256x8xf32>
    %60 = vector.shape_cast %59 : vector<256x8xf32> to vector<16x16x8xf32>
    %cst_44 = arith.constant dense<0xFF800000> : vector<16x8xf32>
    %61 = vector.multi_reduction <maximumf>, %60, %cst_44 [1] : vector<16x16x8xf32> to vector<16x8xf32>
    %cst_45 = arith.constant dense<0.000000e+00> : vector<256x8xf32>
    %62 = tpu.matmul %1, %61, %cst_45 {dimension_numbers = #tpu.dot_dimension_numbers<[1], [0], [0], [1], [0, 0, 1, 1], [], []>} : vector<256x16xf32>, vector<16x8xf32>, vector<256x8xf32> -> vector<256x8xf32>
    %63 = arith.subf %59, %62 : vector<256x8xf32>
    %64 = math.exp %63 : vector<256x8xf32>
    %cst_46 = arith.constant dense<0.000000e+00> : vector<16x8xf32>
    %65 = tpu.matmul %3, %64, %cst_46 {dimension_numbers = #tpu.dot_dimension_numbers<[1], [0], [0], [1], [0, 0, 1, 1], [], []>} : vector<16x256xf32>, vector<256x8xf32>, vector<16x8xf32> -> vector<16x8xf32>
    %66 = tpu.reciprocal %65 {approx = true} : vector<16x8xf32> -> vector<16x8xf32>
    %cst_47 = arith.constant dense<0.000000e+00> : vector<256x8xf32>
    %67 = tpu.matmul %1, %66, %cst_47 {dimension_numbers = #tpu.dot_dimension_numbers<[1], [0], [0], [1], [0, 0, 1, 1], [], []>} : vector<256x16xf32>, vector<16x8xf32>, vector<256x8xf32> -> vector<256x8xf32>
    %68 = arith.mulf %64, %67 : vector<256x8xf32>
    %c0_48 = arith.constant 0 : index
    %c0_49 = arith.constant 0 : index
    %69 = vector.load %arg14[%c0_48, %c0_49] : memref<8x256xf32, #tpu.memory_space<vmem>>, vector<8x256xf32>
    %cst_50 = arith.constant dense<0.000000e+00> : vector<256x256xf32>
    %70 = tpu.matmul %68, %69, %cst_50 {dimension_numbers = #tpu.dot_dimension_numbers<[1], [0], [0], [1], [0, 0, 1, 1], [], []>} : vector<256x8xf32>, vector<8x256xf32>, vector<256x256xf32> -> vector<256x256xf32>
    %71 = arith.mulf %70, %50 : vector<256x256xf32>
    %cst_51 = arith.constant dense<0.000000e+00> : vector<16x256xf32>
    %72 = tpu.matmul %3, %71, %cst_51 {dimension_numbers = #tpu.dot_dimension_numbers<[1], [0], [0], [1], [0, 0, 1, 1], [], []>} : vector<16x256xf32>, vector<256x256xf32>, vector<16x256xf32> -> vector<16x256xf32>
    %c0_52 = arith.constant 0 : index
    %c0_53 = arith.constant 0 : index
    %73 = vector.load %arg15[%c0_52, %c0_53] : memref<256x32xf32, #tpu.memory_space<vmem>>, vector<256x32xf32>
    %cst_54 = arith.constant dense<0.000000e+00> : vector<16x32xf32>
    %74 = tpu.matmul %72, %73, %cst_54 {dimension_numbers = #tpu.dot_dimension_numbers<[1], [0], [0], [1], [0, 0, 1, 1], [], []>} : vector<16x256xf32>, vector<256x32xf32>, vector<16x32xf32> -> vector<16x32xf32>
    %c0_55 = arith.constant 0 : index
    %c0_56 = arith.constant 0 : index
    %75 = vector.load %arg16[%c0_55, %c0_56] : memref<1x32xf32, #tpu.memory_space<vmem>>, vector<1x32xf32>
    %76 = vector.broadcast %75 : vector<1x32xf32> to vector<16x32xf32>
    %77 = arith.addf %74, %76 : vector<16x32xf32>
    %cst_57 = arith.constant 0.000000e+00 : f32
    %78 = vector.broadcast %cst_57 : f32 to vector<16x32xf32>
    %79 = arith.maximumf %77, %78 : vector<16x32xf32>
    %80 = arith.addf %79, %42 : vector<16x32xf32>
    %c0_58 = arith.constant 0 : index
    %c0_59 = arith.constant 0 : index
    %81 = vector.load %arg17[%c0_58, %c0_59] : memref<32x256xf32, #tpu.memory_space<vmem>>, vector<32x256xf32>
    %cst_60 = arith.constant dense<0.000000e+00> : vector<16x256xf32>
    %82 = tpu.matmul %80, %81, %cst_60 {dimension_numbers = #tpu.dot_dimension_numbers<[1], [0], [0], [1], [0, 0, 1, 1], [], []>} : vector<16x32xf32>, vector<32x256xf32>, vector<16x256xf32> -> vector<16x256xf32>
    %c0_61 = arith.constant 0 : index
    %c0_62 = arith.constant 0 : index
    %83 = vector.load %arg18[%c0_61, %c0_62] : memref<1x256xf32, #tpu.memory_space<vmem>>, vector<1x256xf32>
    %84 = vector.broadcast %83 : vector<1x256xf32> to vector<16x256xf32>
    %85 = arith.addf %82, %84 : vector<16x256xf32>
    %86 = vector.extract_strided_slice %85 {offsets = [0, 0], sizes = [16, 128], strides = [1, 1]} : vector<16x256xf32> to vector<16x128xf32>
    %87 = vector.extract_strided_slice %85 {offsets = [0, 128], sizes = [16, 128], strides = [1, 1]} : vector<16x256xf32> to vector<16x128xf32>
    %cst_63 = arith.constant dense<0.000000e+00> : vector<256x128xf32>
    %88 = tpu.matmul %2, %86, %cst_63 {dimension_numbers = #tpu.dot_dimension_numbers<[1], [0], [0], [1], [0, 0, 1, 1], [], []>} : vector<256x16xf32>, vector<16x128xf32>, vector<256x128xf32> -> vector<256x128xf32>
    %cst_64 = arith.constant dense<0.000000e+00> : vector<256x128xf32>
    %89 = tpu.matmul %1, %87, %cst_64 {dimension_numbers = #tpu.dot_dimension_numbers<[1], [0], [0], [1], [0, 0, 1, 1], [], []>} : vector<256x16xf32>, vector<16x128xf32>, vector<256x128xf32> -> vector<256x128xf32>
    %90 = arith.addf %89, %88 : vector<256x128xf32>
    %cst_65 = arith.constant 2.000000e-01 : f32
    %91 = vector.broadcast %cst_65 : f32 to vector<256x128xf32>
    %92 = arith.mulf %91, %90 : vector<256x128xf32>
    %93 = arith.maximumf %90, %92 : vector<256x128xf32>
    %c0_66 = arith.constant 0 : index
    %c0_67 = arith.constant 0 : index
    %94 = vector.load %arg19[%c0_66, %c0_67] : memref<128x4xf32, #tpu.memory_space<vmem>>, vector<128x4xf32>
    %cst_68 = arith.constant dense<0.000000e+00> : vector<256x4xf32>
    %95 = tpu.matmul %93, %94, %cst_68 {dimension_numbers = #tpu.dot_dimension_numbers<[1], [0], [0], [1], [0, 0, 1, 1], [], []>} : vector<256x128xf32>, vector<128x4xf32>, vector<256x4xf32> -> vector<256x4xf32>
    %96 = vector.broadcast %0 : vector<256x1xf32> to vector<256x4xf32>
    %97 = arith.addf %95, %96 : vector<256x4xf32>
    %98 = vector.shape_cast %97 : vector<256x4xf32> to vector<16x16x4xf32>
    %cst_69 = arith.constant dense<0xFF800000> : vector<16x4xf32>
    %99 = vector.multi_reduction <maximumf>, %98, %cst_69 [1] : vector<16x16x4xf32> to vector<16x4xf32>
    %cst_70 = arith.constant dense<0.000000e+00> : vector<256x4xf32>
    %100 = tpu.matmul %1, %99, %cst_70 {dimension_numbers = #tpu.dot_dimension_numbers<[1], [0], [0], [1], [0, 0, 1, 1], [], []>} : vector<256x16xf32>, vector<16x4xf32>, vector<256x4xf32> -> vector<256x4xf32>
    %101 = arith.subf %97, %100 : vector<256x4xf32>
    %102 = math.exp %101 : vector<256x4xf32>
    %cst_71 = arith.constant dense<0.000000e+00> : vector<16x4xf32>
    %103 = tpu.matmul %3, %102, %cst_71 {dimension_numbers = #tpu.dot_dimension_numbers<[1], [0], [0], [1], [0, 0, 1, 1], [], []>} : vector<16x256xf32>, vector<256x4xf32>, vector<16x4xf32> -> vector<16x4xf32>
    %104 = tpu.reciprocal %103 {approx = true} : vector<16x4xf32> -> vector<16x4xf32>
    %cst_72 = arith.constant dense<0.000000e+00> : vector<256x4xf32>
    %105 = tpu.matmul %1, %104, %cst_72 {dimension_numbers = #tpu.dot_dimension_numbers<[1], [0], [0], [1], [0, 0, 1, 1], [], []>} : vector<256x16xf32>, vector<16x4xf32>, vector<256x4xf32> -> vector<256x4xf32>
    %106 = arith.mulf %102, %105 : vector<256x4xf32>
    %c0_73 = arith.constant 0 : index
    %c0_74 = arith.constant 0 : index
    %107 = vector.load %arg20[%c0_73, %c0_74] : memref<4x128xf32, #tpu.memory_space<vmem>>, vector<4x128xf32>
    %cst_75 = arith.constant dense<0.000000e+00> : vector<256x128xf32>
    %108 = tpu.matmul %106, %107, %cst_75 {dimension_numbers = #tpu.dot_dimension_numbers<[1], [0], [0], [1], [0, 0, 1, 1], [], []>} : vector<256x4xf32>, vector<4x128xf32>, vector<256x128xf32> -> vector<256x128xf32>
    %109 = arith.mulf %108, %88 : vector<256x128xf32>
    %cst_76 = arith.constant dense<0.000000e+00> : vector<16x128xf32>
    %110 = tpu.matmul %3, %109, %cst_76 {dimension_numbers = #tpu.dot_dimension_numbers<[1], [0], [0], [1], [0, 0, 1, 1], [], []>} : vector<16x256xf32>, vector<256x128xf32>, vector<16x128xf32> -> vector<16x128xf32>
    %c0_77 = arith.constant 0 : index
    %c0_78 = arith.constant 0 : index
    %111 = vector.load %arg21[%c0_77, %c0_78] : memref<128x32xf32, #tpu.memory_space<vmem>>, vector<128x32xf32>
    %cst_79 = arith.constant dense<0.000000e+00> : vector<16x32xf32>
    %112 = tpu.matmul %110, %111, %cst_79 {dimension_numbers = #tpu.dot_dimension_numbers<[1], [0], [0], [1], [0, 0, 1, 1], [], []>} : vector<16x128xf32>, vector<128x32xf32>, vector<16x32xf32> -> vector<16x32xf32>
    %c0_80 = arith.constant 0 : index
    %c0_81 = arith.constant 0 : index
    %113 = vector.load %arg22[%c0_80, %c0_81] : memref<1x32xf32, #tpu.memory_space<vmem>>, vector<1x32xf32>
    %114 = vector.broadcast %113 : vector<1x32xf32> to vector<16x32xf32>
    %115 = arith.addf %112, %114 : vector<16x32xf32>
    %116 = arith.addf %115, %80 : vector<16x32xf32>
    %c0_82 = arith.constant 0 : index
    %c0_83 = arith.constant 0 : index
    %117 = vector.load %arg23[%c0_82, %c0_83] : memref<16x32xf32, #tpu.memory_space<vmem>>, vector<16x32xf32>
    tpu.vector_store %arg23[%c0_82, %c0_83], %116 {strides = array<i32>} : memref<16x32xf32, #tpu.memory_space<vmem>>, vector<16x32xf32>,
    return
  }
}

</mosaic_0001>

<llo_original>
// kernel: tpu_custom_call.1
$region0: #{tpu_custom_call.1}
  #allocation0 [shape = 'u32[]', space=smem, size = 0x4, offset = 0x4, fixed_abs, tag = 'smem constant byte address 0x4 - core index']
  #allocation1 [shape = 'u32[72,128]{1,0:T(1,128)}', space=vmem, size = 0x9000, scoped, tag = 'internal scratch']
  %s0 = inlined_call_operand.vmem [shape: f32[16,32], index: 0, kind: input, shape index: {}]
  %s1 = inlined_call_operand.vmem [shape: f32[256,1], index: 1, kind: input, shape index: {}]
  %s2 = inlined_call_operand.vmem [shape: f32[256,16], index: 2, kind: input, shape index: {}]
  %s3 = inlined_call_operand.vmem [shape: f32[256,16], index: 3, kind: input, shape index: {}]
  %s4 = inlined_call_operand.vmem [shape: f32[16,256], index: 4, kind: input, shape index: {}]
  %s5 = inlined_call_operand.vmem [shape: f32[32,512], index: 5, kind: input, shape index: {}]
  %s6 = inlined_call_operand.vmem [shape: f32[1,512], index: 6, kind: input, shape index: {}]
  %s7 = inlined_call_operand.vmem [shape: f32[256,8], index: 7, kind: input, shape index: {}]
  %s8 = inlined_call_operand.vmem [shape: f32[8,256], index: 8, kind: input, shape index: {}]
  %s9 = inlined_call_operand.vmem [shape: f32[256,32], index: 9, kind: input, shape index: {}]
  %s10 = inlined_call_operand.vmem [shape: f32[1,32], index: 10, kind: input, shape index: {}]
  %s11 = inlined_call_operand.vmem [shape: f32[32,512], index: 11, kind: input, shape index: {}]
  %s12 = inlined_call_operand.vmem [shape: f32[1,512], index: 12, kind: input, shape index: {}]
  %s13 = inlined_call_operand.vmem [shape: f32[256,8], index: 13, kind: input, shape index: {}]
  %s14 = inlined_call_operand.vmem [shape: f32[8,256], index: 14, kind: input, shape index: {}]
  %s15 = inlined_call_operand.vmem [shape: f32[256,32], index: 15, kind: input, shape index: {}]
  %s16 = inlined_call_operand.vmem [shape: f32[1,32], index: 16, kind: input, shape index: {}]
  %s17 = inlined_call_operand.vmem [shape: f32[32,256], index: 17, kind: input, shape index: {}]
  %s18 = inlined_call_operand.vmem [shape: f32[1,256], index: 18, kind: input, shape index: {}]
  %s19 = inlined_call_operand.vmem [shape: f32[128,4], index: 19, kind: input, shape index: {}]
  %s20 = inlined_call_operand.vmem [shape: f32[4,128], index: 20, kind: input, shape index: {}]
  %s21 = inlined_call_operand.vmem [shape: f32[128,32], index: 21, kind: input, shape index: {}]
  %s22 = inlined_call_operand.vmem [shape: f32[1,32], index: 22, kind: input, shape index: {}]
  %s23 = inlined_call_operand.hbm [shape: f32[16,32], index: 23, kind: output, shape index: {}]
  %s24 = sld [smem:[#allocation0]]
  $region102: #{tpu_custom_call.1} parent=0
    _
  %s26 = ssub.s32 1, %s24
  %s27 = scalar_select 0, %s26, %s24
  $region1: #{tpu_custom_call.1} parent=0
    #allocation2 [shape = 'u8[8192]{0}', space=vmem, size = 0x2000, scoped, tag = 'output window, operand 0, single buffered']
    #allocation3 [shape = 's32[1]{0}', space=sflag, size = 0x4, scoped, tag = 'scoped memory for tpu_custom_call.1']
    %28 = vsyncpa [#allocation3], 0
    // Predicated region
    $region2: #{tpu_custom_call.1} parent=1 // pred_check
      _
    $region3: #{tpu_custom_call.1} parent=1 // pred_check_branch
      %30 = sbr.rel (0) target = $region5
    $region4: #{tpu_custom_call.1} parent=1 // pred_region
      _
    $region5: #{tpu_custom_call.1} parent=1 // pred_fallthru
      _
    // Predicated region
    $region6: #{tpu_custom_call.1} parent=1 // pred_check
      _
    $region7: #{tpu_custom_call.1} parent=1 // pred_check_branch
      %32 = sbr.rel (0) target = $region9
    $region8: #{tpu_custom_call.1} parent=1 // pred_region
      _
    $region9: #{tpu_custom_call.1} parent=1 // pred_fallthru
      _
    // Predicated region
    $region10: #{tpu_custom_call.1} parent=1 // pred_check
      _
    $region11: #{tpu_custom_call.1} parent=1 // pred_check_branch
      %34 = sbr.rel (0) target = $region13
    $region12: #{tpu_custom_call.1} parent=1 // pred_region
      _
    $region13: #{tpu_custom_call.1} parent=1 // pred_fallthru
      _
    // Predicated region
    $region14: #{tpu_custom_call.1} parent=1 // pred_check
      _
    $region15: #{tpu_custom_call.1} parent=1 // pred_check_branch
      %36 = sbr.rel (0) target = $region17
    $region16: #{tpu_custom_call.1} parent=1 // pred_region
      _
    $region17: #{tpu_custom_call.1} parent=1 // pred_fallthru
      _
    // Predicated region
    $region18: #{tpu_custom_call.1} parent=1 // pred_check
      _
    $region19: #{tpu_custom_call.1} parent=1 // pred_check_branch
      %38 = sbr.rel (0) target = $region21
    $region20: #{tpu_custom_call.1} parent=1 // pred_region
      _
    $region21: #{tpu_custom_call.1} parent=1 // pred_fallthru
      _
    // Predicated region
    $region22: #{tpu_custom_call.1} parent=1 // pred_check
      _
    $region23: #{tpu_custom_call.1} parent=1 // pred_check_branch
      %40 = sbr.rel (0) target = $region25
    $region24: #{tpu_custom_call.1} parent=1 // pred_region
      _
    $region25: #{tpu_custom_call.1} parent=1 // pred_fallthru
      _
    // Predicated region
    $region26: #{tpu_custom_call.1} parent=1 // pred_check
      _
    $region27: #{tpu_custom_call.1} parent=1 // pred_check_branch
      %42 = sbr.rel (0) target = $region29
    $region28: #{tpu_custom_call.1} parent=1 // pred_region
      _
    $region29: #{tpu_custom_call.1} parent=1 // pred_fallthru
      _
    // Predicated region
    $region30: #{tpu_custom_call.1} parent=1 // pred_check
      _
    $region31: #{tpu_custom_call.1} parent=1 // pred_check_branch
      %44 = sbr.rel (0) target = $region33
    $region32: #{tpu_custom_call.1} parent=1 // pred_region
      _
    $region33: #{tpu_custom_call.1} parent=1 // pred_fallthru
      _
    // Predicated region
    $region34: #{tpu_custom_call.1} parent=1 // pred_check
      _
    $region35: #{tpu_custom_call.1} parent=1 // pred_check_branch
      %46 = sbr.rel (0) target = $region37
    $region36: #{tpu_custom_call.1} parent=1 // pred_region
      _
    $region37: #{tpu_custom_call.1} parent=1 // pred_fallthru
      _
    // Predicated region
    $region38: #{tpu_custom_call.1} parent=1 // pred_check
      _
    $region39: #{tpu_custom_call.1} parent=1 // pred_check_branch
      %48 = sbr.rel (0) target = $region41
    $region40: #{tpu_custom_call.1} parent=1 // pred_region
      _
    $region41: #{tpu_custom_call.1} parent=1 // pred_fallthru
      _
    // Predicated region
    $region42: #{tpu_custom_call.1} parent=1 // pred_check
      _
    $region43: #{tpu_custom_call.1} parent=1 // pred_check_branch
      %50 = sbr.rel (0) target = $region45
    $region44: #{tpu_custom_call.1} parent=1 // pred_region
      _
    $region45: #{tpu_custom_call.1} parent=1 // pred_fallthru
      _
    // Predicated region
    $region46: #{tpu_custom_call.1} parent=1 // pred_check
      _
    $region47: #{tpu_custom_call.1} parent=1 // pred_check_branch
      %52 = sbr.rel (0) target = $region49
    $region48: #{tpu_custom_call.1} parent=1 // pred_region
      _
    $region49: #{tpu_custom_call.1} parent=1 // pred_fallthru
      _
    // Predicated region
    $region50: #{tpu_custom_call.1} parent=1 // pred_check
      _
    $region51: #{tpu_custom_call.1} parent=1 // pred_check_branch
      %54 = sbr.rel (0) target = $region53
    $region52: #{tpu_custom_call.1} parent=1 // pred_region
      _
    $region53: #{tpu_custom_call.1} parent=1 // pred_fallthru
      _
    // Predicated region
    $region54: #{tpu_custom_call.1} parent=1 // pred_check
      _
    $region55: #{tpu_custom_call.1} parent=1 // pred_check_branch
      %56 = sbr.rel (0) target = $region57
    $region56: #{tpu_custom_call.1} parent=1 // pred_region
      _
    $region57: #{tpu_custom_call.1} parent=1 // pred_fallthru
      _
    // Predicated region
    $region58: #{tpu_custom_call.1} parent=1 // pred_check
      _
    $region59: #{tpu_custom_call.1} parent=1 // pred_check_branch
      %58 = sbr.rel (0) target = $region61
    $region60: #{tpu_custom_call.1} parent=1 // pred_region
      _
    $region61: #{tpu_custom_call.1} parent=1 // pred_fallthru
      _
    // Predicated region
    $region62: #{tpu_custom_call.1} parent=1 // pred_check
      _
    $region63: #{tpu_custom_call.1} parent=1 // pred_check_branch
      %60 = sbr.rel (0) target = $region65
    $region64: #{tpu_custom_call.1} parent=1 // pred_region
      _
    $region65: #{tpu_custom_call.1} parent=1 // pred_fallthru
      _
    // Predicated region
    $region66: #{tpu_custom_call.1} parent=1 // pred_check
      _
    $region67: #{tpu_custom_call.1} parent=1 // pred_check_branch
      %62 = sbr.rel (0) target = $region69
    $region68: #{tpu_custom_call.1} parent=1 // pred_region
      _
    $region69: #{tpu_custom_call.1} parent=1 // pred_fallthru
      _
    // Predicated region
    $region70: #{tpu_custom_call.1} parent=1 // pred_check
      _
    $region71: #{tpu_custom_call.1} parent=1 // pred_check_branch
      %64 = sbr.rel (0) target = $region73
    $region72: #{tpu_custom_call.1} parent=1 // pred_region
      _
    $region73: #{tpu_custom_call.1} parent=1 // pred_fallthru
      _
    // Predicated region
    $region74: #{tpu_custom_call.1} parent=1 // pred_check
      _
    $region75: #{tpu_custom_call.1} parent=1 // pred_check_branch
      %66 = sbr.rel (0) target = $region77
    $region76: #{tpu_custom_call.1} parent=1 // pred_region
      _
    $region77: #{tpu_custom_call.1} parent=1 // pred_fallthru
      _
    // Predicated region
    $region78: #{tpu_custom_call.1} parent=1 // pred_check
      _
    $region79: #{tpu_custom_call.1} parent=1 // pred_check_branch
      %68 = sbr.rel (0) target = $region81
    $region80: #{tpu_custom_call.1} parent=1 // pred_region
      _
    $region81: #{tpu_custom_call.1} parent=1 // pred_fallthru
      _
    // Predicated region
    $region82: #{tpu_custom_call.1} parent=1 // pred_check
      _
    $region83: #{tpu_custom_call.1} parent=1 // pred_check_branch
      %70 = sbr.rel (0) target = $region85
    $region84: #{tpu_custom_call.1} parent=1 // pred_region
      _
    $region85: #{tpu_custom_call.1} parent=1 // pred_fallthru
      _
    // Predicated region
    $region86: #{tpu_custom_call.1} parent=1 // pred_check
      _
    $region87: #{tpu_custom_call.1} parent=1 // pred_check_branch
      %72 = sbr.rel (0) target = $region89
    $region88: #{tpu_custom_call.1} parent=1 // pred_region
      _
    $region89: #{tpu_custom_call.1} parent=1 // pred_fallthru
      _
    // Predicated region
    $region90: #{tpu_custom_call.1} parent=1 // pred_check
      _
    $region91: #{tpu_custom_call.1} parent=1 // pred_check_branch
      %74 = sbr.rel (0) target = $region93
    $region92: #{tpu_custom_call.1} parent=1 // pred_region
      _
    $region93: #{tpu_custom_call.1} parent=1 // pred_fallthru
      _
    %v75 = vld [vmem:[%s1] sm:$0xff]
    %v76 = vld [vmem:[%s1 + $0x8] sm:$0xff]
    %v77 = vld [vmem:[%s1 + $0x10] sm:$0xff]
    %v78 = vld [vmem:[%s1 + $0x18] sm:$0xff]
    %v79 = vld [vmem:[%s1 + $0x20] sm:$0xff]
    %v80 = vld [vmem:[%s1 + $0x28] sm:$0xff]
    %v81 = vld [vmem:[%s1 + $0x30] sm:$0xff]
    %v82 = vld [vmem:[%s1 + $0x38] sm:$0xff]
    %v83 = vld [vmem:[%s1 + $0x40] sm:$0xff]
    %v84 = vld [vmem:[%s1 + $0x48] sm:$0xff]
    %v85 = vld [vmem:[%s1 + $0x50] sm:$0xff]
    %v86 = vld [vmem:[%s1 + $0x58] sm:$0xff]
    %v87 = vld [vmem:[%s1 + $0x60] sm:$0xff]
    %v88 = vld [vmem:[%s1 + $0x68] sm:$0xff]
    %v89 = vld [vmem:[%s1 + $0x70] sm:$0xff]
    %v90 = vld [vmem:[%s1 + $0x78] sm:$0xff]
    %v91 = vld [vmem:[%s1 + $0x80] sm:$0xff]
    %v92 = vld [vmem:[%s1 + $0x88] sm:$0xff]
    %v93 = vld [vmem:[%s1 + $0x90] sm:$0xff]
    %v94 = vld [vmem:[%s1 + $0x98] sm:$0xff]
    %v95 = vld [vmem:[%s1 + $0xa0] sm:$0xff]
    %v96 = vld [vmem:[%s1 + $0xa8] sm:$0xff]
    %v97 = vld [vmem:[%s1 + $0xb0] sm:$0xff]
    %v98 = vld [vmem:[%s1 + $0xb8] sm:$0xff]
    %v99 = vld [vmem:[%s1 + $0xc0] sm:$0xff]
    %v100 = vld [vmem:[%s1 + $0xc8] sm:$0xff]
    %v101 = vld [vmem:[%s1 + $0xd0] sm:$0xff]
    %v102 = vld [vmem:[%s1 + $0xd8] sm:$0xff]
    %v103 = vld [vmem:[%s1 + $0xe0] sm:$0xff]
    %v104 = vld [vmem:[%s1 + $0xe8] sm:$0xff]
    %v105 = vld [vmem:[%s1 + $0xf0] sm:$0xff]
    %v106 = vld [vmem:[%s1 + $0xf8] sm:$0xff]
    %v107 = vld [vmem:[%s2] sm:$0xff]
    %v108 = vld [vmem:[%s2 + $0x8] sm:$0xff]
    %v109 = vld [vmem:[%s2 + $0x10] sm:$0xff]
    %v110 = vld [vmem:[%s2 + $0x18] sm:$0xff]
    %v111 = vld [vmem:[%s2 + $0x20] sm:$0xff]
    %v112 = vld [vmem:[%s2 + $0x28] sm:$0xff]
    %v113 = vld [vmem:[%s2 + $0x30] sm:$0xff]
    %v114 = vld [vmem:[%s2 + $0x38] sm:$0xff]
    %v115 = vld [vmem:[%s2 + $0x40] sm:$0xff]
    %v116 = vld [vmem:[%s2 + $0x48] sm:$0xff]
    %v117 = vld [vmem:[%s2 + $0x50] sm:$0xff]
    %v118 = vld [vmem:[%s2 + $0x58] sm:$0xff]
    %v119 = vld [vmem:[%s2 + $0x60] sm:$0xff]
    %v120 = vld [vmem:[%s2 + $0x68] sm:$0xff]
    %v121 = vld [vmem:[%s2 + $0x70] sm:$0xff]
    %v122 = vld [vmem:[%s2 + $0x78] sm:$0xff]
    %v123 = vld [vmem:[%s2 + $0x80] sm:$0xff]
    %v124 = vld [vmem:[%s2 + $0x88] sm:$0xff]
    %v125 = vld [vmem:[%s2 + $0x90] sm:$0xff]
    %v126 = vld [vmem:[%s2 + $0x98] sm:$0xff]
    %v127 = vld [vmem:[%s2 + $0xa0] sm:$0xff]
    %v128 = vld [vmem:[%s2 + $0xa8] sm:$0xff]
    %v129 = vld [vmem:[%s2 + $0xb0] sm:$0xff]
    %v130 = vld [vmem:[%s2 + $0xb8] sm:$0xff]
    %v131 = vld [vmem:[%s2 + $0xc0] sm:$0xff]
    %v132 = vld [vmem:[%s2 + $0xc8] sm:$0xff]
    %v133 = vld [vmem:[%s2 + $0xd0] sm:$0xff]
    %v134 = vld [vmem:[%s2 + $0xd8] sm:$0xff]
    %v135 = vld [vmem:[%s2 + $0xe0] sm:$0xff]
    %v136 = vld [vmem:[%s2 + $0xe8] sm:$0xff]
    %v137 = vld [vmem:[%s2 + $0xf0] sm:$0xff]
    %v138 = vld [vmem:[%s2 + $0xf8] sm:$0xff]
    %v139 = vld [vmem:[%s3] sm:$0xff]
    %v140 = vld [vmem:[%s3 + $0x8] sm:$0xff]
    %v141 = vld [vmem:[%s3 + $0x10] sm:$0xff]
    %v142 = vld [vmem:[%s3 + $0x18] sm:$0xff]
    %v143 = vld [vmem:[%s3 + $0x20] sm:$0xff]
    %v144 = vld [vmem:[%s3 + $0x28] sm:$0xff]
    %v145 = vld [vmem:[%s3 + $0x30] sm:$0xff]
    %v146 = vld [vmem:[%s3 + $0x38] sm:$0xff]
    %v147 = vld [vmem:[%s3 + $0x40] sm:$0xff]
    %v148 = vld [vmem:[%s3 + $0x48] sm:$0xff]
    %v149 = vld [vmem:[%s3 + $0x50] sm:$0xff]
    %v150 = vld [vmem:[%s3 + $0x58] sm:$0xff]
    %v151 = vld [vmem:[%s3 + $0x60] sm:$0xff]
    %v152 = vld [vmem:[%s3 + $0x68] sm:$0xff]
    %v153 = vld [vmem:[%s3 + $0x70] sm:$0xff]
    %v154 = vld [vmem:[%s3 + $0x78] sm:$0xff]
    %v155 = vld [vmem:[%s3 + $0x80] sm:$0xff]
    %v156 = vld [vmem:[%s3 + $0x88] sm:$0xff]
    %v157 = vld [vmem:[%s3 + $0x90] sm:$0xff]
    %v158 = vld [vmem:[%s3 + $0x98] sm:$0xff]
    %v159 = vld [vmem:[%s3 + $0xa0] sm:$0xff]
    %v160 = vld [vmem:[%s3 + $0xa8] sm:$0xff]
    %v161 = vld [vmem:[%s3 + $0xb0] sm:$0xff]
    %v162 = vld [vmem:[%s3 + $0xb8] sm:$0xff]
    %v163 = vld [vmem:[%s3 + $0xc0] sm:$0xff]
    %v164 = vld [vmem:[%s3 + $0xc8] sm:$0xff]
    %v165 = vld [vmem:[%s3 + $0xd0] sm:$0xff]
    %v166 = vld [vmem:[%s3 + $0xd8] sm:$0xff]
    %v167 = vld [vmem:[%s3 + $0xe0] sm:$0xff]
    %v168 = vld [vmem:[%s3 + $0xe8] sm:$0xff]
    %v169 = vld [vmem:[%s3 + $0xf0] sm:$0xff]
    %v170 = vld [vmem:[%s3 + $0xf8] sm:$0xff]
    %v171 = vld [vmem:[%s4] sm:$0xff]
    %v172 = vld [vmem:[%s4 + $0x8] sm:$0xff]
    %v173 = vld [vmem:[%s4 + $0x10] sm:$0xff]
    %v174 = vld [vmem:[%s4 + $0x18] sm:$0xff]
    %v175 = vld [vmem:[%s0] sm:$0xff]
    %v176 = vld [vmem:[%s0 + $0x8] sm:$0xff]
    %v177 = vld [vmem:[%s5] sm:$0xff]
    %v178 = vld [vmem:[%s5 + $0x8] sm:$0xff]
    %v179 = vld [vmem:[%s5 + $0x10] sm:$0xff]
    %v180 = vld [vmem:[%s5 + $0x18] sm:$0xff]
    %v181 = vld [vmem:[%s5 + $0x20] sm:$0xff]
    %v182 = vld [vmem:[%s5 + $0x28] sm:$0xff]
    %v183 = vld [vmem:[%s5 + $0x30] sm:$0xff]
    %v184 = vld [vmem:[%s5 + $0x38] sm:$0xff]
    %v185 = vld [vmem:[%s5 + $0x40] sm:$0xff]
    %v186 = vld [vmem:[%s5 + $0x48] sm:$0xff]
    %v187 = vld [vmem:[%s5 + $0x50] sm:$0xff]
    %v188 = vld [vmem:[%s5 + $0x58] sm:$0xff]
    %v189 = vld [vmem:[%s5 + $0x60] sm:$0xff]
    %v190 = vld [vmem:[%s5 + $0x68] sm:$0xff]
    %v191 = vld [vmem:[%s5 + $0x70] sm:$0xff]
    %v192 = vld [vmem:[%s5 + $0x78] sm:$0xff]
    %v193 = vld [vmem:[%s6] sm:$0xf]
    %v195 = vperm.slane %v193, 0
    %v196 = vperm.slane %v193, 1
    %v197 = vperm.slane %v193, 2
    %v198 = vperm.slane %v193, 3
    %vm203 = vcmask 261120
    %v205 = vsel %vm203, %v175, 0
    %v208 = vsel %vm203, %v176, 0
    %210 = vmatpush.msra.mxu0 0.0
    %211 = vmatpush.msra.mxu0 0.0
    %212 = vmatpush.msra.mxu0 0.0
    %213 = vmatpush.msra.mxu0 0.0
    %214 = vmatpush.msra.mxu0 0.0
    %215 = vmatpush.msra.mxu0 0.0
    %216 = vmatpush.msra.mxu0 0.0
    %217 = vmatpush.msra.mxu0 0.0
    %218 = vmatpush.msra.mxu0 0.0
    %219 = vmatpush.msra.mxu0 0.0
    %220 = vmatpush.msra.mxu0 0.0
    %221 = vmatpush.msra.mxu0 0.0
    %222 = vmatpush.msra.mxu0 %v189
    %223 = vmatpush.msra.mxu0 %v185
    %224 = vmatpush.msra.mxu0 %v181
    %225 = vmatpush.msra.mxu0 %v177
    %226 = vmatmul.f32.gmra.mxu0 %v205
    %v227 = vpop.f32.mrf.mxu0
    %v228 = vadd.f32 %v195, %v227
    %229 = vmatmul.f32.gmra.mxu0 %v208
    %v230 = vpop.f32.mrf.mxu0
    %v231 = vadd.f32 %v195, %v230
    %232 = vdwg.mxu0
    %233 = vmatpush.msra.mxu0 0.0
    %234 = vmatpush.msra.mxu0 0.0
    %235 = vmatpush.msra.mxu0 0.0
    %236 = vmatpush.msra.mxu0 0.0
    %237 = vmatpush.msra.mxu0 0.0
    %238 = vmatpush.msra.mxu0 0.0
    %239 = vmatpush.msra.mxu0 0.0
    %240 = vmatpush.msra.mxu0 0.0
    %241 = vmatpush.msra.mxu0 0.0
    %242 = vmatpush.msra.mxu0 0.0
    %243 = vmatpush.msra.mxu0 0.0
    %244 = vmatpush.msra.mxu0 0.0
    %245 = vmatpush.msra.mxu0 %v190
    %246 = vmatpush.msra.mxu0 %v186
    %247 = vmatpush.msra.mxu0 %v182
    %248 = vmatpush.msra.mxu0 %v178
    %249 = vmatmul.f32.gmra.mxu0 %v205
    %v250 = vpop.f32.mrf.mxu0
    %v251 = vadd.f32 %v196, %v250
    %252 = vmatmul.f32.gmra.mxu0 %v208
    %v253 = vpop.f32.mrf.mxu0
    %v254 = vadd.f32 %v196, %v253
    %255 = vdwg.mxu0
    %256 = vmatpush.msra.mxu0 0.0
    %257 = vmatpush.msra.mxu0 0.0
    %258 = vmatpush.msra.mxu0 0.0
    %259 = vmatpush.msra.mxu0 0.0
    %260 = vmatpush.msra.mxu0 0.0
    %261 = vmatpush.msra.mxu0 0.0
    %262 = vmatpush.msra.mxu0 0.0
    %263 = vmatpush.msra.mxu0 0.0
    %264 = vmatpush.msra.mxu0 0.0
    %265 = vmatpush.msra.mxu0 0.0
    %266 = vmatpush.msra.mxu0 0.0
    %267 = vmatpush.msra.mxu0 0.0
    %268 = vmatpush.msra.mxu0 %v191
    %269 = vmatpush.msra.mxu0 %v187
    %270 = vmatpush.msra.mxu0 %v183
    %271 = vmatpush.msra.mxu0 %v179
    %272 = vmatmul.f32.gmra.mxu0 %v205
    %v273 = vpop.f32.mrf.mxu0
    %v274 = vadd.f32 %v197, %v273
    %275 = vmatmul.f32.gmra.mxu0 %v208
    %v276 = vpop.f32.mrf.mxu0
    %v277 = vadd.f32 %v197, %v276
    %278 = vdwg.mxu0
    %279 = vmatpush.msra.mxu0 0.0
    %280 = vmatpush.msra.mxu0 0.0
    %281 = vmatpush.msra.mxu0 0.0
    %282 = vmatpush.msra.mxu0 0.0
    %283 = vmatpush.msra.mxu0 0.0
    %284 = vmatpush.msra.mxu0 0.0
    %285 = vmatpush.msra.mxu0 0.0
    %286 = vmatpush.msra.mxu0 0.0
    %287 = vmatpush.msra.mxu0 0.0
    %288 = vmatpush.msra.mxu0 0.0
    %289 = vmatpush.msra.mxu0 0.0
    %290 = vmatpush.msra.mxu0 0.0
    %291 = vmatpush.msra.mxu0 %v192
    %292 = vmatpush.msra.mxu0 %v188
    %293 = vmatpush.msra.mxu0 %v184
    %294 = vmatpush.msra.mxu0 %v180
    %295 = vmatmul.f32.gmra.mxu0 %v205
    %v296 = vpop.f32.mrf.mxu0
    %v297 = vadd.f32 %v198, %v296
    %298 = vmatmul.f32.gmra.mxu0 %v208
    %v299 = vpop.f32.mrf.mxu0
    %v300 = vadd.f32 %v198, %v299
    %301 = vdwg.mxu0
    %vm302 = vcmask 130048
    %v304 = vsel %vm302, %v139, 0
    %v307 = vsel %vm302, %v140, 0
    %v310 = vsel %vm302, %v141, 0
    %v313 = vsel %vm302, %v142, 0
    %v316 = vsel %vm302, %v143, 0
    %v319 = vsel %vm302, %v144, 0
    %v322 = vsel %vm302, %v145, 0
    %v325 = vsel %vm302, %v146, 0
    %v328 = vsel %vm302, %v147, 0
    %v331 = vsel %vm302, %v148, 0
    %v334 = vsel %vm302, %v149, 0
    %v337 = vsel %vm302, %v150, 0
    %v340 = vsel %vm302, %v151, 0
    %v343 = vsel %vm302, %v152, 0
    %v346 = vsel %vm302, %v153, 0
    %v349 = vsel %vm302, %v154, 0
    %v352 = vsel %vm302, %v155, 0
    %v355 = vsel %vm302, %v156, 0
    %v358 = vsel %vm302, %v157, 0
    %v361 = vsel %vm302, %v158, 0
    %v364 = vsel %vm302, %v159, 0
    %v367 = vsel %vm302, %v160, 0
    %v370 = vsel %vm302, %v161, 0
    %v373 = vsel %vm302, %v162, 0
    %v376 = vsel %vm302, %v163, 0
    %v379 = vsel %vm302, %v164, 0
    %v382 = vsel %vm302, %v165, 0
    %v385 = vsel %vm302, %v166, 0
    %v388 = vsel %vm302, %v167, 0
    %v391 = vsel %vm302, %v168, 0
    %v394 = vsel %vm302, %v169, 0
    %v397 = vsel %vm302, %v170, 0
    %399 = vmatpush.msra.mxu0 0.0
    %400 = vmatpush.msra.mxu0 0.0
    %401 = vmatpush.msra.mxu0 0.0
    %402 = vmatpush.msra.mxu0 0.0
    %403 = vmatpush.msra.mxu0 0.0
    %404 = vmatpush.msra.mxu0 0.0
    %405 = vmatpush.msra.mxu0 0.0
    %406 = vmatpush.msra.mxu0 0.0
    %407 = vmatpush.msra.mxu0 0.0
    %408 = vmatpush.msra.mxu0 0.0
    %409 = vmatpush.msra.mxu0 0.0
    %410 = vmatpush.msra.mxu0 0.0
    %411 = vmatpush.msra.mxu0 0.0
    %412 = vmatpush.msra.mxu0 0.0
    %413 = vmatpush.msra.mxu0 %v231
    %414 = vmatpush.msra.mxu0 %v228
    %415 = vmatmul.f32.gmra.mxu0 %v304
    %v416 = vpop.f32.mrf.mxu0
    %v417 = vadd.f32 0.0, %v416
    %418 = vmatmul.f32.gmra.mxu0 %v307
    %v419 = vpop.f32.mrf.mxu0
    %v420 = vadd.f32 0.0, %v419
    %421 = vmatmul.f32.gmra.mxu0 %v310
    %v422 = vpop.f32.mrf.mxu0
    %v423 = vadd.f32 0.0, %v422
    %424 = vmatmul.f32.gmra.mxu0 %v313
    %v425 = vpop.f32.mrf.mxu0
    %v426 = vadd.f32 0.0, %v425
    %427 = vmatmul.f32.gmra.mxu0 %v316
    %v428 = vpop.f32.mrf.mxu0
    %v429 = vadd.f32 0.0, %v428
    %430 = vmatmul.f32.gmra.mxu0 %v319
    %v431 = vpop.f32.mrf.mxu0
    %v432 = vadd.f32 0.0, %v431
    %433 = vmatmul.f32.gmra.mxu0 %v322
    %v434 = vpop.f32.mrf.mxu0
    %v435 = vadd.f32 0.0, %v434
    %436 = vmatmul.f32.gmra.mxu0 %v325
    %v437 = vpop.f32.mrf.mxu0
    %v438 = vadd.f32 0.0, %v437
    %439 = vmatmul.f32.gmra.mxu0 %v328
    %v440 = vpop.f32.mrf.mxu0
    %v441 = vadd.f32 0.0, %v440
    %442 = vmatmul.f32.gmra.mxu0 %v331
    %v443 = vpop.f32.mrf.mxu0
    %v444 = vadd.f32 0.0, %v443
    %445 = vmatmul.f32.gmra.mxu0 %v334
    %v446 = vpop.f32.mrf.mxu0
    %v447 = vadd.f32 0.0, %v446
    %448 = vmatmul.f32.gmra.mxu0 %v337
    %v449 = vpop.f32.mrf.mxu0
    %v450 = vadd.f32 0.0, %v449
    %451 = vmatmul.f32.gmra.mxu0 %v340
    %v452 = vpop.f32.mrf.mxu0
    %v453 = vadd.f32 0.0, %v452
    %454 = vmatmul.f32.gmra.mxu0 %v343
    %v455 = vpop.f32.mrf.mxu0
    %v456 = vadd.f32 0.0, %v455
    %457 = vmatmul.f32.gmra.mxu0 %v346
    %v458 = vpop.f32.mrf.mxu0
    %v459 = vadd.f32 0.0, %v458
    %460 = vmatmul.f32.gmra.mxu0 %v349
    %v461 = vpop.f32.mrf.mxu0
    %v462 = vadd.f32 0.0, %v461
    %463 = vmatmul.f32.gmra.mxu0 %v352
    %v464 = vpop.f32.mrf.mxu0
    %v465 = vadd.f32 0.0, %v464
    %466 = vmatmul.f32.gmra.mxu0 %v355
    %v467 = vpop.f32.mrf.mxu0
    %v468 = vadd.f32 0.0, %v467
    %469 = vmatmul.f32.gmra.mxu0 %v358
    %v470 = vpop.f32.mrf.mxu0
    %v471 = vadd.f32 0.0, %v470
    %472 = vmatmul.f32.gmra.mxu0 %v361
    %v473 = vpop.f32.mrf.mxu0
    %v474 = vadd.f32 0.0, %v473
    %475 = vmatmul.f32.gmra.mxu0 %v364
    %v476 = vpop.f32.mrf.mxu0
    %v477 = vadd.f32 0.0, %v476
    %478 = vmatmul.f32.gmra.mxu0 %v367
    %v479 = vpop.f32.mrf.mxu0
    %v480 = vadd.f32 0.0, %v479
    %481 = vmatmul.f32.gmra.mxu0 %v370
    %v482 = vpop.f32.mrf.mxu0
    %v483 = vadd.f32 0.0, %v482
    %484 = vmatmul.f32.gmra.mxu0 %v373
    %v485 = vpop.f32.mrf.mxu0
    %v486 = vadd.f32 0.0, %v485
    %487 = vmatmul.f32.gmra.mxu0 %v376
    %v488 = vpop.f32.mrf.mxu0
    %v489 = vadd.f32 0.0, %v488
    %490 = vmatmul.f32.gmra.mxu0 %v379
    %v491 = vpop.f32.mrf.mxu0
    %v492 = vadd.f32 0.0, %v491
    %493 = vmatmul.f32.gmra.mxu0 %v382
    %v494 = vpop.f32.mrf.mxu0
    %v495 = vadd.f32 0.0, %v494
    %496 = vmatmul.f32.gmra.mxu0 %v385
    %v497 = vpop.f32.mrf.mxu0
    %v498 = vadd.f32 0.0, %v497
    %499 = vmatmul.f32.gmra.mxu0 %v388
    %v500 = vpop.f32.mrf.mxu0
    %v501 = vadd.f32 0.0, %v500
    %502 = vmatmul.f32.gmra.mxu0 %v391
    %v503 = vpop.f32.mrf.mxu0
    %v504 = vadd.f32 0.0, %v503
    %505 = vmatmul.f32.gmra.mxu0 %v394
    %v506 = vpop.f32.mrf.mxu0
    %v507 = vadd.f32 0.0, %v506
    %508 = vmatmul.f32.gmra.mxu0 %v397
    %v509 = vpop.f32.mrf.mxu0
    %v510 = vadd.f32 0.0, %v509
    %511 = vdwg.mxu0
    %512 = vmatpush.msra.mxu0 0.0
    %513 = vmatpush.msra.mxu0 0.0
    %514 = vmatpush.msra.mxu0 0.0
    %515 = vmatpush.msra.mxu0 0.0
    %516 = vmatpush.msra.mxu0 0.0
    %517 = vmatpush.msra.mxu0 0.0
    %518 = vmatpush.msra.mxu0 0.0
    %519 = vmatpush.msra.mxu0 0.0
    %520 = vmatpush.msra.mxu0 0.0
    %521 = vmatpush.msra.mxu0 0.0
    %522 = vmatpush.msra.mxu0 0.0
    %523 = vmatpush.msra.mxu0 0.0
    %524 = vmatpush.msra.mxu0 0.0
    %525 = vmatpush.msra.mxu0 0.0
    %526 = vmatpush.msra.mxu0 %v254
    %527 = vmatpush.msra.mxu0 %v251
    %528 = vmatmul.f32.gmra.mxu0 %v304
    %v529 = vpop.f32.mrf.mxu0
    %v530 = vadd.f32 0.0, %v529
    %531 = vmatmul.f32.gmra.mxu0 %v307
    %v532 = vpop.f32.mrf.mxu0
    %v533 = vadd.f32 0.0, %v532
    %534 = vmatmul.f32.gmra.mxu0 %v310
    %v535 = vpop.f32.mrf.mxu0
    %v536 = vadd.f32 0.0, %v535
    %537 = vmatmul.f32.gmra.mxu0 %v313
    %v538 = vpop.f32.mrf.mxu0
    %v539 = vadd.f32 0.0, %v538
    %540 = vmatmul.f32.gmra.mxu0 %v316
    %v541 = vpop.f32.mrf.mxu0
    %v542 = vadd.f32 0.0, %v541
    %543 = vmatmul.f32.gmra.mxu0 %v319
    %v544 = vpop.f32.mrf.mxu0
    %v545 = vadd.f32 0.0, %v544
    %546 = vmatmul.f32.gmra.mxu0 %v322
    %v547 = vpop.f32.mrf.mxu0
    %v548 = vadd.f32 0.0, %v547
    %549 = vmatmul.f32.gmra.mxu0 %v325
    %v550 = vpop.f32.mrf.mxu0
    %v551 = vadd.f32 0.0, %v550
    %552 = vmatmul.f32.gmra.mxu0 %v328
    %v553 = vpop.f32.mrf.mxu0
    %v554 = vadd.f32 0.0, %v553
    %555 = vmatmul.f32.gmra.mxu0 %v331
    %v556 = vpop.f32.mrf.mxu0
    %v557 = vadd.f32 0.0, %v556
    %558 = vmatmul.f32.gmra.mxu0 %v334
    %v559 = vpop.f32.mrf.mxu0
    %v560 = vadd.f32 0.0, %v559
    %561 = vmatmul.f32.gmra.mxu0 %v337
    %v562 = vpop.f32.mrf.mxu0
    %v563 = vadd.f32 0.0, %v562
    %564 = vmatmul.f32.gmra.mxu0 %v340
    %v565 = vpop.f32.mrf.mxu0
    %v566 = vadd.f32 0.0, %v565
    %567 = vmatmul.f32.gmra.mxu0 %v343
    %v568 = vpop.f32.mrf.mxu0
    %v569 = vadd.f32 0.0, %v568
    %570 = vmatmul.f32.gmra.mxu0 %v346
    %v571 = vpop.f32.mrf.mxu0
    %v572 = vadd.f32 0.0, %v571
    %573 = vmatmul.f32.gmra.mxu0 %v349
    %v574 = vpop.f32.mrf.mxu0
    %v575 = vadd.f32 0.0, %v574
    %576 = vmatmul.f32.gmra.mxu0 %v352
    %v577 = vpop.f32.mrf.mxu0
    %v578 = vadd.f32 0.0, %v577
    %579 = vmatmul.f32.gmra.mxu0 %v355
    %v580 = vpop.f32.mrf.mxu0
    %v581 = vadd.f32 0.0, %v580
    %582 = vmatmul.f32.gmra.mxu0 %v358
    %v583 = vpop.f32.mrf.mxu0
    %v584 = vadd.f32 0.0, %v583
    %585 = vmatmul.f32.gmra.mxu0 %v361
    %v586 = vpop.f32.mrf.mxu0
    %v587 = vadd.f32 0.0, %v586
    %588 = vmatmul.f32.gmra.mxu0 %v364
    %v589 = vpop.f32.mrf.mxu0
    %v590 = vadd.f32 0.0, %v589
    %591 = vmatmul.f32.gmra.mxu0 %v367
    %v592 = vpop.f32.mrf.mxu0
    %v593 = vadd.f32 0.0, %v592
    %594 = vmatmul.f32.gmra.mxu0 %v370
    %v595 = vpop.f32.mrf.mxu0
    %v596 = vadd.f32 0.0, %v595
    %597 = vmatmul.f32.gmra.mxu0 %v373
    %v598 = vpop.f32.mrf.mxu0
    %v599 = vadd.f32 0.0, %v598
    %600 = vmatmul.f32.gmra.mxu0 %v376
    %v601 = vpop.f32.mrf.mxu0
    %v602 = vadd.f32 0.0, %v601
    %603 = vmatmul.f32.gmra.mxu0 %v379
    %v604 = vpop.f32.mrf.mxu0
    %v605 = vadd.f32 0.0, %v604
    %606 = vmatmul.f32.gmra.mxu0 %v382
    %v607 = vpop.f32.mrf.mxu0
    %v608 = vadd.f32 0.0, %v607
    %609 = vmatmul.f32.gmra.mxu0 %v385
    %v610 = vpop.f32.mrf.mxu0
    %v611 = vadd.f32 0.0, %v610
    %612 = vmatmul.f32.gmra.mxu0 %v388
    %v613 = vpop.f32.mrf.mxu0
    %v614 = vadd.f32 0.0, %v613
    %615 = vmatmul.f32.gmra.mxu0 %v391
    %v616 = vpop.f32.mrf.mxu0
    %v617 = vadd.f32 0.0, %v616
    %618 = vmatmul.f32.gmra.mxu0 %v394
    %v619 = vpop.f32.mrf.mxu0
    %v620 = vadd.f32 0.0, %v619
    %621 = vmatmul.f32.gmra.mxu0 %v397
    %v622 = vpop.f32.mrf.mxu0
    %v623 = vadd.f32 0.0, %v622
    %624 = vdwg.mxu0
    %v626 = vsel %vm302, %v107, 0
    %v629 = vsel %vm302, %v108, 0
    %v632 = vsel %vm302, %v109, 0
    %v635 = vsel %vm302, %v110, 0
    %v638 = vsel %vm302, %v111, 0
    %v641 = vsel %vm302, %v112, 0
    %v644 = vsel %vm302, %v113, 0
    %v647 = vsel %vm302, %v114, 0
    %v650 = vsel %vm302, %v115, 0
    %v653 = vsel %vm302, %v116, 0
    %v656 = vsel %vm302, %v117, 0
    %v659 = vsel %vm302, %v118, 0
    %v662 = vsel %vm302, %v119, 0
    %v665 = vsel %vm302, %v120, 0
    %v668 = vsel %vm302, %v121, 0
    %v671 = vsel %vm302, %v122, 0
    %v674 = vsel %vm302, %v123, 0
    %v677 = vsel %vm302, %v124, 0
    %v680 = vsel %vm302, %v125, 0
    %v683 = vsel %vm302, %v126, 0
    %v686 = vsel %vm302, %v127, 0
    %v689 = vsel %vm302, %v128, 0
    %v692 = vsel %vm302, %v129, 0
    %v695 = vsel %vm302, %v130, 0
    %v698 = vsel %vm302, %v131, 0
    %v701 = vsel %vm302, %v132, 0
    %v704 = vsel %vm302, %v133, 0
    %v707 = vsel %vm302, %v134, 0
    %v710 = vsel %vm302, %v135, 0
    %v713 = vsel %vm302, %v136, 0
    %v716 = vsel %vm302, %v137, 0
    %v719 = vsel %vm302, %v138, 0
    %721 = vmatpush.msra.mxu0 0.0
    %722 = vmatpush.msra.mxu0 0.0
    %723 = vmatpush.msra.mxu0 0.0
    %724 = vmatpush.msra.mxu0 0.0
    %725 = vmatpush.msra.mxu0 0.0
    %726 = vmatpush.msra.mxu0 0.0
    %727 = vmatpush.msra.mxu0 0.0
    %728 = vmatpush.msra.mxu0 0.0
    %729 = vmatpush.msra.mxu0 0.0
    %730 = vmatpush.msra.mxu0 0.0
    %731 = vmatpush.msra.mxu0 0.0
    %732 = vmatpush.msra.mxu0 0.0
    %733 = vmatpush.msra.mxu0 0.0
    %734 = vmatpush.msra.mxu0 0.0
    %735 = vmatpush.msra.mxu0 %v277
    %736 = vmatpush.msra.mxu0 %v274
    %737 = vmatmul.f32.gmra.mxu0 %v626
    %v738 = vpop.f32.mrf.mxu0
    %v739 = vadd.f32 %v417, %v738
    %740 = vmatmul.f32.gmra.mxu0 %v629
    %v741 = vpop.f32.mrf.mxu0
    %v742 = vadd.f32 %v420, %v741
    %743 = vmatmul.f32.gmra.mxu0 %v632
    %v744 = vpop.f32.mrf.mxu0
    %v745 = vadd.f32 %v423, %v744
    %746 = vmatmul.f32.gmra.mxu0 %v635
    %v747 = vpop.f32.mrf.mxu0
    %v748 = vadd.f32 %v426, %v747
    %749 = vmatmul.f32.gmra.mxu0 %v638
    %v750 = vpop.f32.mrf.mxu0
    %v751 = vadd.f32 %v429, %v750
    %752 = vmatmul.f32.gmra.mxu0 %v641
    %v753 = vpop.f32.mrf.mxu0
    %v754 = vadd.f32 %v432, %v753
    %755 = vmatmul.f32.gmra.mxu0 %v644
    %v756 = vpop.f32.mrf.mxu0
    %v757 = vadd.f32 %v435, %v756
    %758 = vmatmul.f32.gmra.mxu0 %v647
    %v759 = vpop.f32.mrf.mxu0
    %v760 = vadd.f32 %v438, %v759
    %761 = vmatmul.f32.gmra.mxu0 %v650
    %v762 = vpop.f32.mrf.mxu0
    %v763 = vadd.f32 %v441, %v762
    %764 = vmatmul.f32.gmra.mxu0 %v653
    %v765 = vpop.f32.mrf.mxu0
    %v766 = vadd.f32 %v444, %v765
    %767 = vmatmul.f32.gmra.mxu0 %v656
    %v768 = vpop.f32.mrf.mxu0
    %v769 = vadd.f32 %v447, %v768
    %770 = vmatmul.f32.gmra.mxu0 %v659
    %v771 = vpop.f32.mrf.mxu0
    %v772 = vadd.f32 %v450, %v771
    %773 = vmatmul.f32.gmra.mxu0 %v662
    %v774 = vpop.f32.mrf.mxu0
    %v775 = vadd.f32 %v453, %v774
    %776 = vmatmul.f32.gmra.mxu0 %v665
    %v777 = vpop.f32.mrf.mxu0
    %v778 = vadd.f32 %v456, %v777
    %779 = vmatmul.f32.gmra.mxu0 %v668
    %v780 = vpop.f32.mrf.mxu0
    %v781 = vadd.f32 %v459, %v780
    %782 = vmatmul.f32.gmra.mxu0 %v671
    %v783 = vpop.f32.mrf.mxu0
    %v784 = vadd.f32 %v462, %v783
    %785 = vmatmul.f32.gmra.mxu0 %v674
    %v786 = vpop.f32.mrf.mxu0
    %v787 = vadd.f32 %v465, %v786
    %788 = vmatmul.f32.gmra.mxu0 %v677
    %v789 = vpop.f32.mrf.mxu0
    %v790 = vadd.f32 %v468, %v789
    %791 = vmatmul.f32.gmra.mxu0 %v680
    %v792 = vpop.f32.mrf.mxu0
    %v793 = vadd.f32 %v471, %v792
    %794 = vmatmul.f32.gmra.mxu0 %v683
    %v795 = vpop.f32.mrf.mxu0
    %v796 = vadd.f32 %v474, %v795
    %797 = vmatmul.f32.gmra.mxu0 %v686
    %v798 = vpop.f32.mrf.mxu0
    %v799 = vadd.f32 %v477, %v798
    %800 = vmatmul.f32.gmra.mxu0 %v689
    %v801 = vpop.f32.mrf.mxu0
    %v802 = vadd.f32 %v480, %v801
    %803 = vmatmul.f32.gmra.mxu0 %v692
    %v804 = vpop.f32.mrf.mxu0
    %v805 = vadd.f32 %v483, %v804
    %806 = vmatmul.f32.gmra.mxu0 %v695
    %v807 = vpop.f32.mrf.mxu0
    %v808 = vadd.f32 %v486, %v807
    %809 = vmatmul.f32.gmra.mxu0 %v698
    %v810 = vpop.f32.mrf.mxu0
    %v811 = vadd.f32 %v489, %v810
    %812 = vmatmul.f32.gmra.mxu0 %v701
    %v813 = vpop.f32.mrf.mxu0
    %v814 = vadd.f32 %v492, %v813
    %815 = vmatmul.f32.gmra.mxu0 %v704
    %v816 = vpop.f32.mrf.mxu0
    %v817 = vadd.f32 %v495, %v816
    %818 = vmatmul.f32.gmra.mxu0 %v707
    %v819 = vpop.f32.mrf.mxu0
    %v820 = vadd.f32 %v498, %v819
    %821 = vmatmul.f32.gmra.mxu0 %v710
    %v822 = vpop.f32.mrf.mxu0
    %v823 = vadd.f32 %v501, %v822
    %824 = vmatmul.f32.gmra.mxu0 %v713
    %v825 = vpop.f32.mrf.mxu0
    %v826 = vadd.f32 %v504, %v825
    %827 = vmatmul.f32.gmra.mxu0 %v716
    %v828 = vpop.f32.mrf.mxu0
    %v829 = vadd.f32 %v507, %v828
    %830 = vmatmul.f32.gmra.mxu0 %v719
    %v831 = vpop.f32.mrf.mxu0
    %v832 = vadd.f32 %v510, %v831
    %833 = vdwg.mxu0
    %834 = vmatpush.msra.mxu0 0.0
    %835 = vmatpush.msra.mxu0 0.0
    %836 = vmatpush.msra.mxu0 0.0
    %837 = vmatpush.msra.mxu0 0.0
    %838 = vmatpush.msra.mxu0 0.0
    %839 = vmatpush.msra.mxu0 0.0
    %840 = vmatpush.msra.mxu0 0.0
    %841 = vmatpush.msra.mxu0 0.0
    %842 = vmatpush.msra.mxu0 0.0
    %843 = vmatpush.msra.mxu0 0.0
    %844 = vmatpush.msra.mxu0 0.0
    %845 = vmatpush.msra.mxu0 0.0
    %846 = vmatpush.msra.mxu0 0.0
    %847 = vmatpush.msra.mxu0 0.0
    %848 = vmatpush.msra.mxu0 %v300
    %849 = vmatpush.msra.mxu0 %v297
    %850 = vmatmul.f32.gmra.mxu0 %v626
    %v851 = vpop.f32.mrf.mxu0
    %v852 = vadd.f32 %v530, %v851
    %853 = vmatmul.f32.gmra.mxu0 %v629
    %v854 = vpop.f32.mrf.mxu0
    %v855 = vadd.f32 %v533, %v854
    %856 = vmatmul.f32.gmra.mxu0 %v632
    %v857 = vpop.f32.mrf.mxu0
    %v858 = vadd.f32 %v536, %v857
    %859 = vmatmul.f32.gmra.mxu0 %v635
    %v860 = vpop.f32.mrf.mxu0
    %v861 = vadd.f32 %v539, %v860
    %862 = vmatmul.f32.gmra.mxu0 %v638
    %v863 = vpop.f32.mrf.mxu0
    %v864 = vadd.f32 %v542, %v863
    %865 = vmatmul.f32.gmra.mxu0 %v641
    %v866 = vpop.f32.mrf.mxu0
    %v867 = vadd.f32 %v545, %v866
    %868 = vmatmul.f32.gmra.mxu0 %v644
    %v869 = vpop.f32.mrf.mxu0
    %v870 = vadd.f32 %v548, %v869
    %871 = vmatmul.f32.gmra.mxu0 %v647
    %v872 = vpop.f32.mrf.mxu0
    %v873 = vadd.f32 %v551, %v872
    %874 = vmatmul.f32.gmra.mxu0 %v650
    %v875 = vpop.f32.mrf.mxu0
    %v876 = vadd.f32 %v554, %v875
    %877 = vmatmul.f32.gmra.mxu0 %v653
    %v878 = vpop.f32.mrf.mxu0
    %v879 = vadd.f32 %v557, %v878
    %880 = vmatmul.f32.gmra.mxu0 %v656
    %v881 = vpop.f32.mrf.mxu0
    %v882 = vadd.f32 %v560, %v881
    %883 = vmatmul.f32.gmra.mxu0 %v659
    %v884 = vpop.f32.mrf.mxu0
    %v885 = vadd.f32 %v563, %v884
    %886 = vmatmul.f32.gmra.mxu0 %v662
    %v887 = vpop.f32.mrf.mxu0
    %v888 = vadd.f32 %v566, %v887
    %889 = vmatmul.f32.gmra.mxu0 %v665
    %v890 = vpop.f32.mrf.mxu0
    %v891 = vadd.f32 %v569, %v890
    %892 = vmatmul.f32.gmra.mxu0 %v668
    %v893 = vpop.f32.mrf.mxu0
    %v894 = vadd.f32 %v572, %v893
    %895 = vmatmul.f32.gmra.mxu0 %v671
    %v896 = vpop.f32.mrf.mxu0
    %v897 = vadd.f32 %v575, %v896
    %898 = vmatmul.f32.gmra.mxu0 %v674
    %v899 = vpop.f32.mrf.mxu0
    %v900 = vadd.f32 %v578, %v899
    %901 = vmatmul.f32.gmra.mxu0 %v677
    %v902 = vpop.f32.mrf.mxu0
    %v903 = vadd.f32 %v581, %v902
    %904 = vmatmul.f32.gmra.mxu0 %v680
    %v905 = vpop.f32.mrf.mxu0
    %v906 = vadd.f32 %v584, %v905
    %907 = vmatmul.f32.gmra.mxu0 %v683
    %v908 = vpop.f32.mrf.mxu0
    %v909 = vadd.f32 %v587, %v908
    %910 = vmatmul.f32.gmra.mxu0 %v686
    %v911 = vpop.f32.mrf.mxu0
    %v912 = vadd.f32 %v590, %v911
    %913 = vmatmul.f32.gmra.mxu0 %v689
    %v914 = vpop.f32.mrf.mxu0
    %v915 = vadd.f32 %v593, %v914
    %916 = vmatmul.f32.gmra.mxu0 %v692
    %v917 = vpop.f32.mrf.mxu0
    %v918 = vadd.f32 %v596, %v917
    %919 = vmatmul.f32.gmra.mxu0 %v695
    %v920 = vpop.f32.mrf.mxu0
    %v921 = vadd.f32 %v599, %v920
    %922 = vmatmul.f32.gmra.mxu0 %v698
    %v923 = vpop.f32.mrf.mxu0
    %v924 = vadd.f32 %v602, %v923
    %925 = vmatmul.f32.gmra.mxu0 %v701
    %v926 = vpop.f32.mrf.mxu0
    %v927 = vadd.f32 %v605, %v926
    %928 = vmatmul.f32.gmra.mxu0 %v704
    %v929 = vpop.f32.mrf.mxu0
    %v930 = vadd.f32 %v608, %v929
    %931 = vmatmul.f32.gmra.mxu0 %v707
    %v932 = vpop.f32.mrf.mxu0
    %v933 = vadd.f32 %v611, %v932
    %934 = vmatmul.f32.gmra.mxu0 %v710
    %v935 = vpop.f32.mrf.mxu0
    %v936 = vadd.f32 %v614, %v935
    %937 = vmatmul.f32.gmra.mxu0 %v713
    %v938 = vpop.f32.mrf.mxu0
    %v939 = vadd.f32 %v617, %v938
    %940 = vmatmul.f32.gmra.mxu0 %v716
    %v941 = vpop.f32.mrf.mxu0
    %v942 = vadd.f32 %v620, %v941
    %943 = vmatmul.f32.gmra.mxu0 %v719
    %v944 = vpop.f32.mrf.mxu0
    %v945 = vadd.f32 %v623, %v944
    %946 = vdwg.mxu0
    %v947 = vmul.f32 %v739, 0.2
    %v948 = vmul.f32 %v852, 0.2
    %v949 = vmul.f32 %v742, 0.2
    %v950 = vmul.f32 %v855, 0.2
    %v951 = vmul.f32 %v745, 0.2
    %v952 = vmul.f32 %v858, 0.2
    %v953 = vmul.f32 %v748, 0.2
    %v954 = vmul.f32 %v861, 0.2
    %v955 = vmul.f32 %v751, 0.2
    %v956 = vmul.f32 %v864, 0.2
    %v957 = vmul.f32 %v754, 0.2
    %v958 = vmul.f32 %v867, 0.2
    %v959 = vmul.f32 %v757, 0.2
    %v960 = vmul.f32 %v870, 0.2
    %v961 = vmul.f32 %v760, 0.2
    %v962 = vmul.f32 %v873, 0.2
    %v963 = vmul.f32 %v763, 0.2
    %v964 = vmul.f32 %v876, 0.2
    %v965 = vmul.f32 %v766, 0.2
    %v966 = vmul.f32 %v879, 0.2
    %v967 = vmul.f32 %v769, 0.2
    %v968 = vmul.f32 %v882, 0.2
    %v969 = vmul.f32 %v772, 0.2
    %v970 = vmul.f32 %v885, 0.2
    %v971 = vmul.f32 %v775, 0.2
    %v972 = vmul.f32 %v888, 0.2
    %v973 = vmul.f32 %v778, 0.2
    %v974 = vmul.f32 %v891, 0.2
    %v975 = vmul.f32 %v781, 0.2
    %v976 = vmul.f32 %v894, 0.2
    %v977 = vmul.f32 %v784, 0.2
    %v978 = vmul.f32 %v897, 0.2
    %v979 = vmul.f32 %v787, 0.2
    %v980 = vmul.f32 %v900, 0.2
    %v981 = vmul.f32 %v790, 0.2
    %v982 = vmul.f32 %v903, 0.2
    %v983 = vmul.f32 %v793, 0.2
    %v984 = vmul.f32 %v906, 0.2
    %v985 = vmul.f32 %v796, 0.2
    %v986 = vmul.f32 %v909, 0.2
    %v987 = vmul.f32 %v799, 0.2
    %v988 = vmul.f32 %v912, 0.2
    %v989 = vmul.f32 %v802, 0.2
    %v990 = vmul.f32 %v915, 0.2
    %v991 = vmul.f32 %v805, 0.2
    %v992 = vmul.f32 %v918, 0.2
    %v993 = vmul.f32 %v808, 0.2
    %v994 = vmul.f32 %v921, 0.2
    %v995 = vmul.f32 %v811, 0.2
    %v996 = vmul.f32 %v924, 0.2
    %v997 = vmul.f32 %v814, 0.2
    %v998 = vmul.f32 %v927, 0.2
    %v999 = vmul.f32 %v817, 0.2
    %v1000 = vmul.f32 %v930, 0.2
    %v1001 = vmul.f32 %v820, 0.2
    %v1002 = vmul.f32 %v933, 0.2
    %v1003 = vmul.f32 %v823, 0.2
    %v1004 = vmul.f32 %v936, 0.2
    %v1005 = vmul.f32 %v826, 0.2
    %v1006 = vmul.f32 %v939, 0.2
    %v1007 = vmul.f32 %v829, 0.2
    %v1008 = vmul.f32 %v942, 0.2
    %v1009 = vmul.f32 %v832, 0.2
    %v1010 = vmul.f32 %v945, 0.2
    %v1011 = vmax.f32 %v739, %v947
    %v1012 = vmax.f32 %v852, %v948
    %v1013 = vmax.f32 %v742, %v949
    %v1014 = vmax.f32 %v855, %v950
    %v1015 = vmax.f32 %v745, %v951
    %v1016 = vmax.f32 %v858, %v952
    %v1017 = vmax.f32 %v748, %v953
    %v1018 = vmax.f32 %v861, %v954
    %v1019 = vmax.f32 %v751, %v955
    %v1020 = vmax.f32 %v864, %v956
    %v1021 = vmax.f32 %v754, %v957
    %v1022 = vmax.f32 %v867, %v958
    %v1023 = vmax.f32 %v757, %v959
    %v1024 = vmax.f32 %v870, %v960
    %v1025 = vmax.f32 %v760, %v961
    %v1026 = vmax.f32 %v873, %v962
    %v1027 = vmax.f32 %v763, %v963
    %v1028 = vmax.f32 %v876, %v964
    %v1029 = vmax.f32 %v766, %v965
    %v1030 = vmax.f32 %v879, %v966
    %v1031 = vmax.f32 %v769, %v967
    %v1032 = vmax.f32 %v882, %v968
    %v1033 = vmax.f32 %v772, %v969
    %v1034 = vmax.f32 %v885, %v970
    %v1035 = vmax.f32 %v775, %v971
    %v1036 = vmax.f32 %v888, %v972
    %v1037 = vmax.f32 %v778, %v973
    %v1038 = vmax.f32 %v891, %v974
    %v1039 = vmax.f32 %v781, %v975
    %v1040 = vmax.f32 %v894, %v976
    %v1041 = vmax.f32 %v784, %v977
    %v1042 = vmax.f32 %v897, %v978
    %v1043 = vmax.f32 %v787, %v979
    %v1044 = vmax.f32 %v900, %v980
    %v1045 = vmax.f32 %v790, %v981
    %v1046 = vmax.f32 %v903, %v982
    %v1047 = vmax.f32 %v793, %v983
    %v1048 = vmax.f32 %v906, %v984
    %v1049 = vmax.f32 %v796, %v985
    %v1050 = vmax.f32 %v909, %v986
    %v1051 = vmax.f32 %v799, %v987
    %v1052 = vmax.f32 %v912, %v988
    %v1053 = vmax.f32 %v802, %v989
    %v1054 = vmax.f32 %v915, %v990
    %v1055 = vmax.f32 %v805, %v991
    %v1056 = vmax.f32 %v918, %v992
    %v1057 = vmax.f32 %v808, %v993
    %v1058 = vmax.f32 %v921, %v994
    %v1059 = vmax.f32 %v811, %v995
    %v1060 = vmax.f32 %v924, %v996
    %v1061 = vmax.f32 %v814, %v997
    %v1062 = vmax.f32 %v927, %v998
    %v1063 = vmax.f32 %v817, %v999
    %v1064 = vmax.f32 %v930, %v1000
    %v1065 = vmax.f32 %v820, %v1001
    %v1066 = vmax.f32 %v933, %v1002
    %v1067 = vmax.f32 %v823, %v1003
    %v1068 = vmax.f32 %v936, %v1004
    %v1069 = vmax.f32 %v826, %v1005
    %v1070 = vmax.f32 %v939, %v1006
    %v1071 = vmax.f32 %v829, %v1007
    %v1072 = vmax.f32 %v942, %v1008
    %v1073 = vmax.f32 %v832, %v1009
    %v1074 = vmax.f32 %v945, %v1010
    %v1075 = vld [vmem:[%s7] sm:$0xff]
    %v1076 = vld [vmem:[%s7 + $0x8] sm:$0xff]
    %v1077 = vld [vmem:[%s7 + $0x10] sm:$0xff]
    %v1078 = vld [vmem:[%s7 + $0x18] sm:$0xff]
    %v1079 = vld [vmem:[%s7 + $0x20] sm:$0xff]
    %v1080 = vld [vmem:[%s7 + $0x28] sm:$0xff]
    %v1081 = vld [vmem:[%s7 + $0x30] sm:$0xff]
    %v1082 = vld [vmem:[%s7 + $0x38] sm:$0xff]
    %v1083 = vld [vmem:[%s7 + $0x40] sm:$0xff]
    %v1084 = vld [vmem:[%s7 + $0x48] sm:$0xff]
    %v1085 = vld [vmem:[%s7 + $0x50] sm:$0xff]
    %v1086 = vld [vmem:[%s7 + $0x58] sm:$0xff]
    %v1087 = vld [vmem:[%s7 + $0x60] sm:$0xff]
    %v1088 = vld [vmem:[%s7 + $0x68] sm:$0xff]
    %v1089 = vld [vmem:[%s7 + $0x70] sm:$0xff]
    %v1090 = vld [vmem:[%s7 + $0x78] sm:$0xff]
    %v1091 = vld [vmem:[%s7 + $0x80] sm:$0xff]
    %v1092 = vld [vmem:[%s7 + $0x88] sm:$0xff]
    %v1093 = vld [vmem:[%s7 + $0x90] sm:$0xff]
    %v1094 = vld [vmem:[%s7 + $0x98] sm:$0xff]
    %v1095 = vld [vmem:[%s7 + $0xa0] sm:$0xff]
    %v1096 = vld [vmem:[%s7 + $0xa8] sm:$0xff]
    %v1097 = vld [vmem:[%s7 + $0xb0] sm:$0xff]
    %v1098 = vld [vmem:[%s7 + $0xb8] sm:$0xff]
    %v1099 = vld [vmem:[%s7 + $0xc0] sm:$0xff]
    %v1100 = vld [vmem:[%s7 + $0xc8] sm:$0xff]
    %v1101 = vld [vmem:[%s7 + $0xd0] sm:$0xff]
    %v1102 = vld [vmem:[%s7 + $0xd8] sm:$0xff]
    %v1103 = vld [vmem:[%s7 + $0xe0] sm:$0xff]
    %v1104 = vld [vmem:[%s7 + $0xe8] sm:$0xff]
    %v1105 = vld [vmem:[%s7 + $0xf0] sm:$0xff]
    %v1106 = vld [vmem:[%s7 + $0xf8] sm:$0xff]
    %1108 = vset.pattern.permute.xlu0 0
    %1109 = vperm.xlu0 %1108, %v75
    %v1110 = vpop.permute.xlu0 %1109
    %1113 = vset.pattern.permute.xlu0 0
    %1114 = vperm.xlu0 %1113, %v76
    %v1115 = vpop.permute.xlu0 %1114
    %1118 = vset.pattern.permute.xlu0 0
    %1119 = vperm.xlu0 %1118, %v77
    %v1120 = vpop.permute.xlu0 %1119
    %1123 = vset.pattern.permute.xlu0 0
    %1124 = vperm.xlu0 %1123, %v78
    %v1125 = vpop.permute.xlu0 %1124
    %1128 = vset.pattern.permute.xlu0 0
    %1129 = vperm.xlu0 %1128, %v79
    %v1130 = vpop.permute.xlu0 %1129
    %1133 = vset.pattern.permute.xlu0 0
    %1134 = vperm.xlu0 %1133, %v80
    %v1135 = vpop.permute.xlu0 %1134
    %1138 = vset.pattern.permute.xlu0 0
    %1139 = vperm.xlu0 %1138, %v81
    %v1140 = vpop.permute.xlu0 %1139
    %1143 = vset.pattern.permute.xlu0 0
    %1144 = vperm.xlu0 %1143, %v82
    %v1145 = vpop.permute.xlu0 %1144
    %1148 = vset.pattern.permute.xlu0 0
    %1149 = vperm.xlu0 %1148, %v83
    %v1150 = vpop.permute.xlu0 %1149
    %1153 = vset.pattern.permute.xlu0 0
    %1154 = vperm.xlu0 %1153, %v84
    %v1155 = vpop.permute.xlu0 %1154
    %1158 = vset.pattern.permute.xlu0 0
    %1159 = vperm.xlu0 %1158, %v85
    %v1160 = vpop.permute.xlu0 %1159
    %1163 = vset.pattern.permute.xlu0 0
    %1164 = vperm.xlu0 %1163, %v86
    %v1165 = vpop.permute.xlu0 %1164
    %1168 = vset.pattern.permute.xlu0 0
    %1169 = vperm.xlu0 %1168, %v87
    %v1170 = vpop.permute.xlu0 %1169
    %1173 = vset.pattern.permute.xlu0 0
    %1174 = vperm.xlu0 %1173, %v88
    %v1175 = vpop.permute.xlu0 %1174
    %1178 = vset.pattern.permute.xlu0 0
    %1179 = vperm.xlu0 %1178, %v89
    %v1180 = vpop.permute.xlu0 %1179
    %1183 = vset.pattern.permute.xlu0 0
    %1184 = vperm.xlu0 %1183, %v90
    %v1185 = vpop.permute.xlu0 %1184
    %1188 = vset.pattern.permute.xlu0 0
    %1189 = vperm.xlu0 %1188, %v91
    %v1190 = vpop.permute.xlu0 %1189
    %1193 = vset.pattern.permute.xlu0 0
    %1194 = vperm.xlu0 %1193, %v92
    %v1195 = vpop.permute.xlu0 %1194
    %1198 = vset.pattern.permute.xlu0 0
    %1199 = vperm.xlu0 %1198, %v93
    %v1200 = vpop.permute.xlu0 %1199
    %1203 = vset.pattern.permute.xlu0 0
    %1204 = vperm.xlu0 %1203, %v94
    %v1205 = vpop.permute.xlu0 %1204
    %1208 = vset.pattern.permute.xlu0 0
    %1209 = vperm.xlu0 %1208, %v95
    %v1210 = vpop.permute.xlu0 %1209
    %1213 = vset.pattern.permute.xlu0 0
    %1214 = vperm.xlu0 %1213, %v96
    %v1215 = vpop.permute.xlu0 %1214
    %1218 = vset.pattern.permute.xlu0 0
    %1219 = vperm.xlu0 %1218, %v97
    %v1220 = vpop.permute.xlu0 %1219
    %1223 = vset.pattern.permute.xlu0 0
    %1224 = vperm.xlu0 %1223, %v98
    %v1225 = vpop.permute.xlu0 %1224
    %1228 = vset.pattern.permute.xlu0 0
    %1229 = vperm.xlu0 %1228, %v99
    %v1230 = vpop.permute.xlu0 %1229
    %1233 = vset.pattern.permute.xlu0 0
    %1234 = vperm.xlu0 %1233, %v100
    %v1235 = vpop.permute.xlu0 %1234
    %1238 = vset.pattern.permute.xlu0 0
    %1239 = vperm.xlu0 %1238, %v101
    %v1240 = vpop.permute.xlu0 %1239
    %1243 = vset.pattern.permute.xlu0 0
    %1244 = vperm.xlu0 %1243, %v102
    %v1245 = vpop.permute.xlu0 %1244
    %1248 = vset.pattern.permute.xlu0 0
    %1249 = vperm.xlu0 %1248, %v103
    %v1250 = vpop.permute.xlu0 %1249
    %1253 = vset.pattern.permute.xlu0 0
    %1254 = vperm.xlu0 %1253, %v104
    %v1255 = vpop.permute.xlu0 %1254
    %1258 = vset.pattern.permute.xlu0 0
    %1259 = vperm.xlu0 %1258, %v105
    %v1260 = vpop.permute.xlu0 %1259
    %1263 = vset.pattern.permute.xlu0 0
    %1264 = vperm.xlu0 %1263, %v106
    %v1265 = vpop.permute.xlu0 %1264
    %1267 = vmatpush.msra.mxu0 %v1090
    %1268 = vmatpush.msra.mxu0 %v1089
    %1269 = vmatpush.msra.mxu0 %v1088
    %1270 = vmatpush.msra.mxu0 %v1087
    %1271 = vmatpush.msra.mxu0 %v1086
    %1272 = vmatpush.msra.mxu0 %v1085
    %1273 = vmatpush.msra.mxu0 %v1084
    %1274 = vmatpush.msra.mxu0 %v1083
    %1275 = vmatpush.msra.mxu0 %v1082
    %1276 = vmatpush.msra.mxu0 %v1081
    %1277 = vmatpush.msra.mxu0 %v1080
    %1278 = vmatpush.msra.mxu0 %v1079
    %1279 = vmatpush.msra.mxu0 %v1078
    %1280 = vmatpush.msra.mxu0 %v1077
    %1281 = vmatpush.msra.mxu0 %v1076
    %1282 = vmatpush.msra.mxu0 %v1075
    %1283 = vmatmul.f32.gmra.mxu0 %v1011
    %v1284 = vpop.f32.mrf.mxu0
    %v1285 = vadd.f32 %v1110, %v1284
    %1286 = vmatmul.f32.gmra.mxu0 %v1013
    %v1287 = vpop.f32.mrf.mxu0
    %v1288 = vadd.f32 %v1115, %v1287
    %1289 = vmatmul.f32.gmra.mxu0 %v1015
    %v1290 = vpop.f32.mrf.mxu0
    %v1291 = vadd.f32 %v1120, %v1290
    %1292 = vmatmul.f32.gmra.mxu0 %v1017
    %v1293 = vpop.f32.mrf.mxu0
    %v1294 = vadd.f32 %v1125, %v1293
    %1295 = vmatmul.f32.gmra.mxu0 %v1019
    %v1296 = vpop.f32.mrf.mxu0
    %v1297 = vadd.f32 %v1130, %v1296
    %1298 = vmatmul.f32.gmra.mxu0 %v1021
    %v1299 = vpop.f32.mrf.mxu0
    %v1300 = vadd.f32 %v1135, %v1299
    %1301 = vmatmul.f32.gmra.mxu0 %v1023
    %v1302 = vpop.f32.mrf.mxu0
    %v1303 = vadd.f32 %v1140, %v1302
    %1304 = vmatmul.f32.gmra.mxu0 %v1025
    %v1305 = vpop.f32.mrf.mxu0
    %v1306 = vadd.f32 %v1145, %v1305
    %1307 = vmatmul.f32.gmra.mxu0 %v1027
    %v1308 = vpop.f32.mrf.mxu0
    %v1309 = vadd.f32 %v1150, %v1308
    %1310 = vmatmul.f32.gmra.mxu0 %v1029
    %v1311 = vpop.f32.mrf.mxu0
    %v1312 = vadd.f32 %v1155, %v1311
    %1313 = vmatmul.f32.gmra.mxu0 %v1031
    %v1314 = vpop.f32.mrf.mxu0
    %v1315 = vadd.f32 %v1160, %v1314
    %1316 = vmatmul.f32.gmra.mxu0 %v1033
    %v1317 = vpop.f32.mrf.mxu0
    %v1318 = vadd.f32 %v1165, %v1317
    %1319 = vmatmul.f32.gmra.mxu0 %v1035
    %v1320 = vpop.f32.mrf.mxu0
    %v1321 = vadd.f32 %v1170, %v1320
    %1322 = vmatmul.f32.gmra.mxu0 %v1037
    %v1323 = vpop.f32.mrf.mxu0
    %v1324 = vadd.f32 %v1175, %v1323
    %1325 = vmatmul.f32.gmra.mxu0 %v1039
    %v1326 = vpop.f32.mrf.mxu0
    %v1327 = vadd.f32 %v1180, %v1326
    %1328 = vmatmul.f32.gmra.mxu0 %v1041
    %v1329 = vpop.f32.mrf.mxu0
    %v1330 = vadd.f32 %v1185, %v1329
    %1331 = vmatmul.f32.gmra.mxu0 %v1043
    %v1332 = vpop.f32.mrf.mxu0
    %v1333 = vadd.f32 %v1190, %v1332
    %1334 = vmatmul.f32.gmra.mxu0 %v1045
    %v1335 = vpop.f32.mrf.mxu0
    %v1336 = vadd.f32 %v1195, %v1335
    %1337 = vmatmul.f32.gmra.mxu0 %v1047
    %v1338 = vpop.f32.mrf.mxu0
    %v1339 = vadd.f32 %v1200, %v1338
    %1340 = vmatmul.f32.gmra.mxu0 %v1049
    %v1341 = vpop.f32.mrf.mxu0
    %v1342 = vadd.f32 %v1205, %v1341
    %1343 = vmatmul.f32.gmra.mxu0 %v1051
    %v1344 = vpop.f32.mrf.mxu0
    %v1345 = vadd.f32 %v1210, %v1344
    %1346 = vmatmul.f32.gmra.mxu0 %v1053
    %v1347 = vpop.f32.mrf.mxu0
    %v1348 = vadd.f32 %v1215, %v1347
    %1349 = vmatmul.f32.gmra.mxu0 %v1055
    %v1350 = vpop.f32.mrf.mxu0
    %v1351 = vadd.f32 %v1220, %v1350
    %1352 = vmatmul.f32.gmra.mxu0 %v1057
    %v1353 = vpop.f32.mrf.mxu0
    %v1354 = vadd.f32 %v1225, %v1353
    %1355 = vmatmul.f32.gmra.mxu0 %v1059
    %v1356 = vpop.f32.mrf.mxu0
    %v1357 = vadd.f32 %v1230, %v1356
    %1358 = vmatmul.f32.gmra.mxu0 %v1061
    %v1359 = vpop.f32.mrf.mxu0
    %v1360 = vadd.f32 %v1235, %v1359
    %1361 = vmatmul.f32.gmra.mxu0 %v1063
    %v1362 = vpop.f32.mrf.mxu0
    %v1363 = vadd.f32 %v1240, %v1362
    %1364 = vmatmul.f32.gmra.mxu0 %v1065
    %v1365 = vpop.f32.mrf.mxu0
    %v1366 = vadd.f32 %v1245, %v1365
    %1367 = vmatmul.f32.gmra.mxu0 %v1067
    %v1368 = vpop.f32.mrf.mxu0
    %v1369 = vadd.f32 %v1250, %v1368
    %1370 = vmatmul.f32.gmra.mxu0 %v1069
    %v1371 = vpop.f32.mrf.mxu0
    %v1372 = vadd.f32 %v1255, %v1371
    %1373 = vmatmul.f32.gmra.mxu0 %v1071
    %v1374 = vpop.f32.mrf.mxu0
    %v1375 = vadd.f32 %v1260, %v1374
    %1376 = vmatmul.f32.gmra.mxu0 %v1073
    %v1377 = vpop.f32.mrf.mxu0
    %v1378 = vadd.f32 %v1265, %v1377
    %1379 = vdwg.mxu0
    %1380 = vmatpush.msra.mxu0 %v1106
    %1381 = vmatpush.msra.mxu0 %v1105
    %1382 = vmatpush.msra.mxu0 %v1104
    %1383 = vmatpush.msra.mxu0 %v1103
    %1384 = vmatpush.msra.mxu0 %v1102
    %1385 = vmatpush.msra.mxu0 %v1101
    %1386 = vmatpush.msra.mxu0 %v1100
    %1387 = vmatpush.msra.mxu0 %v1099
    %1388 = vmatpush.msra.mxu0 %v1098
    %1389 = vmatpush.msra.mxu0 %v1097
    %1390 = vmatpush.msra.mxu0 %v1096
    %1391 = vmatpush.msra.mxu0 %v1095
    %1392 = vmatpush.msra.mxu0 %v1094
    %1393 = vmatpush.msra.mxu0 %v1093
    %1394 = vmatpush.msra.mxu0 %v1092
    %1395 = vmatpush.msra.mxu0 %v1091
    %1396 = vmatmul.f32.gmra.mxu0 %v1012
    %v1397 = vpop.f32.mrf.mxu0
    %v1398 = vadd.f32 %v1285, %v1397
    %1399 = vmatmul.f32.gmra.mxu0 %v1014
    %v1400 = vpop.f32.mrf.mxu0
    %v1401 = vadd.f32 %v1288, %v1400
    %1402 = vmatmul.f32.gmra.mxu0 %v1016
    %v1403 = vpop.f32.mrf.mxu0
    %v1404 = vadd.f32 %v1291, %v1403
    %1405 = vmatmul.f32.gmra.mxu0 %v1018
    %v1406 = vpop.f32.mrf.mxu0
    %v1407 = vadd.f32 %v1294, %v1406
    %1408 = vmatmul.f32.gmra.mxu0 %v1020
    %v1409 = vpop.f32.mrf.mxu0
    %v1410 = vadd.f32 %v1297, %v1409
    %1411 = vmatmul.f32.gmra.mxu0 %v1022
    %v1412 = vpop.f32.mrf.mxu0
    %v1413 = vadd.f32 %v1300, %v1412
    %1414 = vmatmul.f32.gmra.mxu0 %v1024
    %v1415 = vpop.f32.mrf.mxu0
    %v1416 = vadd.f32 %v1303, %v1415
    %1417 = vmatmul.f32.gmra.mxu0 %v1026
    %v1418 = vpop.f32.mrf.mxu0
    %v1419 = vadd.f32 %v1306, %v1418
    %1420 = vmatmul.f32.gmra.mxu0 %v1028
    %v1421 = vpop.f32.mrf.mxu0
    %v1422 = vadd.f32 %v1309, %v1421
    %1423 = vmatmul.f32.gmra.mxu0 %v1030
    %v1424 = vpop.f32.mrf.mxu0
    %v1425 = vadd.f32 %v1312, %v1424
    %1426 = vmatmul.f32.gmra.mxu0 %v1032
    %v1427 = vpop.f32.mrf.mxu0
    %v1428 = vadd.f32 %v1315, %v1427
    %1429 = vmatmul.f32.gmra.mxu0 %v1034
    %v1430 = vpop.f32.mrf.mxu0
    %v1431 = vadd.f32 %v1318, %v1430
    %1432 = vmatmul.f32.gmra.mxu0 %v1036
    %v1433 = vpop.f32.mrf.mxu0
    %v1434 = vadd.f32 %v1321, %v1433
    %1435 = vmatmul.f32.gmra.mxu0 %v1038
    %v1436 = vpop.f32.mrf.mxu0
    %v1437 = vadd.f32 %v1324, %v1436
    %1438 = vmatmul.f32.gmra.mxu0 %v1040
    %v1439 = vpop.f32.mrf.mxu0
    %v1440 = vadd.f32 %v1327, %v1439
    %1441 = vmatmul.f32.gmra.mxu0 %v1042
    %v1442 = vpop.f32.mrf.mxu0
    %v1443 = vadd.f32 %v1330, %v1442
    %1444 = vmatmul.f32.gmra.mxu0 %v1044
    %v1445 = vpop.f32.mrf.mxu0
    %v1446 = vadd.f32 %v1333, %v1445
    %1447 = vmatmul.f32.gmra.mxu0 %v1046
    %v1448 = vpop.f32.mrf.mxu0
    %v1449 = vadd.f32 %v1336, %v1448
    %1450 = vmatmul.f32.gmra.mxu0 %v1048
    %v1451 = vpop.f32.mrf.mxu0
    %v1452 = vadd.f32 %v1339, %v1451
    %1453 = vmatmul.f32.gmra.mxu0 %v1050
    %v1454 = vpop.f32.mrf.mxu0
    %v1455 = vadd.f32 %v1342, %v1454
    %1456 = vmatmul.f32.gmra.mxu0 %v1052
    %v1457 = vpop.f32.mrf.mxu0
    %v1458 = vadd.f32 %v1345, %v1457
    %1459 = vmatmul.f32.gmra.mxu0 %v1054
    %v1460 = vpop.f32.mrf.mxu0
    %v1461 = vadd.f32 %v1348, %v1460
    %1462 = vmatmul.f32.gmra.mxu0 %v1056
    %v1463 = vpop.f32.mrf.mxu0
    %v1464 = vadd.f32 %v1351, %v1463
    %1465 = vmatmul.f32.gmra.mxu0 %v1058
    %v1466 = vpop.f32.mrf.mxu0
    %v1467 = vadd.f32 %v1354, %v1466
    %1468 = vmatmul.f32.gmra.mxu0 %v1060
    %v1469 = vpop.f32.mrf.mxu0
    %v1470 = vadd.f32 %v1357, %v1469
    %1471 = vmatmul.f32.gmra.mxu0 %v1062
    %v1472 = vpop.f32.mrf.mxu0
    %v1473 = vadd.f32 %v1360, %v1472
    %1474 = vmatmul.f32.gmra.mxu0 %v1064
    %v1475 = vpop.f32.mrf.mxu0
    %v1476 = vadd.f32 %v1363, %v1475
    %1477 = vmatmul.f32.gmra.mxu0 %v1066
    %v1478 = vpop.f32.mrf.mxu0
    %v1479 = vadd.f32 %v1366, %v1478
    %1480 = vmatmul.f32.gmra.mxu0 %v1068
    %v1481 = vpop.f32.mrf.mxu0
    %v1482 = vadd.f32 %v1369, %v1481
    %1483 = vmatmul.f32.gmra.mxu0 %v1070
    %v1484 = vpop.f32.mrf.mxu0
    %v1485 = vadd.f32 %v1372, %v1484
    %1486 = vmatmul.f32.gmra.mxu0 %v1072
    %v1487 = vpop.f32.mrf.mxu0
    %v1488 = vadd.f32 %v1375, %v1487
    %1489 = vmatmul.f32.gmra.mxu0 %v1074
    %v1490 = vpop.f32.mrf.mxu0
    %v1491 = vadd.f32 %v1378, %v1490
    %1492 = vdwg.mxu0
    %vm1493 = vcmask 64512
    %v1494 = vsel %vm1493, %v1398, -inf
    %v1495 = vsel %vm1493, %v1401, -inf
    %v1496 = vmax.f32 %v1494, %v1495
    %v1497 = vrot.slane %v1496, 4
    %v1498 = vmax.f32 %v1496, %v1497
    %v1499 = vrot.slane %v1498, 2
    %v1500 = vmax.f32 %v1498, %v1499
    %v1501 = vrot.slane %v1500, 1
    %v1502 = vmax.f32 %v1500, %v1501
    %v1503 = vsel %vm1493, %v1404, -inf
    %v1504 = vsel %vm1493, %v1407, -inf
    %v1505 = vmax.f32 %v1503, %v1504
    %v1506 = vrot.slane %v1505, 4
    %v1507 = vmax.f32 %v1505, %v1506
    %v1508 = vrot.slane %v1507, 2
    %v1509 = vmax.f32 %v1507, %v1508
    %v1510 = vrot.slane %v1509, 1
    %v1511 = vmax.f32 %v1509, %v1510
    %v1512 = vsel %vm1493, %v1410, -inf
    %v1513 = vsel %vm1493, %v1413, -inf
    %v1514 = vmax.f32 %v1512, %v1513
    %v1515 = vrot.slane %v1514, 4
    %v1516 = vmax.f32 %v1514, %v1515
    %v1517 = vrot.slane %v1516, 2
    %v1518 = vmax.f32 %v1516, %v1517
    %v1519 = vrot.slane %v1518, 1
    %v1520 = vmax.f32 %v1518, %v1519
    %v1521 = vsel %vm1493, %v1416, -inf
    %v1522 = vsel %vm1493, %v1419, -inf
    %v1523 = vmax.f32 %v1521, %v1522
    %v1524 = vrot.slane %v1523, 4
    %v1525 = vmax.f32 %v1523, %v1524
    %v1526 = vrot.slane %v1525, 2
    %v1527 = vmax.f32 %v1525, %v1526
    %v1528 = vrot.slane %v1527, 1
    %v1529 = vmax.f32 %v1527, %v1528
    %v1530 = vsel %vm1493, %v1422, -inf
    %v1531 = vsel %vm1493, %v1425, -inf
    %v1532 = vmax.f32 %v1530, %v1531
    %v1533 = vrot.slane %v1532, 4
    %v1534 = vmax.f32 %v1532, %v1533
    %v1535 = vrot.slane %v1534, 2
    %v1536 = vmax.f32 %v1534, %v1535
    %v1537 = vrot.slane %v1536, 1
    %v1538 = vmax.f32 %v1536, %v1537
    %v1539 = vsel %vm1493, %v1428, -inf
    %v1540 = vsel %vm1493, %v1431, -inf
    %v1541 = vmax.f32 %v1539, %v1540
    %v1542 = vrot.slane %v1541, 4
    %v1543 = vmax.f32 %v1541, %v1542
    %v1544 = vrot.slane %v1543, 2
    %v1545 = vmax.f32 %v1543, %v1544
    %v1546 = vrot.slane %v1545, 1
    %v1547 = vmax.f32 %v1545, %v1546
    %v1548 = vsel %vm1493, %v1434, -inf
    %v1549 = vsel %vm1493, %v1437, -inf
    %v1550 = vmax.f32 %v1548, %v1549
    %v1551 = vrot.slane %v1550, 4
    %v1552 = vmax.f32 %v1550, %v1551
    %v1553 = vrot.slane %v1552, 2
    %v1554 = vmax.f32 %v1552, %v1553
    %v1555 = vrot.slane %v1554, 1
    %v1556 = vmax.f32 %v1554, %v1555
    %v1557 = vsel %vm1493, %v1440, -inf
    %v1558 = vsel %vm1493, %v1443, -inf
    %v1559 = vmax.f32 %v1557, %v1558
    %v1560 = vrot.slane %v1559, 4
    %v1561 = vmax.f32 %v1559, %v1560
    %v1562 = vrot.slane %v1561, 2
    %v1563 = vmax.f32 %v1561, %v1562
    %v1564 = vrot.slane %v1563, 1
    %v1565 = vmax.f32 %v1563, %v1564
    %v1566 = vsel %vm1493, %v1446, -inf
    %v1567 = vsel %vm1493, %v1449, -inf
    %v1568 = vmax.f32 %v1566, %v1567
    %v1569 = vrot.slane %v1568, 4
    %v1570 = vmax.f32 %v1568, %v1569
    %v1571 = vrot.slane %v1570, 2
    %v1572 = vmax.f32 %v1570, %v1571
    %v1573 = vrot.slane %v1572, 1
    %v1574 = vmax.f32 %v1572, %v1573
    %v1575 = vsel %vm1493, %v1452, -inf
    %v1576 = vsel %vm1493, %v1455, -inf
    %v1577 = vmax.f32 %v1575, %v1576
    %v1578 = vrot.slane %v1577, 4
    %v1579 = vmax.f32 %v1577, %v1578
    %v1580 = vrot.slane %v1579, 2
    %v1581 = vmax.f32 %v1579, %v1580
    %v1582 = vrot.slane %v1581, 1
    %v1583 = vmax.f32 %v1581, %v1582
    %v1584 = vsel %vm1493, %v1458, -inf
    %v1585 = vsel %vm1493, %v1461, -inf
    %v1586 = vmax.f32 %v1584, %v1585
    %v1587 = vrot.slane %v1586, 4
    %v1588 = vmax.f32 %v1586, %v1587
    %v1589 = vrot.slane %v1588, 2
    %v1590 = vmax.f32 %v1588, %v1589
    %v1591 = vrot.slane %v1590, 1
    %v1592 = vmax.f32 %v1590, %v1591
    %v1593 = vsel %vm1493, %v1464, -inf
    %v1594 = vsel %vm1493, %v1467, -inf
    %v1595 = vmax.f32 %v1593, %v1594
    %v1596 = vrot.slane %v1595, 4
    %v1597 = vmax.f32 %v1595, %v1596
    %v1598 = vrot.slane %v1597, 2
    %v1599 = vmax.f32 %v1597, %v1598
    %v1600 = vrot.slane %v1599, 1
    %v1601 = vmax.f32 %v1599, %v1600
    %v1602 = vsel %vm1493, %v1470, -inf
    %v1603 = vsel %vm1493, %v1473, -inf
    %v1604 = vmax.f32 %v1602, %v1603
    %v1605 = vrot.slane %v1604, 4
    %v1606 = vmax.f32 %v1604, %v1605
    %v1607 = vrot.slane %v1606, 2
    %v1608 = vmax.f32 %v1606, %v1607
    %v1609 = vrot.slane %v1608, 1
    %v1610 = vmax.f32 %v1608, %v1609
    %v1611 = vsel %vm1493, %v1476, -inf
    %v1612 = vsel %vm1493, %v1479, -inf
    %v1613 = vmax.f32 %v1611, %v1612
    %v1614 = vrot.slane %v1613, 4
    %v1615 = vmax.f32 %v1613, %v1614
    %v1616 = vrot.slane %v1615, 2
    %v1617 = vmax.f32 %v1615, %v1616
    %v1618 = vrot.slane %v1617, 1
    %v1619 = vmax.f32 %v1617, %v1618
    %v1620 = vsel %vm1493, %v1482, -inf
    %v1621 = vsel %vm1493, %v1485, -inf
    %v1622 = vmax.f32 %v1620, %v1621
    %v1623 = vrot.slane %v1622, 4
    %v1624 = vmax.f32 %v1622, %v1623
    %v1625 = vrot.slane %v1624, 2
    %v1626 = vmax.f32 %v1624, %v1625
    %v1627 = vrot.slane %v1626, 1
    %v1628 = vmax.f32 %v1626, %v1627
    %v1629 = vsel %vm1493, %v1488, -inf
    %v1630 = vsel %vm1493, %v1491, -inf
    %v1631 = vmax.f32 %v1629, %v1630
    %v1632 = vrot.slane %v1631, 4
    %v1633 = vmax.f32 %v1631, %v1632
    %v1634 = vrot.slane %v1633, 2
    %v1635 = vmax.f32 %v1633, %v1634
    %v1636 = vrot.slane %v1635, 1
    %v1637 = vmax.f32 %v1635, %v1636
    %vm1654 = vcmask 1041409
    %v1655 = vsel %vm1654, %v1511, %v1502
    %vm1656 = vcmask 1042434
    %v1657 = vsel %vm1656, %v1520, %v1655
    %vm1658 = vcmask 1043459
    %v1659 = vsel %vm1658, %v1529, %v1657
    %vm1660 = vcmask 1044484
    %v1661 = vsel %vm1660, %v1538, %v1659
    %vm1662 = vcmask 1045509
    %v1663 = vsel %vm1662, %v1547, %v1661
    %vm1664 = vcmask 1046534
    %v1665 = vsel %vm1664, %v1556, %v1663
    %vm1666 = vcmask 1047559
    %v1667 = vsel %vm1666, %v1565, %v1665
    %v1668 = vsel %vm1654, %v1583, %v1574
    %v1669 = vsel %vm1656, %v1592, %v1668
    %v1670 = vsel %vm1658, %v1601, %v1669
    %v1671 = vsel %vm1660, %v1610, %v1670
    %v1672 = vsel %vm1662, %v1619, %v1671
    %v1673 = vsel %vm1664, %v1628, %v1672
    %v1674 = vsel %vm1666, %v1637, %v1673
    %1677 = vmatpush.msra.mxu0 0.0
    %1678 = vmatpush.msra.mxu0 0.0
    %1679 = vmatpush.msra.mxu0 0.0
    %1680 = vmatpush.msra.mxu0 0.0
    %1681 = vmatpush.msra.mxu0 0.0
    %1682 = vmatpush.msra.mxu0 0.0
    %1683 = vmatpush.msra.mxu0 0.0
    %1684 = vmatpush.msra.mxu0 0.0
    %1685 = vmatpush.msra.mxu0 0.0
    %1686 = vmatpush.msra.mxu0 0.0
    %1687 = vmatpush.msra.mxu0 0.0
    %1688 = vmatpush.msra.mxu0 0.0
    %1689 = vmatpush.msra.mxu0 0.0
    %1690 = vmatpush.msra.mxu0 0.0
    %1691 = vmatpush.msra.mxu0 %v1674
    %1692 = vmatpush.msra.mxu0 %v1667
    %1693 = vmatmul.f32.gmra.mxu0 %v626
    %v1694 = vpop.f32.mrf.mxu0
    %v1695 = vadd.f32 0.0, %v1694
    %1696 = vmatmul.f32.gmra.mxu0 %v629
    %v1697 = vpop.f32.mrf.mxu0
    %v1698 = vadd.f32 0.0, %v1697
    %1699 = vmatmul.f32.gmra.mxu0 %v632
    %v1700 = vpop.f32.mrf.mxu0
    %v1701 = vadd.f32 0.0, %v1700
    %1702 = vmatmul.f32.gmra.mxu0 %v635
    %v1703 = vpop.f32.mrf.mxu0
    %v1704 = vadd.f32 0.0, %v1703
    %1705 = vmatmul.f32.gmra.mxu0 %v638
    %v1706 = vpop.f32.mrf.mxu0
    %v1707 = vadd.f32 0.0, %v1706
    %1708 = vmatmul.f32.gmra.mxu0 %v641
    %v1709 = vpop.f32.mrf.mxu0
    %v1710 = vadd.f32 0.0, %v1709
    %1711 = vmatmul.f32.gmra.mxu0 %v644
    %v1712 = vpop.f32.mrf.mxu0
    %v1713 = vadd.f32 0.0, %v1712
    %1714 = vmatmul.f32.gmra.mxu0 %v647
    %v1715 = vpop.f32.mrf.mxu0
    %v1716 = vadd.f32 0.0, %v1715
    %1717 = vmatmul.f32.gmra.mxu0 %v650
    %v1718 = vpop.f32.mrf.mxu0
    %v1719 = vadd.f32 0.0, %v1718
    %1720 = vmatmul.f32.gmra.mxu0 %v653
    %v1721 = vpop.f32.mrf.mxu0
    %v1722 = vadd.f32 0.0, %v1721
    %1723 = vmatmul.f32.gmra.mxu0 %v656
    %v1724 = vpop.f32.mrf.mxu0
    %v1725 = vadd.f32 0.0, %v1724
    %1726 = vmatmul.f32.gmra.mxu0 %v659
    %v1727 = vpop.f32.mrf.mxu0
    %v1728 = vadd.f32 0.0, %v1727
    %1729 = vmatmul.f32.gmra.mxu0 %v662
    %v1730 = vpop.f32.mrf.mxu0
    %v1731 = vadd.f32 0.0, %v1730
    %1732 = vmatmul.f32.gmra.mxu0 %v665
    %v1733 = vpop.f32.mrf.mxu0
    %v1734 = vadd.f32 0.0, %v1733
    %1735 = vmatmul.f32.gmra.mxu0 %v668
    %v1736 = vpop.f32.mrf.mxu0
    %v1737 = vadd.f32 0.0, %v1736
    %1738 = vmatmul.f32.gmra.mxu0 %v671
    %v1739 = vpop.f32.mrf.mxu0
    %v1740 = vadd.f32 0.0, %v1739
    %1741 = vmatmul.f32.gmra.mxu0 %v674
    %v1742 = vpop.f32.mrf.mxu0
    %v1743 = vadd.f32 0.0, %v1742
    %1744 = vmatmul.f32.gmra.mxu0 %v677
    %v1745 = vpop.f32.mrf.mxu0
    %v1746 = vadd.f32 0.0, %v1745
    %1747 = vmatmul.f32.gmra.mxu0 %v680
    %v1748 = vpop.f32.mrf.mxu0
    %v1749 = vadd.f32 0.0, %v1748
    %1750 = vmatmul.f32.gmra.mxu0 %v683
    %v1751 = vpop.f32.mrf.mxu0
    %v1752 = vadd.f32 0.0, %v1751
    %1753 = vmatmul.f32.gmra.mxu0 %v686
    %v1754 = vpop.f32.mrf.mxu0
    %v1755 = vadd.f32 0.0, %v1754
    %1756 = vmatmul.f32.gmra.mxu0 %v689
    %v1757 = vpop.f32.mrf.mxu0
    %v1758 = vadd.f32 0.0, %v1757
    %1759 = vmatmul.f32.gmra.mxu0 %v692
    %v1760 = vpop.f32.mrf.mxu0
    %v1761 = vadd.f32 0.0, %v1760
    %1762 = vmatmul.f32.gmra.mxu0 %v695
    %v1763 = vpop.f32.mrf.mxu0
    %v1764 = vadd.f32 0.0, %v1763
    %1765 = vmatmul.f32.gmra.mxu0 %v698
    %v1766 = vpop.f32.mrf.mxu0
    %v1767 = vadd.f32 0.0, %v1766
    %1768 = vmatmul.f32.gmra.mxu0 %v701
    %v1769 = vpop.f32.mrf.mxu0
    %v1770 = vadd.f32 0.0, %v1769
    %1771 = vmatmul.f32.gmra.mxu0 %v704
    %v1772 = vpop.f32.mrf.mxu0
    %v1773 = vadd.f32 0.0, %v1772
    %1774 = vmatmul.f32.gmra.mxu0 %v707
    %v1775 = vpop.f32.mrf.mxu0
    %v1776 = vadd.f32 0.0, %v1775
    %1777 = vmatmul.f32.gmra.mxu0 %v710
    %v1778 = vpop.f32.mrf.mxu0
    %v1779 = vadd.f32 0.0, %v1778
    %1780 = vmatmul.f32.gmra.mxu0 %v713
    %v1781 = vpop.f32.mrf.mxu0
    %v1782 = vadd.f32 0.0, %v1781
    %1783 = vmatmul.f32.gmra.mxu0 %v716
    %v1784 = vpop.f32.mrf.mxu0
    %v1785 = vadd.f32 0.0, %v1784
    %1786 = vmatmul.f32.gmra.mxu0 %v719
    %v1787 = vpop.f32.mrf.mxu0
    %v1788 = vadd.f32 0.0, %v1787
    %1789 = vdwg.mxu0
    %v1790 = vsub.f32 %v1398, %v1695
    %v1791 = vsub.f32 %v1401, %v1698
    %v1792 = vsub.f32 %v1404, %v1701
    %v1793 = vsub.f32 %v1407, %v1704
    %v1794 = vsub.f32 %v1410, %v1707
    %v1795 = vsub.f32 %v1413, %v1710
    %v1796 = vsub.f32 %v1416, %v1713
    %v1797 = vsub.f32 %v1419, %v1716
    %v1798 = vsub.f32 %v1422, %v1719
    %v1799 = vsub.f32 %v1425, %v1722
    %v1800 = vsub.f32 %v1428, %v1725
    %v1801 = vsub.f32 %v1431, %v1728
    %v1802 = vsub.f32 %v1434, %v1731
    %v1803 = vsub.f32 %v1437, %v1734
    %v1804 = vsub.f32 %v1440, %v1737
    %v1805 = vsub.f32 %v1443, %v1740
    %v1806 = vsub.f32 %v1446, %v1743
    %v1807 = vsub.f32 %v1449, %v1746
    %v1808 = vsub.f32 %v1452, %v1749
    %v1809 = vsub.f32 %v1455, %v1752
    %v1810 = vsub.f32 %v1458, %v1755
    %v1811 = vsub.f32 %v1461, %v1758
    %v1812 = vsub.f32 %v1464, %v1761
    %v1813 = vsub.f32 %v1467, %v1764
    %v1814 = vsub.f32 %v1470, %v1767
    %v1815 = vsub.f32 %v1473, %v1770
    %v1816 = vsub.f32 %v1476, %v1773
    %v1817 = vsub.f32 %v1479, %v1776
    %v1818 = vsub.f32 %v1482, %v1779
    %v1819 = vsub.f32 %v1485, %v1782
    %v1820 = vsub.f32 %v1488, %v1785
    %v1821 = vsub.f32 %v1491, %v1788
    %v1822 = vmul.f32 %v1790, 1.442695
    %v1823 = vpow.pop %v1822
    %v1824 = vmul.f32 %v1791, 1.442695
    %v1825 = vpow.pop %v1824
    %v1826 = vmul.f32 %v1792, 1.442695
    %v1827 = vpow.pop %v1826
    %v1828 = vmul.f32 %v1793, 1.442695
    %v1829 = vpow.pop %v1828
    %v1830 = vmul.f32 %v1794, 1.442695
    %v1831 = vpow.pop %v1830
    %v1832 = vmul.f32 %v1795, 1.442695
    %v1833 = vpow.pop %v1832
    %v1834 = vmul.f32 %v1796, 1.442695
    %v1835 = vpow.pop %v1834
    %v1836 = vmul.f32 %v1797, 1.442695
    %v1837 = vpow.pop %v1836
    %v1838 = vmul.f32 %v1798, 1.442695
    %v1839 = vpow.pop %v1838
    %v1840 = vmul.f32 %v1799, 1.442695
    %v1841 = vpow.pop %v1840
    %v1842 = vmul.f32 %v1800, 1.442695
    %v1843 = vpow.pop %v1842
    %v1844 = vmul.f32 %v1801, 1.442695
    %v1845 = vpow.pop %v1844
    %v1846 = vmul.f32 %v1802, 1.442695
    %v1847 = vpow.pop %v1846
    %v1848 = vmul.f32 %v1803, 1.442695
    %v1849 = vpow.pop %v1848
    %v1850 = vmul.f32 %v1804, 1.442695
    %v1851 = vpow.pop %v1850
    %v1852 = vmul.f32 %v1805, 1.442695
    %v1853 = vpow.pop %v1852
    %v1854 = vmul.f32 %v1806, 1.442695
    %v1855 = vpow.pop %v1854
    %v1856 = vmul.f32 %v1807, 1.442695
    %v1857 = vpow.pop %v1856
    %v1858 = vmul.f32 %v1808, 1.442695
    %v1859 = vpow.pop %v1858
    %v1860 = vmul.f32 %v1809, 1.442695
    %v1861 = vpow.pop %v1860
    %v1862 = vmul.f32 %v1810, 1.442695
    %v1863 = vpow.pop %v1862
    %v1864 = vmul.f32 %v1811, 1.442695
    %v1865 = vpow.pop %v1864
    %v1866 = vmul.f32 %v1812, 1.442695
    %v1867 = vpow.pop %v1866
    %v1868 = vmul.f32 %v1813, 1.442695
    %v1869 = vpow.pop %v1868
    %v1870 = vmul.f32 %v1814, 1.442695
    %v1871 = vpow.pop %v1870
    %v1872 = vmul.f32 %v1815, 1.442695
    %v1873 = vpow.pop %v1872
    %v1874 = vmul.f32 %v1816, 1.442695
    %v1875 = vpow.pop %v1874
    %v1876 = vmul.f32 %v1817, 1.442695
    %v1877 = vpow.pop %v1876
    %v1878 = vmul.f32 %v1818, 1.442695
    %v1879 = vpow.pop %v1878
    %v1880 = vmul.f32 %v1819, 1.442695
    %v1881 = vpow.pop %v1880
    %v1882 = vmul.f32 %v1820, 1.442695
    %v1883 = vpow.pop %v1882
    %v1884 = vmul.f32 %v1821, 1.442695
    %v1885 = vpow.pop %v1884
    %1886 = vmatpush.msra.mxu0 %v1853
    %1887 = vmatpush.msra.mxu0 %v1851
    %1888 = vmatpush.msra.mxu0 %v1849
    %1889 = vmatpush.msra.mxu0 %v1847
    %1890 = vmatpush.msra.mxu0 %v1845
    %1891 = vmatpush.msra.mxu0 %v1843
    %1892 = vmatpush.msra.mxu0 %v1841
    %1893 = vmatpush.msra.mxu0 %v1839
    %1894 = vmatpush.msra.mxu0 %v1837
    %1895 = vmatpush.msra.mxu0 %v1835
    %1896 = vmatpush.msra.mxu0 %v1833
    %1897 = vmatpush.msra.mxu0 %v1831
    %1898 = vmatpush.msra.mxu0 %v1829
    %1899 = vmatpush.msra.mxu0 %v1827
    %1900 = vmatpush.msra.mxu0 %v1825
    %1901 = vmatpush.msra.mxu0 %v1823
    %1902 = vmatmul.f32.gmra.mxu0 %v171
    %v1903 = vpop.f32.mrf.mxu0
    %v1904 = vadd.f32 0.0, %v1903
    %1905 = vmatmul.f32.gmra.mxu0 %v173
    %v1906 = vpop.f32.mrf.mxu0
    %v1907 = vadd.f32 0.0, %v1906
    %1908 = vdwg.mxu0
    %1909 = vmatpush.msra.mxu0 %v1885
    %1910 = vmatpush.msra.mxu0 %v1883
    %1911 = vmatpush.msra.mxu0 %v1881
    %1912 = vmatpush.msra.mxu0 %v1879
    %1913 = vmatpush.msra.mxu0 %v1877
    %1914 = vmatpush.msra.mxu0 %v1875
    %1915 = vmatpush.msra.mxu0 %v1873
    %1916 = vmatpush.msra.mxu0 %v1871
    %1917 = vmatpush.msra.mxu0 %v1869
    %1918 = vmatpush.msra.mxu0 %v1867
    %1919 = vmatpush.msra.mxu0 %v1865
    %1920 = vmatpush.msra.mxu0 %v1863
    %1921 = vmatpush.msra.mxu0 %v1861
    %1922 = vmatpush.msra.mxu0 %v1859
    %1923 = vmatpush.msra.mxu0 %v1857
    %1924 = vmatpush.msra.mxu0 %v1855
    %1925 = vmatmul.f32.gmra.mxu0 %v172
    %v1926 = vpop.f32.mrf.mxu0
    %v1927 = vadd.f32 %v1904, %v1926
    %1928 = vmatmul.f32.gmra.mxu0 %v174
    %v1929 = vpop.f32.mrf.mxu0
    %v1930 = vadd.f32 %v1907, %v1929
    %1931 = vdwg.mxu0
    %v1932 = vrcp.pop %v1927
    %v1933 = vrcp.pop %v1930
    %1934 = vmatpush.msra.mxu0 0.0
    %1935 = vmatpush.msra.mxu0 0.0
    %1936 = vmatpush.msra.mxu0 0.0
    %1937 = vmatpush.msra.mxu0 0.0
    %1938 = vmatpush.msra.mxu0 0.0
    %1939 = vmatpush.msra.mxu0 0.0
    %1940 = vmatpush.msra.mxu0 0.0
    %1941 = vmatpush.msra.mxu0 0.0
    %1942 = vmatpush.msra.mxu0 0.0
    %1943 = vmatpush.msra.mxu0 0.0
    %1944 = vmatpush.msra.mxu0 0.0
    %1945 = vmatpush.msra.mxu0 0.0
    %1946 = vmatpush.msra.mxu0 0.0
    %1947 = vmatpush.msra.mxu0 0.0
    %1948 = vmatpush.msra.mxu0 %v1933
    %1949 = vmatpush.msra.mxu0 %v1932
    %1950 = vmatmul.f32.gmra.mxu0 %v626
    %v1951 = vpop.f32.mrf.mxu0
    %v1952 = vadd.f32 0.0, %v1951
    %1953 = vmatmul.f32.gmra.mxu0 %v629
    %v1954 = vpop.f32.mrf.mxu0
    %v1955 = vadd.f32 0.0, %v1954
    %1956 = vmatmul.f32.gmra.mxu0 %v632
    %v1957 = vpop.f32.mrf.mxu0
    %v1958 = vadd.f32 0.0, %v1957
    %1959 = vmatmul.f32.gmra.mxu0 %v635
    %v1960 = vpop.f32.mrf.mxu0
    %v1961 = vadd.f32 0.0, %v1960
    %1962 = vmatmul.f32.gmra.mxu0 %v638
    %v1963 = vpop.f32.mrf.mxu0
    %v1964 = vadd.f32 0.0, %v1963
    %1965 = vmatmul.f32.gmra.mxu0 %v641
    %v1966 = vpop.f32.mrf.mxu0
    %v1967 = vadd.f32 0.0, %v1966
    %1968 = vmatmul.f32.gmra.mxu0 %v644
    %v1969 = vpop.f32.mrf.mxu0
    %v1970 = vadd.f32 0.0, %v1969
    %1971 = vmatmul.f32.gmra.mxu0 %v647
    %v1972 = vpop.f32.mrf.mxu0
    %v1973 = vadd.f32 0.0, %v1972
    %1974 = vmatmul.f32.gmra.mxu0 %v650
    %v1975 = vpop.f32.mrf.mxu0
    %v1976 = vadd.f32 0.0, %v1975
    %1977 = vmatmul.f32.gmra.mxu0 %v653
    %v1978 = vpop.f32.mrf.mxu0
    %v1979 = vadd.f32 0.0, %v1978
    %1980 = vmatmul.f32.gmra.mxu0 %v656
    %v1981 = vpop.f32.mrf.mxu0
    %v1982 = vadd.f32 0.0, %v1981
    %1983 = vmatmul.f32.gmra.mxu0 %v659
    %v1984 = vpop.f32.mrf.mxu0
    %v1985 = vadd.f32 0.0, %v1984
    %1986 = vmatmul.f32.gmra.mxu0 %v662
    %v1987 = vpop.f32.mrf.mxu0
    %v1988 = vadd.f32 0.0, %v1987
    %1989 = vmatmul.f32.gmra.mxu0 %v665
    %v1990 = vpop.f32.mrf.mxu0
    %v1991 = vadd.f32 0.0, %v1990
    %1992 = vmatmul.f32.gmra.mxu0 %v668
    %v1993 = vpop.f32.mrf.mxu0
    %v1994 = vadd.f32 0.0, %v1993
    %1995 = vmatmul.f32.gmra.mxu0 %v671
    %v1996 = vpop.f32.mrf.mxu0
    %v1997 = vadd.f32 0.0, %v1996
    %1998 = vmatmul.f32.gmra.mxu0 %v674
    %v1999 = vpop.f32.mrf.mxu0
    %v2000 = vadd.f32 0.0, %v1999
    %2001 = vmatmul.f32.gmra.mxu0 %v677
    %v2002 = vpop.f32.mrf.mxu0
    %v2003 = vadd.f32 0.0, %v2002
    %2004 = vmatmul.f32.gmra.mxu0 %v680
    %v2005 = vpop.f32.mrf.mxu0
    %v2006 = vadd.f32 0.0, %v2005
    %2007 = vmatmul.f32.gmra.mxu0 %v683
    %v2008 = vpop.f32.mrf.mxu0
    %v2009 = vadd.f32 0.0, %v2008
    %2010 = vmatmul.f32.gmra.mxu0 %v686
    %v2011 = vpop.f32.mrf.mxu0
    %v2012 = vadd.f32 0.0, %v2011
    %2013 = vmatmul.f32.gmra.mxu0 %v689
    %v2014 = vpop.f32.mrf.mxu0
    %v2015 = vadd.f32 0.0, %v2014
    %2016 = vmatmul.f32.gmra.mxu0 %v692
    %v2017 = vpop.f32.mrf.mxu0
    %v2018 = vadd.f32 0.0, %v2017
    %2019 = vmatmul.f32.gmra.mxu0 %v695
    %v2020 = vpop.f32.mrf.mxu0
    %v2021 = vadd.f32 0.0, %v2020
    %2022 = vmatmul.f32.gmra.mxu0 %v698
    %v2023 = vpop.f32.mrf.mxu0
    %v2024 = vadd.f32 0.0, %v2023
    %2025 = vmatmul.f32.gmra.mxu0 %v701
    %v2026 = vpop.f32.mrf.mxu0
    %v2027 = vadd.f32 0.0, %v2026
    %2028 = vmatmul.f32.gmra.mxu0 %v704
    %v2029 = vpop.f32.mrf.mxu0
    %v2030 = vadd.f32 0.0, %v2029
    %2031 = vmatmul.f32.gmra.mxu0 %v707
    %v2032 = vpop.f32.mrf.mxu0
    %v2033 = vadd.f32 0.0, %v2032
    %2034 = vmatmul.f32.gmra.mxu0 %v710
    %v2035 = vpop.f32.mrf.mxu0
    %v2036 = vadd.f32 0.0, %v2035
    %2037 = vmatmul.f32.gmra.mxu0 %v713
    %v2038 = vpop.f32.mrf.mxu0
    %v2039 = vadd.f32 0.0, %v2038
    %2040 = vmatmul.f32.gmra.mxu0 %v716
    %v2041 = vpop.f32.mrf.mxu0
    %v2042 = vadd.f32 0.0, %v2041
    %2043 = vmatmul.f32.gmra.mxu0 %v719
    %v2044 = vpop.f32.mrf.mxu0
    %v2045 = vadd.f32 0.0, %v2044
    %2046 = vdwg.mxu0
    %v2047 = vmul.f32 %v1823, %v1952
    %v2048 = vmul.f32 %v1825, %v1955
    %v2049 = vmul.f32 %v1827, %v1958
    %v2050 = vmul.f32 %v1829, %v1961
    %v2051 = vmul.f32 %v1831, %v1964
    %v2052 = vmul.f32 %v1833, %v1967
    %v2053 = vmul.f32 %v1835, %v1970
    %v2054 = vmul.f32 %v1837, %v1973
    %v2055 = vmul.f32 %v1839, %v1976
    %v2056 = vmul.f32 %v1841, %v1979
    %v2057 = vmul.f32 %v1843, %v1982
    %v2058 = vmul.f32 %v1845, %v1985
    %v2059 = vmul.f32 %v1847, %v1988
    %v2060 = vmul.f32 %v1849, %v1991
    %v2061 = vmul.f32 %v1851, %v1994
    %v2062 = vmul.f32 %v1853, %v1997
    %v2063 = vmul.f32 %v1855, %v2000
    %v2064 = vmul.f32 %v1857, %v2003
    %v2065 = vmul.f32 %v1859, %v2006
    %v2066 = vmul.f32 %v1861, %v2009
    %v2067 = vmul.f32 %v1863, %v2012
    %v2068 = vmul.f32 %v1865, %v2015
    %v2069 = vmul.f32 %v1867, %v2018
    %v2070 = vmul.f32 %v1869, %v2021
    %v2071 = vmul.f32 %v1871, %v2024
    %v2072 = vmul.f32 %v1873, %v2027
    %v2073 = vmul.f32 %v1875, %v2030
    %v2074 = vmul.f32 %v1877, %v2033
    %v2075 = vmul.f32 %v1879, %v2036
    %v2076 = vmul.f32 %v1881, %v2039
    %v2077 = vmul.f32 %v1883, %v2042
    %v2078 = vmul.f32 %v1885, %v2045
    %v2079 = vld [vmem:[%s8] sm:$0xff]
    %v2080 = vld [vmem:[%s8 + $0x8] sm:$0xff]
    %v2082 = vsel %vm1493, %v2047, 0
    %v2085 = vsel %vm1493, %v2048, 0
    %v2088 = vsel %vm1493, %v2049, 0
    %v2091 = vsel %vm1493, %v2050, 0
    %v2094 = vsel %vm1493, %v2051, 0
    %v2097 = vsel %vm1493, %v2052, 0
    %v2100 = vsel %vm1493, %v2053, 0
    %v2103 = vsel %vm1493, %v2054, 0
    %v2106 = vsel %vm1493, %v2055, 0
    %v2109 = vsel %vm1493, %v2056, 0
    %v2112 = vsel %vm1493, %v2057, 0
    %v2115 = vsel %vm1493, %v2058, 0
    %v2118 = vsel %vm1493, %v2059, 0
    %v2121 = vsel %vm1493, %v2060, 0
    %v2124 = vsel %vm1493, %v2061, 0
    %v2127 = vsel %vm1493, %v2062, 0
    %v2130 = vsel %vm1493, %v2063, 0
    %v2133 = vsel %vm1493, %v2064, 0
    %v2136 = vsel %vm1493, %v2065, 0
    %v2139 = vsel %vm1493, %v2066, 0
    %v2142 = vsel %vm1493, %v2067, 0
    %v2145 = vsel %vm1493, %v2068, 0
    %v2148 = vsel %vm1493, %v2069, 0
    %v2151 = vsel %vm1493, %v2070, 0
    %v2154 = vsel %vm1493, %v2071, 0
    %v2157 = vsel %vm1493, %v2072, 0
    %v2160 = vsel %vm1493, %v2073, 0
    %v2163 = vsel %vm1493, %v2074, 0
    %v2166 = vsel %vm1493, %v2075, 0
    %v2169 = vsel %vm1493, %v2076, 0
    %v2172 = vsel %vm1493, %v2077, 0
    %v2175 = vsel %vm1493, %v2078, 0
    %2177 = vmatpush.msra.mxu0 0.0
    %2178 = vmatpush.msra.mxu0 0.0
    %2179 = vmatpush.msra.mxu0 0.0
    %2180 = vmatpush.msra.mxu0 0.0
    %2181 = vmatpush.msra.mxu0 0.0
    %2182 = vmatpush.msra.mxu0 0.0
    %2183 = vmatpush.msra.mxu0 0.0
    %2184 = vmatpush.msra.mxu0 0.0
    %2185 = vmatpush.msra.mxu0 0.0
    %2186 = vmatpush.msra.mxu0 0.0
    %2187 = vmatpush.msra.mxu0 0.0
    %2188 = vmatpush.msra.mxu0 0.0
    %2189 = vmatpush.msra.mxu0 0.0
    %2190 = vmatpush.msra.mxu0 0.0
    %2191 = vmatpush.msra.mxu0 0.0
    %2192 = vmatpush.msra.mxu0 %v2079
    %2193 = vmatmul.f32.gmra.mxu0 %v2082
    %v2194 = vpop.f32.mrf.mxu0
    %v2195 = vadd.f32 0.0, %v2194
    %2196 = vmatmul.f32.gmra.mxu0 %v2085
    %v2197 = vpop.f32.mrf.mxu0
    %v2198 = vadd.f32 0.0, %v2197
    %2199 = vmatmul.f32.gmra.mxu0 %v2088
    %v2200 = vpop.f32.mrf.mxu0
    %v2201 = vadd.f32 0.0, %v2200
    %2202 = vmatmul.f32.gmra.mxu0 %v2091
    %v2203 = vpop.f32.mrf.mxu0
    %v2204 = vadd.f32 0.0, %v2203
    %2205 = vmatmul.f32.gmra.mxu0 %v2094
    %v2206 = vpop.f32.mrf.mxu0
    %v2207 = vadd.f32 0.0, %v2206
    %2208 = vmatmul.f32.gmra.mxu0 %v2097
    %v2209 = vpop.f32.mrf.mxu0
    %v2210 = vadd.f32 0.0, %v2209
    %2211 = vmatmul.f32.gmra.mxu0 %v2100
    %v2212 = vpop.f32.mrf.mxu0
    %v2213 = vadd.f32 0.0, %v2212
    %2214 = vmatmul.f32.gmra.mxu0 %v2103
    %v2215 = vpop.f32.mrf.mxu0
    %v2216 = vadd.f32 0.0, %v2215
    %2217 = vmatmul.f32.gmra.mxu0 %v2106
    %v2218 = vpop.f32.mrf.mxu0
    %v2219 = vadd.f32 0.0, %v2218
    %2220 = vmatmul.f32.gmra.mxu0 %v2109
    %v2221 = vpop.f32.mrf.mxu0
    %v2222 = vadd.f32 0.0, %v2221
    %2223 = vmatmul.f32.gmra.mxu0 %v2112
    %v2224 = vpop.f32.mrf.mxu0
    %v2225 = vadd.f32 0.0, %v2224
    %2226 = vmatmul.f32.gmra.mxu0 %v2115
    %v2227 = vpop.f32.mrf.mxu0
    %v2228 = vadd.f32 0.0, %v2227
    %2229 = vmatmul.f32.gmra.mxu0 %v2118
    %v2230 = vpop.f32.mrf.mxu0
    %v2231 = vadd.f32 0.0, %v2230
    %2232 = vmatmul.f32.gmra.mxu0 %v2121
    %v2233 = vpop.f32.mrf.mxu0
    %v2234 = vadd.f32 0.0, %v2233
    %2235 = vmatmul.f32.gmra.mxu0 %v2124
    %v2236 = vpop.f32.mrf.mxu0
    %v2237 = vadd.f32 0.0, %v2236
    %2238 = vmatmul.f32.gmra.mxu0 %v2127
    %v2239 = vpop.f32.mrf.mxu0
    %v2240 = vadd.f32 0.0, %v2239
    %2241 = vmatmul.f32.gmra.mxu0 %v2130
    %v2242 = vpop.f32.mrf.mxu0
    %v2243 = vadd.f32 0.0, %v2242
    %2244 = vmatmul.f32.gmra.mxu0 %v2133
    %v2245 = vpop.f32.mrf.mxu0
    %v2246 = vadd.f32 0.0, %v2245
    %2247 = vmatmul.f32.gmra.mxu0 %v2136
    %v2248 = vpop.f32.mrf.mxu0
    %v2249 = vadd.f32 0.0, %v2248
    %2250 = vmatmul.f32.gmra.mxu0 %v2139
    %v2251 = vpop.f32.mrf.mxu0
    %v2252 = vadd.f32 0.0, %v2251
    %2253 = vmatmul.f32.gmra.mxu0 %v2142
    %v2254 = vpop.f32.mrf.mxu0
    %v2255 = vadd.f32 0.0, %v2254
    %2256 = vmatmul.f32.gmra.mxu0 %v2145
    %v2257 = vpop.f32.mrf.mxu0
    %v2258 = vadd.f32 0.0, %v2257
    %2259 = vmatmul.f32.gmra.mxu0 %v2148
    %v2260 = vpop.f32.mrf.mxu0
    %v2261 = vadd.f32 0.0, %v2260
    %2262 = vmatmul.f32.gmra.mxu0 %v2151
    %v2263 = vpop.f32.mrf.mxu0
    %v2264 = vadd.f32 0.0, %v2263
    %2265 = vmatmul.f32.gmra.mxu0 %v2154
    %v2266 = vpop.f32.mrf.mxu0
    %v2267 = vadd.f32 0.0, %v2266
    %2268 = vmatmul.f32.gmra.mxu0 %v2157
    %v2269 = vpop.f32.mrf.mxu0
    %v2270 = vadd.f32 0.0, %v2269
    %2271 = vmatmul.f32.gmra.mxu0 %v2160
    %v2272 = vpop.f32.mrf.mxu0
    %v2273 = vadd.f32 0.0, %v2272
    %2274 = vmatmul.f32.gmra.mxu0 %v2163
    %v2275 = vpop.f32.mrf.mxu0
    %v2276 = vadd.f32 0.0, %v2275
    %2277 = vmatmul.f32.gmra.mxu0 %v2166
    %v2278 = vpop.f32.mrf.mxu0
    %v2279 = vadd.f32 0.0, %v2278
    %2280 = vmatmul.f32.gmra.mxu0 %v2169
    %v2281 = vpop.f32.mrf.mxu0
    %v2282 = vadd.f32 0.0, %v2281
    %2283 = vmatmul.f32.gmra.mxu0 %v2172
    %v2284 = vpop.f32.mrf.mxu0
    %v2285 = vadd.f32 0.0, %v2284
    %2286 = vmatmul.f32.gmra.mxu0 %v2175
    %v2287 = vpop.f32.mrf.mxu0
    %v2288 = vadd.f32 0.0, %v2287
    %2289 = vdwg.mxu0
    %2290 = vmatpush.msra.mxu0 0.0
    %2291 = vmatpush.msra.mxu0 0.0
    %2292 = vmatpush.msra.mxu0 0.0
    %2293 = vmatpush.msra.mxu0 0.0
    %2294 = vmatpush.msra.mxu0 0.0
    %2295 = vmatpush.msra.mxu0 0.0
    %2296 = vmatpush.msra.mxu0 0.0
    %2297 = vmatpush.msra.mxu0 0.0
    %2298 = vmatpush.msra.mxu0 0.0
    %2299 = vmatpush.msra.mxu0 0.0
    %2300 = vmatpush.msra.mxu0 0.0
    %2301 = vmatpush.msra.mxu0 0.0
    %2302 = vmatpush.msra.mxu0 0.0
    %2303 = vmatpush.msra.mxu0 0.0
    %2304 = vmatpush.msra.mxu0 0.0
    %2305 = vmatpush.msra.mxu0 %v2080
    %2306 = vmatmul.f32.gmra.mxu0 %v2082
    %v2307 = vpop.f32.mrf.mxu0
    %v2308 = vadd.f32 0.0, %v2307
    %2309 = vmatmul.f32.gmra.mxu0 %v2085
    %v2310 = vpop.f32.mrf.mxu0
    %v2311 = vadd.f32 0.0, %v2310
    %2312 = vmatmul.f32.gmra.mxu0 %v2088
    %v2313 = vpop.f32.mrf.mxu0
    %v2314 = vadd.f32 0.0, %v2313
    %2315 = vmatmul.f32.gmra.mxu0 %v2091
    %v2316 = vpop.f32.mrf.mxu0
    %v2317 = vadd.f32 0.0, %v2316
    %2318 = vmatmul.f32.gmra.mxu0 %v2094
    %v2319 = vpop.f32.mrf.mxu0
    %v2320 = vadd.f32 0.0, %v2319
    %2321 = vmatmul.f32.gmra.mxu0 %v2097
    %v2322 = vpop.f32.mrf.mxu0
    %v2323 = vadd.f32 0.0, %v2322
    %2324 = vmatmul.f32.gmra.mxu0 %v2100
    %v2325 = vpop.f32.mrf.mxu0
    %v2326 = vadd.f32 0.0, %v2325
    %2327 = vmatmul.f32.gmra.mxu0 %v2103
    %v2328 = vpop.f32.mrf.mxu0
    %v2329 = vadd.f32 0.0, %v2328
    %2330 = vmatmul.f32.gmra.mxu0 %v2106
    %v2331 = vpop.f32.mrf.mxu0
    %v2332 = vadd.f32 0.0, %v2331
    %2333 = vmatmul.f32.gmra.mxu0 %v2109
    %v2334 = vpop.f32.mrf.mxu0
    %v2335 = vadd.f32 0.0, %v2334
    %2336 = vmatmul.f32.gmra.mxu0 %v2112
    %v2337 = vpop.f32.mrf.mxu0
    %v2338 = vadd.f32 0.0, %v2337
    %2339 = vmatmul.f32.gmra.mxu0 %v2115
    %v2340 = vpop.f32.mrf.mxu0
    %v2341 = vadd.f32 0.0, %v2340
    %2342 = vmatmul.f32.gmra.mxu0 %v2118
    %v2343 = vpop.f32.mrf.mxu0
    %v2344 = vadd.f32 0.0, %v2343
    %2345 = vmatmul.f32.gmra.mxu0 %v2121
    %v2346 = vpop.f32.mrf.mxu0
    %v2347 = vadd.f32 0.0, %v2346
    %2348 = vmatmul.f32.gmra.mxu0 %v2124
    %v2349 = vpop.f32.mrf.mxu0
    %v2350 = vadd.f32 0.0, %v2349
    %2351 = vmatmul.f32.gmra.mxu0 %v2127
    %v2352 = vpop.f32.mrf.mxu0
    %v2353 = vadd.f32 0.0, %v2352
    %2354 = vmatmul.f32.gmra.mxu0 %v2130
    %v2355 = vpop.f32.mrf.mxu0
    %v2356 = vadd.f32 0.0, %v2355
    %2357 = vmatmul.f32.gmra.mxu0 %v2133
    %v2358 = vpop.f32.mrf.mxu0
    %v2359 = vadd.f32 0.0, %v2358
    %2360 = vmatmul.f32.gmra.mxu0 %v2136
    %v2361 = vpop.f32.mrf.mxu0
    %v2362 = vadd.f32 0.0, %v2361
    %2363 = vmatmul.f32.gmra.mxu0 %v2139
    %v2364 = vpop.f32.mrf.mxu0
    %v2365 = vadd.f32 0.0, %v2364
    %2366 = vmatmul.f32.gmra.mxu0 %v2142
    %v2367 = vpop.f32.mrf.mxu0
    %v2368 = vadd.f32 0.0, %v2367
    %2369 = vmatmul.f32.gmra.mxu0 %v2145
    %v2370 = vpop.f32.mrf.mxu0
    %v2371 = vadd.f32 0.0, %v2370
    %2372 = vmatmul.f32.gmra.mxu0 %v2148
    %v2373 = vpop.f32.mrf.mxu0
    %v2374 = vadd.f32 0.0, %v2373
    %2375 = vmatmul.f32.gmra.mxu0 %v2151
    %v2376 = vpop.f32.mrf.mxu0
    %v2377 = vadd.f32 0.0, %v2376
    %2378 = vmatmul.f32.gmra.mxu0 %v2154
    %v2379 = vpop.f32.mrf.mxu0
    %v2380 = vadd.f32 0.0, %v2379
    %2381 = vmatmul.f32.gmra.mxu0 %v2157
    %v2382 = vpop.f32.mrf.mxu0
    %v2383 = vadd.f32 0.0, %v2382
    %2384 = vmatmul.f32.gmra.mxu0 %v2160
    %v2385 = vpop.f32.mrf.mxu0
    %v2386 = vadd.f32 0.0, %v2385
    %2387 = vmatmul.f32.gmra.mxu0 %v2163
    %v2388 = vpop.f32.mrf.mxu0
    %v2389 = vadd.f32 0.0, %v2388
    %2390 = vmatmul.f32.gmra.mxu0 %v2166
    %v2391 = vpop.f32.mrf.mxu0
    %v2392 = vadd.f32 0.0, %v2391
    %2393 = vmatmul.f32.gmra.mxu0 %v2169
    %v2394 = vpop.f32.mrf.mxu0
    %v2395 = vadd.f32 0.0, %v2394
    %2396 = vmatmul.f32.gmra.mxu0 %v2172
    %v2397 = vpop.f32.mrf.mxu0
    %v2398 = vadd.f32 0.0, %v2397
    %2399 = vmatmul.f32.gmra.mxu0 %v2175
    %v2400 = vpop.f32.mrf.mxu0
    %v2401 = vadd.f32 0.0, %v2400
    %2402 = vdwg.mxu0
    %v2403 = vmul.f32 %v2195, %v417
    %v2404 = vmul.f32 %v2308, %v530
    %v2405 = vmul.f32 %v2198, %v420
    %v2406 = vmul.f32 %v2311, %v533
    %v2407 = vmul.f32 %v2201, %v423
    %v2408 = vmul.f32 %v2314, %v536
    %v2409 = vmul.f32 %v2204, %v426
    %v2410 = vmul.f32 %v2317, %v539
    %v2411 = vmul.f32 %v2207, %v429
    %v2412 = vmul.f32 %v2320, %v542
    %v2413 = vmul.f32 %v2210, %v432
    %v2414 = vmul.f32 %v2323, %v545
    %v2415 = vmul.f32 %v2213, %v435
    %v2416 = vmul.f32 %v2326, %v548
    %v2417 = vmul.f32 %v2216, %v438
    %v2418 = vmul.f32 %v2329, %v551
    %v2419 = vmul.f32 %v2219, %v441
    %v2420 = vmul.f32 %v2332, %v554
    %v2421 = vmul.f32 %v2222, %v444
    %v2422 = vmul.f32 %v2335, %v557
    %v2423 = vmul.f32 %v2225, %v447
    %v2424 = vmul.f32 %v2338, %v560
    %v2425 = vmul.f32 %v2228, %v450
    %v2426 = vmul.f32 %v2341, %v563
    %v2427 = vmul.f32 %v2231, %v453
    %v2428 = vmul.f32 %v2344, %v566
    %v2429 = vmul.f32 %v2234, %v456
    %v2430 = vmul.f32 %v2347, %v569
    %v2431 = vmul.f32 %v2237, %v459
    %v2432 = vmul.f32 %v2350, %v572
    %v2433 = vmul.f32 %v2240, %v462
    %v2434 = vmul.f32 %v2353, %v575
    %v2435 = vmul.f32 %v2243, %v465
    %v2436 = vmul.f32 %v2356, %v578
    %v2437 = vmul.f32 %v2246, %v468
    %v2438 = vmul.f32 %v2359, %v581
    %v2439 = vmul.f32 %v2249, %v471
    %v2440 = vmul.f32 %v2362, %v584
    %v2441 = vmul.f32 %v2252, %v474
    %v2442 = vmul.f32 %v2365, %v587
    %v2443 = vmul.f32 %v2255, %v477
    %v2444 = vmul.f32 %v2368, %v590
    %v2445 = vmul.f32 %v2258, %v480
    %v2446 = vmul.f32 %v2371, %v593
    %v2447 = vmul.f32 %v2261, %v483
    %v2448 = vmul.f32 %v2374, %v596
    %v2449 = vmul.f32 %v2264, %v486
    %v2450 = vmul.f32 %v2377, %v599
    %v2451 = vmul.f32 %v2267, %v489
    %v2452 = vmul.f32 %v2380, %v602
    %v2453 = vmul.f32 %v2270, %v492
    %v2454 = vmul.f32 %v2383, %v605
    %v2455 = vmul.f32 %v2273, %v495
    %v2456 = vmul.f32 %v2386, %v608
    %v2457 = vmul.f32 %v2276, %v498
    %v2458 = vmul.f32 %v2389, %v611
    %v2459 = vmul.f32 %v2279, %v501
    %v2460 = vmul.f32 %v2392, %v614
    %v2461 = vmul.f32 %v2282, %v504
    %v2462 = vmul.f32 %v2395, %v617
    %v2463 = vmul.f32 %v2285, %v507
    %v2464 = vmul.f32 %v2398, %v620
    %v2465 = vmul.f32 %v2288, %v510
    %v2466 = vmul.f32 %v2401, %v623
    %2467 = vmatpush.msra.mxu0 %v2433
    %2468 = vmatpush.msra.mxu0 %v2431
    %2469 = vmatpush.msra.mxu0 %v2429
    %2470 = vmatpush.msra.mxu0 %v2427
    %2471 = vmatpush.msra.mxu0 %v2425
    %2472 = vmatpush.msra.mxu0 %v2423
    %2473 = vmatpush.msra.mxu0 %v2421
    %2474 = vmatpush.msra.mxu0 %v2419
    %2475 = vmatpush.msra.mxu0 %v2417
    %2476 = vmatpush.msra.mxu0 %v2415
    %2477 = vmatpush.msra.mxu0 %v2413
    %2478 = vmatpush.msra.mxu0 %v2411
    %2479 = vmatpush.msra.mxu0 %v2409
    %2480 = vmatpush.msra.mxu0 %v2407
    %2481 = vmatpush.msra.mxu0 %v2405
    %2482 = vmatpush.msra.mxu0 %v2403
    %2483 = vmatmul.f32.gmra.mxu0 %v171
    %v2484 = vpop.f32.mrf.mxu0
    %v2485 = vadd.f32 0.0, %v2484
    %2486 = vmatmul.f32.gmra.mxu0 %v173
    %v2487 = vpop.f32.mrf.mxu0
    %v2488 = vadd.f32 0.0, %v2487
    %2489 = vdwg.mxu0
    %2490 = vmatpush.msra.mxu0 %v2465
    %2491 = vmatpush.msra.mxu0 %v2463
    %2492 = vmatpush.msra.mxu0 %v2461
    %2493 = vmatpush.msra.mxu0 %v2459
    %2494 = vmatpush.msra.mxu0 %v2457
    %2495 = vmatpush.msra.mxu0 %v2455
    %2496 = vmatpush.msra.mxu0 %v2453
    %2497 = vmatpush.msra.mxu0 %v2451
    %2498 = vmatpush.msra.mxu0 %v2449
    %2499 = vmatpush.msra.mxu0 %v2447
    %2500 = vmatpush.msra.mxu0 %v2445
    %2501 = vmatpush.msra.mxu0 %v2443
    %2502 = vmatpush.msra.mxu0 %v2441
    %2503 = vmatpush.msra.mxu0 %v2439
    %2504 = vmatpush.msra.mxu0 %v2437
    %2505 = vmatpush.msra.mxu0 %v2435
    %2506 = vmatmul.f32.gmra.mxu0 %v172
    %v2507 = vpop.f32.mrf.mxu0
    %v2508 = vadd.f32 %v2485, %v2507
    %2509 = vmatmul.f32.gmra.mxu0 %v174
    %v2510 = vpop.f32.mrf.mxu0
    %v2511 = vadd.f32 %v2488, %v2510
    %2512 = vdwg.mxu0
    %2513 = vmatpush.msra.mxu0 %v2434
    %2514 = vmatpush.msra.mxu0 %v2432
    %2515 = vmatpush.msra.mxu0 %v2430
    %2516 = vmatpush.msra.mxu0 %v2428
    %2517 = vmatpush.msra.mxu0 %v2426
    %2518 = vmatpush.msra.mxu0 %v2424
    %2519 = vmatpush.msra.mxu0 %v2422
    %2520 = vmatpush.msra.mxu0 %v2420
    %2521 = vmatpush.msra.mxu0 %v2418
    %2522 = vmatpush.msra.mxu0 %v2416
    %2523 = vmatpush.msra.mxu0 %v2414
    %2524 = vmatpush.msra.mxu0 %v2412
    %2525 = vmatpush.msra.mxu0 %v2410
    %2526 = vmatpush.msra.mxu0 %v2408
    %2527 = vmatpush.msra.mxu0 %v2406
    %2528 = vmatpush.msra.mxu0 %v2404
    %2529 = vmatmul.f32.gmra.mxu0 %v171
    %v2530 = vpop.f32.mrf.mxu0
    %v2531 = vadd.f32 0.0, %v2530
    %2532 = vmatmul.f32.gmra.mxu0 %v173
    %v2533 = vpop.f32.mrf.mxu0
    %v2534 = vadd.f32 0.0, %v2533
    %2535 = vdwg.mxu0
    %2536 = vmatpush.msra.mxu0 %v2466
    %2537 = vmatpush.msra.mxu0 %v2464
    %2538 = vmatpush.msra.mxu0 %v2462
    %2539 = vmatpush.msra.mxu0 %v2460
    %2540 = vmatpush.msra.mxu0 %v2458
    %2541 = vmatpush.msra.mxu0 %v2456
    %2542 = vmatpush.msra.mxu0 %v2454
    %2543 = vmatpush.msra.mxu0 %v2452
    %2544 = vmatpush.msra.mxu0 %v2450
    %2545 = vmatpush.msra.mxu0 %v2448
    %2546 = vmatpush.msra.mxu0 %v2446
    %2547 = vmatpush.msra.mxu0 %v2444
    %2548 = vmatpush.msra.mxu0 %v2442
    %2549 = vmatpush.msra.mxu0 %v2440
    %2550 = vmatpush.msra.mxu0 %v2438
    %2551 = vmatpush.msra.mxu0 %v2436
    %2552 = vmatmul.f32.gmra.mxu0 %v172
    %v2553 = vpop.f32.mrf.mxu0
    %v2554 = vadd.f32 %v2531, %v2553
    %2555 = vmatmul.f32.gmra.mxu0 %v174
    %v2556 = vpop.f32.mrf.mxu0
    %v2557 = vadd.f32 %v2534, %v2556
    %2558 = vdwg.mxu0
    %v2559 = vld [vmem:[%s9] sm:$0xff]
    %v2560 = vld [vmem:[%s9 + $0x8] sm:$0xff]
    %v2561 = vld [vmem:[%s9 + $0x10] sm:$0xff]
    %v2562 = vld [vmem:[%s9 + $0x18] sm:$0xff]
    %v2563 = vld [vmem:[%s9 + $0x20] sm:$0xff]
    %v2564 = vld [vmem:[%s9 + $0x28] sm:$0xff]
    %v2565 = vld [vmem:[%s9 + $0x30] sm:$0xff]
    %v2566 = vld [vmem:[%s9 + $0x38] sm:$0xff]
    %v2567 = vld [vmem:[%s9 + $0x40] sm:$0xff]
    %v2568 = vld [vmem:[%s9 + $0x48] sm:$0xff]
    %v2569 = vld [vmem:[%s9 + $0x50] sm:$0xff]
    %v2570 = vld [vmem:[%s9 + $0x58] sm:$0xff]
    %v2571 = vld [vmem:[%s9 + $0x60] sm:$0xff]
    %v2572 = vld [vmem:[%s9 + $0x68] sm:$0xff]
    %v2573 = vld [vmem:[%s9 + $0x70] sm:$0xff]
    %v2574 = vld [vmem:[%s9 + $0x78] sm:$0xff]
    %v2575 = vld [vmem:[%s9 + $0x80] sm:$0xff]
    %v2576 = vld [vmem:[%s9 + $0x88] sm:$0xff]
    %v2577 = vld [vmem:[%s9 + $0x90] sm:$0xff]
    %v2578 = vld [vmem:[%s9 + $0x98] sm:$0xff]
    %v2579 = vld [vmem:[%s9 + $0xa0] sm:$0xff]
    %v2580 = vld [vmem:[%s9 + $0xa8] sm:$0xff]
    %v2581 = vld [vmem:[%s9 + $0xb0] sm:$0xff]
    %v2582 = vld [vmem:[%s9 + $0xb8] sm:$0xff]
    %v2583 = vld [vmem:[%s9 + $0xc0] sm:$0xff]
    %v2584 = vld [vmem:[%s9 + $0xc8] sm:$0xff]
    %v2585 = vld [vmem:[%s9 + $0xd0] sm:$0xff]
    %v2586 = vld [vmem:[%s9 + $0xd8] sm:$0xff]
    %v2587 = vld [vmem:[%s9 + $0xe0] sm:$0xff]
    %v2588 = vld [vmem:[%s9 + $0xe8] sm:$0xff]
    %v2589 = vld [vmem:[%s9 + $0xf0] sm:$0xff]
    %v2590 = vld [vmem:[%s9 + $0xf8] sm:$0xff]
    %v2591 = vld [vmem:[%s10] sm:$0x1]
    %v2593 = vperm.slane %v2591, 0
    %2595 = vmatpush.msra.mxu0 %v2574
    %2596 = vmatpush.msra.mxu0 %v2573
    %2597 = vmatpush.msra.mxu0 %v2572
    %2598 = vmatpush.msra.mxu0 %v2571
    %2599 = vmatpush.msra.mxu0 %v2570
    %2600 = vmatpush.msra.mxu0 %v2569
    %2601 = vmatpush.msra.mxu0 %v2568
    %2602 = vmatpush.msra.mxu0 %v2567
    %2603 = vmatpush.msra.mxu0 %v2566
    %2604 = vmatpush.msra.mxu0 %v2565
    %2605 = vmatpush.msra.mxu0 %v2564
    %2606 = vmatpush.msra.mxu0 %v2563
    %2607 = vmatpush.msra.mxu0 %v2562
    %2608 = vmatpush.msra.mxu0 %v2561
    %2609 = vmatpush.msra.mxu0 %v2560
    %2610 = vmatpush.msra.mxu0 %v2559
    %2611 = vmatmul.f32.gmra.mxu0 %v2508
    %v2612 = vpop.f32.mrf.mxu0
    %v2613 = vadd.f32 %v2593, %v2612
    %2614 = vmatmul.f32.gmra.mxu0 %v2511
    %v2615 = vpop.f32.mrf.mxu0
    %v2616 = vadd.f32 %v2593, %v2615
    %2617 = vdwg.mxu0
    %2618 = vmatpush.msra.mxu0 %v2590
    %2619 = vmatpush.msra.mxu0 %v2589
    %2620 = vmatpush.msra.mxu0 %v2588
    %2621 = vmatpush.msra.mxu0 %v2587
    %2622 = vmatpush.msra.mxu0 %v2586
    %2623 = vmatpush.msra.mxu0 %v2585
    %2624 = vmatpush.msra.mxu0 %v2584
    %2625 = vmatpush.msra.mxu0 %v2583
    %2626 = vmatpush.msra.mxu0 %v2582
    %2627 = vmatpush.msra.mxu0 %v2581
    %2628 = vmatpush.msra.mxu0 %v2580
    %2629 = vmatpush.msra.mxu0 %v2579
    %2630 = vmatpush.msra.mxu0 %v2578
    %2631 = vmatpush.msra.mxu0 %v2577
    %2632 = vmatpush.msra.mxu0 %v2576
    %2633 = vmatpush.msra.mxu0 %v2575
    %2634 = vmatmul.f32.gmra.mxu0 %v2554
    %v2635 = vpop.f32.mrf.mxu0
    %v2636 = vadd.f32 %v2613, %v2635
    %2637 = vmatmul.f32.gmra.mxu0 %v2557
    %v2638 = vpop.f32.mrf.mxu0
    %v2639 = vadd.f32 %v2616, %v2638
    %2640 = vdwg.mxu0
    %v2641 = vmax.f32 %v2636, 0.0
    %v2642 = vmax.f32 %v2639, 0.0
    %v2643 = vadd.f32 %v2641, %v175
    %v2644 = vadd.f32 %v2642, %v176
    %v2645 = vld [vmem:[%s11] sm:$0xff]
    %v2646 = vld [vmem:[%s11 + $0x8] sm:$0xff]
    %v2647 = vld [vmem:[%s11 + $0x10] sm:$0xff]
    %v2648 = vld [vmem:[%s11 + $0x18] sm:$0xff]
    %v2649 = vld [vmem:[%s11 + $0x20] sm:$0xff]
    %v2650 = vld [vmem:[%s11 + $0x28] sm:$0xff]
    %v2651 = vld [vmem:[%s11 + $0x30] sm:$0xff]
    %v2652 = vld [vmem:[%s11 + $0x38] sm:$0xff]
    %v2653 = vld [vmem:[%s11 + $0x40] sm:$0xff]
    %v2654 = vld [vmem:[%s11 + $0x48] sm:$0xff]
    %v2655 = vld [vmem:[%s11 + $0x50] sm:$0xff]
    %v2656 = vld [vmem:[%s11 + $0x58] sm:$0xff]
    %v2657 = vld [vmem:[%s11 + $0x60] sm:$0xff]
    %v2658 = vld [vmem:[%s11 + $0x68] sm:$0xff]
    %v2659 = vld [vmem:[%s11 + $0x70] sm:$0xff]
    %v2660 = vld [vmem:[%s11 + $0x78] sm:$0xff]
    %v2661 = vld [vmem:[%s12] sm:$0xf]
    %v2663 = vperm.slane %v2661, 0
    %v2664 = vperm.slane %v2661, 1
    %v2665 = vperm.slane %v2661, 2
    %v2666 = vperm.slane %v2661, 3
    %v2672 = vsel %vm203, %v2643, 0
    %v2675 = vsel %vm203, %v2644, 0
    %2677 = vmatpush.msra.mxu0 0.0
    %2678 = vmatpush.msra.mxu0 0.0
    %2679 = vmatpush.msra.mxu0 0.0
    %2680 = vmatpush.msra.mxu0 0.0
    %2681 = vmatpush.msra.mxu0 0.0
    %2682 = vmatpush.msra.mxu0 0.0
    %2683 = vmatpush.msra.mxu0 0.0
    %2684 = vmatpush.msra.mxu0 0.0
    %2685 = vmatpush.msra.mxu0 0.0
    %2686 = vmatpush.msra.mxu0 0.0
    %2687 = vmatpush.msra.mxu0 0.0
    %2688 = vmatpush.msra.mxu0 0.0
    %2689 = vmatpush.msra.mxu0 %v2657
    %2690 = vmatpush.msra.mxu0 %v2653
    %2691 = vmatpush.msra.mxu0 %v2649
    %2692 = vmatpush.msra.mxu0 %v2645
    %2693 = vmatmul.f32.gmra.mxu0 %v2672
    %v2694 = vpop.f32.mrf.mxu0
    %v2695 = vadd.f32 %v2663, %v2694
    %2696 = vmatmul.f32.gmra.mxu0 %v2675
    %v2697 = vpop.f32.mrf.mxu0
    %v2698 = vadd.f32 %v2663, %v2697
    %2699 = vdwg.mxu0
    %2700 = vmatpush.msra.mxu0 0.0
    %2701 = vmatpush.msra.mxu0 0.0
    %2702 = vmatpush.msra.mxu0 0.0
    %2703 = vmatpush.msra.mxu0 0.0
    %2704 = vmatpush.msra.mxu0 0.0
    %2705 = vmatpush.msra.mxu0 0.0
    %2706 = vmatpush.msra.mxu0 0.0
    %2707 = vmatpush.msra.mxu0 0.0
    %2708 = vmatpush.msra.mxu0 0.0
    %2709 = vmatpush.msra.mxu0 0.0
    %2710 = vmatpush.msra.mxu0 0.0
    %2711 = vmatpush.msra.mxu0 0.0
    %2712 = vmatpush.msra.mxu0 %v2658
    %2713 = vmatpush.msra.mxu0 %v2654
    %2714 = vmatpush.msra.mxu0 %v2650
    %2715 = vmatpush.msra.mxu0 %v2646
    %2716 = vmatmul.f32.gmra.mxu0 %v2672
    %v2717 = vpop.f32.mrf.mxu0
    %v2718 = vadd.f32 %v2664, %v2717
    %2719 = vmatmul.f32.gmra.mxu0 %v2675
    %v2720 = vpop.f32.mrf.mxu0
    %v2721 = vadd.f32 %v2664, %v2720
    %2722 = vdwg.mxu0
    %2723 = vmatpush.msra.mxu0 0.0
    %2724 = vmatpush.msra.mxu0 0.0
    %2725 = vmatpush.msra.mxu0 0.0
    %2726 = vmatpush.msra.mxu0 0.0
    %2727 = vmatpush.msra.mxu0 0.0
    %2728 = vmatpush.msra.mxu0 0.0
    %2729 = vmatpush.msra.mxu0 0.0
    %2730 = vmatpush.msra.mxu0 0.0
    %2731 = vmatpush.msra.mxu0 0.0
    %2732 = vmatpush.msra.mxu0 0.0
    %2733 = vmatpush.msra.mxu0 0.0
    %2734 = vmatpush.msra.mxu0 0.0
    %2735 = vmatpush.msra.mxu0 %v2659
    %2736 = vmatpush.msra.mxu0 %v2655
    %2737 = vmatpush.msra.mxu0 %v2651
    %2738 = vmatpush.msra.mxu0 %v2647
    %2739 = vmatmul.f32.gmra.mxu0 %v2672
    %v2740 = vpop.f32.mrf.mxu0
    %v2741 = vadd.f32 %v2665, %v2740
    %2742 = vmatmul.f32.gmra.mxu0 %v2675
    %v2743 = vpop.f32.mrf.mxu0
    %v2744 = vadd.f32 %v2665, %v2743
    %2745 = vdwg.mxu0
    %2746 = vmatpush.msra.mxu0 0.0
    %2747 = vmatpush.msra.mxu0 0.0
    %2748 = vmatpush.msra.mxu0 0.0
    %2749 = vmatpush.msra.mxu0 0.0
    %2750 = vmatpush.msra.mxu0 0.0
    %2751 = vmatpush.msra.mxu0 0.0
    %2752 = vmatpush.msra.mxu0 0.0
    %2753 = vmatpush.msra.mxu0 0.0
    %2754 = vmatpush.msra.mxu0 0.0
    %2755 = vmatpush.msra.mxu0 0.0
    %2756 = vmatpush.msra.mxu0 0.0
    %2757 = vmatpush.msra.mxu0 0.0
    %2758 = vmatpush.msra.mxu0 %v2660
    %2759 = vmatpush.msra.mxu0 %v2656
    %2760 = vmatpush.msra.mxu0 %v2652
    %2761 = vmatpush.msra.mxu0 %v2648
    %2762 = vmatmul.f32.gmra.mxu0 %v2672
    %v2763 = vpop.f32.mrf.mxu0
    %v2764 = vadd.f32 %v2666, %v2763
    %2765 = vmatmul.f32.gmra.mxu0 %v2675
    %v2766 = vpop.f32.mrf.mxu0
    %v2767 = vadd.f32 %v2666, %v2766
    %2768 = vdwg.mxu0
    %2769 = vmatpush.msra.mxu0 0.0
    %2770 = vmatpush.msra.mxu0 0.0
    %2771 = vmatpush.msra.mxu0 0.0
    %2772 = vmatpush.msra.mxu0 0.0
    %2773 = vmatpush.msra.mxu0 0.0
    %2774 = vmatpush.msra.mxu0 0.0
    %2775 = vmatpush.msra.mxu0 0.0
    %2776 = vmatpush.msra.mxu0 0.0
    %2777 = vmatpush.msra.mxu0 0.0
    %2778 = vmatpush.msra.mxu0 0.0
    %2779 = vmatpush.msra.mxu0 0.0
    %2780 = vmatpush.msra.mxu0 0.0
    %2781 = vmatpush.msra.mxu0 0.0
    %2782 = vmatpush.msra.mxu0 0.0
    %2783 = vmatpush.msra.mxu0 %v2698
    %2784 = vmatpush.msra.mxu0 %v2695
    %2785 = vmatmul.f32.gmra.mxu0 %v304
    %v2786 = vpop.f32.mrf.mxu0
    %v2787 = vadd.f32 0.0, %v2786
    %2788 = vmatmul.f32.gmra.mxu0 %v307
    %v2789 = vpop.f32.mrf.mxu0
    %v2790 = vadd.f32 0.0, %v2789
    %2791 = vmatmul.f32.gmra.mxu0 %v310
    %v2792 = vpop.f32.mrf.mxu0
    %v2793 = vadd.f32 0.0, %v2792
    %2794 = vmatmul.f32.gmra.mxu0 %v313
    %v2795 = vpop.f32.mrf.mxu0
    %v2796 = vadd.f32 0.0, %v2795
    %2797 = vmatmul.f32.gmra.mxu0 %v316
    %v2798 = vpop.f32.mrf.mxu0
    %v2799 = vadd.f32 0.0, %v2798
    %2800 = vmatmul.f32.gmra.mxu0 %v319
    %v2801 = vpop.f32.mrf.mxu0
    %v2802 = vadd.f32 0.0, %v2801
    %2803 = vmatmul.f32.gmra.mxu0 %v322
    %v2804 = vpop.f32.mrf.mxu0
    %v2805 = vadd.f32 0.0, %v2804
    %2806 = vmatmul.f32.gmra.mxu0 %v325
    %v2807 = vpop.f32.mrf.mxu0
    %v2808 = vadd.f32 0.0, %v2807
    %2809 = vmatmul.f32.gmra.mxu0 %v328
    %v2810 = vpop.f32.mrf.mxu0
    %v2811 = vadd.f32 0.0, %v2810
    %2812 = vmatmul.f32.gmra.mxu0 %v331
    %v2813 = vpop.f32.mrf.mxu0
    %v2814 = vadd.f32 0.0, %v2813
    %2815 = vmatmul.f32.gmra.mxu0 %v334
    %v2816 = vpop.f32.mrf.mxu0
    %v2817 = vadd.f32 0.0, %v2816
    %2818 = vmatmul.f32.gmra.mxu0 %v337
    %v2819 = vpop.f32.mrf.mxu0
    %v2820 = vadd.f32 0.0, %v2819
    %2821 = vmatmul.f32.gmra.mxu0 %v340
    %v2822 = vpop.f32.mrf.mxu0
    %v2823 = vadd.f32 0.0, %v2822
    %2824 = vmatmul.f32.gmra.mxu0 %v343
    %v2825 = vpop.f32.mrf.mxu0
    %v2826 = vadd.f32 0.0, %v2825
    %2827 = vmatmul.f32.gmra.mxu0 %v346
    %v2828 = vpop.f32.mrf.mxu0
    %v2829 = vadd.f32 0.0, %v2828
    %2830 = vmatmul.f32.gmra.mxu0 %v349
    %v2831 = vpop.f32.mrf.mxu0
    %v2832 = vadd.f32 0.0, %v2831
    %2833 = vmatmul.f32.gmra.mxu0 %v352
    %v2834 = vpop.f32.mrf.mxu0
    %v2835 = vadd.f32 0.0, %v2834
    %2836 = vmatmul.f32.gmra.mxu0 %v355
    %v2837 = vpop.f32.mrf.mxu0
    %v2838 = vadd.f32 0.0, %v2837
    %2839 = vmatmul.f32.gmra.mxu0 %v358
    %v2840 = vpop.f32.mrf.mxu0
    %v2841 = vadd.f32 0.0, %v2840
    %2842 = vmatmul.f32.gmra.mxu0 %v361
    %v2843 = vpop.f32.mrf.mxu0
    %v2844 = vadd.f32 0.0, %v2843
    %2845 = vmatmul.f32.gmra.mxu0 %v364
    %v2846 = vpop.f32.mrf.mxu0
    %v2847 = vadd.f32 0.0, %v2846
    %2848 = vmatmul.f32.gmra.mxu0 %v367
    %v2849 = vpop.f32.mrf.mxu0
    %v2850 = vadd.f32 0.0, %v2849
    %2851 = vmatmul.f32.gmra.mxu0 %v370
    %v2852 = vpop.f32.mrf.mxu0
    %v2853 = vadd.f32 0.0, %v2852
    %2854 = vmatmul.f32.gmra.mxu0 %v373
    %v2855 = vpop.f32.mrf.mxu0
    %v2856 = vadd.f32 0.0, %v2855
    %2857 = vmatmul.f32.gmra.mxu0 %v376
    %v2858 = vpop.f32.mrf.mxu0
    %v2859 = vadd.f32 0.0, %v2858
    %2860 = vmatmul.f32.gmra.mxu0 %v379
    %v2861 = vpop.f32.mrf.mxu0
    %v2862 = vadd.f32 0.0, %v2861
    %2863 = vmatmul.f32.gmra.mxu0 %v382
    %v2864 = vpop.f32.mrf.mxu0
    %v2865 = vadd.f32 0.0, %v2864
    %2866 = vmatmul.f32.gmra.mxu0 %v385
    %v2867 = vpop.f32.mrf.mxu0
    %v2868 = vadd.f32 0.0, %v2867
    %2869 = vmatmul.f32.gmra.mxu0 %v388
    %v2870 = vpop.f32.mrf.mxu0
    %v2871 = vadd.f32 0.0, %v2870
    %2872 = vmatmul.f32.gmra.mxu0 %v391
    %v2873 = vpop.f32.mrf.mxu0
    %v2874 = vadd.f32 0.0, %v2873
    %2875 = vmatmul.f32.gmra.mxu0 %v394
    %v2876 = vpop.f32.mrf.mxu0
    %v2877 = vadd.f32 0.0, %v2876
    %2878 = vmatmul.f32.gmra.mxu0 %v397
    %v2879 = vpop.f32.mrf.mxu0
    %v2880 = vadd.f32 0.0, %v2879
    %2881 = vdwg.mxu0
    %2882 = vmatpush.msra.mxu0 0.0
    %2883 = vmatpush.msra.mxu0 0.0
    %2884 = vmatpush.msra.mxu0 0.0
    %2885 = vmatpush.msra.mxu0 0.0
    %2886 = vmatpush.msra.mxu0 0.0
    %2887 = vmatpush.msra.mxu0 0.0
    %2888 = vmatpush.msra.mxu0 0.0
    %2889 = vmatpush.msra.mxu0 0.0
    %2890 = vmatpush.msra.mxu0 0.0
    %2891 = vmatpush.msra.mxu0 0.0
    %2892 = vmatpush.msra.mxu0 0.0
    %2893 = vmatpush.msra.mxu0 0.0
    %2894 = vmatpush.msra.mxu0 0.0
    %2895 = vmatpush.msra.mxu0 0.0
    %2896 = vmatpush.msra.mxu0 %v2721
    %2897 = vmatpush.msra.mxu0 %v2718
    %2898 = vmatmul.f32.gmra.mxu0 %v304
    %v2899 = vpop.f32.mrf.mxu0
    %v2900 = vadd.f32 0.0, %v2899
    %2901 = vmatmul.f32.gmra.mxu0 %v307
    %v2902 = vpop.f32.mrf.mxu0
    %v2903 = vadd.f32 0.0, %v2902
    %2904 = vmatmul.f32.gmra.mxu0 %v310
    %v2905 = vpop.f32.mrf.mxu0
    %v2906 = vadd.f32 0.0, %v2905
    %2907 = vmatmul.f32.gmra.mxu0 %v313
    %v2908 = vpop.f32.mrf.mxu0
    %v2909 = vadd.f32 0.0, %v2908
    %2910 = vmatmul.f32.gmra.mxu0 %v316
    %v2911 = vpop.f32.mrf.mxu0
    %v2912 = vadd.f32 0.0, %v2911
    %2913 = vmatmul.f32.gmra.mxu0 %v319
    %v2914 = vpop.f32.mrf.mxu0
    %v2915 = vadd.f32 0.0, %v2914
    %2916 = vmatmul.f32.gmra.mxu0 %v322
    %v2917 = vpop.f32.mrf.mxu0
    %v2918 = vadd.f32 0.0, %v2917
    %2919 = vmatmul.f32.gmra.mxu0 %v325
    %v2920 = vpop.f32.mrf.mxu0
    %v2921 = vadd.f32 0.0, %v2920
    %2922 = vmatmul.f32.gmra.mxu0 %v328
    %v2923 = vpop.f32.mrf.mxu0
    %v2924 = vadd.f32 0.0, %v2923
    %2925 = vmatmul.f32.gmra.mxu0 %v331
    %v2926 = vpop.f32.mrf.mxu0
    %v2927 = vadd.f32 0.0, %v2926
    %2928 = vmatmul.f32.gmra.mxu0 %v334
    %v2929 = vpop.f32.mrf.mxu0
    %v2930 = vadd.f32 0.0, %v2929
    %2931 = vmatmul.f32.gmra.mxu0 %v337
    %v2932 = vpop.f32.mrf.mxu0
    %v2933 = vadd.f32 0.0, %v2932
    %2934 = vmatmul.f32.gmra.mxu0 %v340
    %v2935 = vpop.f32.mrf.mxu0
    %v2936 = vadd.f32 0.0, %v2935
    %2937 = vmatmul.f32.gmra.mxu0 %v343
    %v2938 = vpop.f32.mrf.mxu0
    %v2939 = vadd.f32 0.0, %v2938
    %2940 = vmatmul.f32.gmra.mxu0 %v346
    %v2941 = vpop.f32.mrf.mxu0
    %v2942 = vadd.f32 0.0, %v2941
    %2943 = vmatmul.f32.gmra.mxu0 %v349
    %v2944 = vpop.f32.mrf.mxu0
    %v2945 = vadd.f32 0.0, %v2944
    %2946 = vmatmul.f32.gmra.mxu0 %v352
    %v2947 = vpop.f32.mrf.mxu0
    %v2948 = vadd.f32 0.0, %v2947
    %2949 = vmatmul.f32.gmra.mxu0 %v355
    %v2950 = vpop.f32.mrf.mxu0
    %v2951 = vadd.f32 0.0, %v2950
    %2952 = vmatmul.f32.gmra.mxu0 %v358
    %v2953 = vpop.f32.mrf.mxu0
    %v2954 = vadd.f32 0.0, %v2953
    %2955 = vmatmul.f32.gmra.mxu0 %v361
    %v2956 = vpop.f32.mrf.mxu0
    %v2957 = vadd.f32 0.0, %v2956
    %2958 = vmatmul.f32.gmra.mxu0 %v364
    %v2959 = vpop.f32.mrf.mxu0
    %v2960 = vadd.f32 0.0, %v2959
    %2961 = vmatmul.f32.gmra.mxu0 %v367
    %v2962 = vpop.f32.mrf.mxu0
    %v2963 = vadd.f32 0.0, %v2962
    %2964 = vmatmul.f32.gmra.mxu0 %v370
    %v2965 = vpop.f32.mrf.mxu0
    %v2966 = vadd.f32 0.0, %v2965
    %2967 = vmatmul.f32.gmra.mxu0 %v373
    %v2968 = vpop.f32.mrf.mxu0
    %v2969 = vadd.f32 0.0, %v2968
    %2970 = vmatmul.f32.gmra.mxu0 %v376
    %v2971 = vpop.f32.mrf.mxu0
    %v2972 = vadd.f32 0.0, %v2971
    %2973 = vmatmul.f32.gmra.mxu0 %v379
    %v2974 = vpop.f32.mrf.mxu0
    %v2975 = vadd.f32 0.0, %v2974
    %2976 = vmatmul.f32.gmra.mxu0 %v382
    %v2977 = vpop.f32.mrf.mxu0
    %v2978 = vadd.f32 0.0, %v2977
    %2979 = vmatmul.f32.gmra.mxu0 %v385
    %v2980 = vpop.f32.mrf.mxu0
    %v2981 = vadd.f32 0.0, %v2980
    %2982 = vmatmul.f32.gmra.mxu0 %v388
    %v2983 = vpop.f32.mrf.mxu0
    %v2984 = vadd.f32 0.0, %v2983
    %2985 = vmatmul.f32.gmra.mxu0 %v391
    %v2986 = vpop.f32.mrf.mxu0
    %v2987 = vadd.f32 0.0, %v2986
    %2988 = vmatmul.f32.gmra.mxu0 %v394
    %v2989 = vpop.f32.mrf.mxu0
    %v2990 = vadd.f32 0.0, %v2989
    %2991 = vmatmul.f32.gmra.mxu0 %v397
    %v2992 = vpop.f32.mrf.mxu0
    %v2993 = vadd.f32 0.0, %v2992
    %2994 = vdwg.mxu0
    %2995 = vmatpush.msra.mxu0 0.0
    %2996 = vmatpush.msra.mxu0 0.0
    %2997 = vmatpush.msra.mxu0 0.0
    %2998 = vmatpush.msra.mxu0 0.0
    %2999 = vmatpush.msra.mxu0 0.0
    %3000 = vmatpush.msra.mxu0 0.0
    %3001 = vmatpush.msra.mxu0 0.0
    %3002 = vmatpush.msra.mxu0 0.0
    %3003 = vmatpush.msra.mxu0 0.0
    %3004 = vmatpush.msra.mxu0 0.0
    %3005 = vmatpush.msra.mxu0 0.0
    %3006 = vmatpush.msra.mxu0 0.0
    %3007 = vmatpush.msra.mxu0 0.0
    %3008 = vmatpush.msra.mxu0 0.0
    %3009 = vmatpush.msra.mxu0 %v2744
    %3010 = vmatpush.msra.mxu0 %v2741
    %3011 = vmatmul.f32.gmra.mxu0 %v626
    %v3012 = vpop.f32.mrf.mxu0
    %v3013 = vadd.f32 %v2787, %v3012
    %3014 = vmatmul.f32.gmra.mxu0 %v629
    %v3015 = vpop.f32.mrf.mxu0
    %v3016 = vadd.f32 %v2790, %v3015
    %3017 = vmatmul.f32.gmra.mxu0 %v632
    %v3018 = vpop.f32.mrf.mxu0
    %v3019 = vadd.f32 %v2793, %v3018
    %3020 = vmatmul.f32.gmra.mxu0 %v635
    %v3021 = vpop.f32.mrf.mxu0
    %v3022 = vadd.f32 %v2796, %v3021
    %3023 = vmatmul.f32.gmra.mxu0 %v638
    %v3024 = vpop.f32.mrf.mxu0
    %v3025 = vadd.f32 %v2799, %v3024
    %3026 = vmatmul.f32.gmra.mxu0 %v641
    %v3027 = vpop.f32.mrf.mxu0
    %v3028 = vadd.f32 %v2802, %v3027
    %3029 = vmatmul.f32.gmra.mxu0 %v644
    %v3030 = vpop.f32.mrf.mxu0
    %v3031 = vadd.f32 %v2805, %v3030
    %3032 = vmatmul.f32.gmra.mxu0 %v647
    %v3033 = vpop.f32.mrf.mxu0
    %v3034 = vadd.f32 %v2808, %v3033
    %3035 = vmatmul.f32.gmra.mxu0 %v650
    %v3036 = vpop.f32.mrf.mxu0
    %v3037 = vadd.f32 %v2811, %v3036
    %3038 = vmatmul.f32.gmra.mxu0 %v653
    %v3039 = vpop.f32.mrf.mxu0
    %v3040 = vadd.f32 %v2814, %v3039
    %3041 = vmatmul.f32.gmra.mxu0 %v656
    %v3042 = vpop.f32.mrf.mxu0
    %v3043 = vadd.f32 %v2817, %v3042
    %3044 = vmatmul.f32.gmra.mxu0 %v659
    %v3045 = vpop.f32.mrf.mxu0
    %v3046 = vadd.f32 %v2820, %v3045
    %3047 = vmatmul.f32.gmra.mxu0 %v662
    %v3048 = vpop.f32.mrf.mxu0
    %v3049 = vadd.f32 %v2823, %v3048
    %3050 = vmatmul.f32.gmra.mxu0 %v665
    %v3051 = vpop.f32.mrf.mxu0
    %v3052 = vadd.f32 %v2826, %v3051
    %3053 = vmatmul.f32.gmra.mxu0 %v668
    %v3054 = vpop.f32.mrf.mxu0
    %v3055 = vadd.f32 %v2829, %v3054
    %3056 = vmatmul.f32.gmra.mxu0 %v671
    %v3057 = vpop.f32.mrf.mxu0
    %v3058 = vadd.f32 %v2832, %v3057
    %3059 = vmatmul.f32.gmra.mxu0 %v674
    %v3060 = vpop.f32.mrf.mxu0
    %v3061 = vadd.f32 %v2835, %v3060
    %3062 = vmatmul.f32.gmra.mxu0 %v677
    %v3063 = vpop.f32.mrf.mxu0
    %v3064 = vadd.f32 %v2838, %v3063
    %3065 = vmatmul.f32.gmra.mxu0 %v680
    %v3066 = vpop.f32.mrf.mxu0
    %v3067 = vadd.f32 %v2841, %v3066
    %3068 = vmatmul.f32.gmra.mxu0 %v683
    %v3069 = vpop.f32.mrf.mxu0
    %v3070 = vadd.f32 %v2844, %v3069
    %3071 = vmatmul.f32.gmra.mxu0 %v686
    %v3072 = vpop.f32.mrf.mxu0
    %v3073 = vadd.f32 %v2847, %v3072
    %3074 = vmatmul.f32.gmra.mxu0 %v689
    %v3075 = vpop.f32.mrf.mxu0
    %v3076 = vadd.f32 %v2850, %v3075
    %3077 = vmatmul.f32.gmra.mxu0 %v692
    %v3078 = vpop.f32.mrf.mxu0
    %v3079 = vadd.f32 %v2853, %v3078
    %3080 = vmatmul.f32.gmra.mxu0 %v695
    %v3081 = vpop.f32.mrf.mxu0
    %v3082 = vadd.f32 %v2856, %v3081
    %3083 = vmatmul.f32.gmra.mxu0 %v698
    %v3084 = vpop.f32.mrf.mxu0
    %v3085 = vadd.f32 %v2859, %v3084
    %3086 = vmatmul.f32.gmra.mxu0 %v701
    %v3087 = vpop.f32.mrf.mxu0
    %v3088 = vadd.f32 %v2862, %v3087
    %3089 = vmatmul.f32.gmra.mxu0 %v704
    %v3090 = vpop.f32.mrf.mxu0
    %v3091 = vadd.f32 %v2865, %v3090
    %3092 = vmatmul.f32.gmra.mxu0 %v707
    %v3093 = vpop.f32.mrf.mxu0
    %v3094 = vadd.f32 %v2868, %v3093
    %3095 = vmatmul.f32.gmra.mxu0 %v710
    %v3096 = vpop.f32.mrf.mxu0
    %v3097 = vadd.f32 %v2871, %v3096
    %3098 = vmatmul.f32.gmra.mxu0 %v713
    %v3099 = vpop.f32.mrf.mxu0
    %v3100 = vadd.f32 %v2874, %v3099
    %3101 = vmatmul.f32.gmra.mxu0 %v716
    %v3102 = vpop.f32.mrf.mxu0
    %v3103 = vadd.f32 %v2877, %v3102
    %3104 = vmatmul.f32.gmra.mxu0 %v719
    %v3105 = vpop.f32.mrf.mxu0
    %v3106 = vadd.f32 %v2880, %v3105
    %3107 = vdwg.mxu0
    %3108 = vmatpush.msra.mxu0 0.0
    %3109 = vmatpush.msra.mxu0 0.0
    %3110 = vmatpush.msra.mxu0 0.0
    %3111 = vmatpush.msra.mxu0 0.0
    %3112 = vmatpush.msra.mxu0 0.0
    %3113 = vmatpush.msra.mxu0 0.0
    %3114 = vmatpush.msra.mxu0 0.0
    %3115 = vmatpush.msra.mxu0 0.0
    %3116 = vmatpush.msra.mxu0 0.0
    %3117 = vmatpush.msra.mxu0 0.0
    %3118 = vmatpush.msra.mxu0 0.0
    %3119 = vmatpush.msra.mxu0 0.0
    %3120 = vmatpush.msra.mxu0 0.0
    %3121 = vmatpush.msra.mxu0 0.0
    %3122 = vmatpush.msra.mxu0 %v2767
    %3123 = vmatpush.msra.mxu0 %v2764
    %3124 = vmatmul.f32.gmra.mxu0 %v626
    %v3125 = vpop.f32.mrf.mxu0
    %v3126 = vadd.f32 %v2900, %v3125
    %3127 = vmatmul.f32.gmra.mxu0 %v629
    %v3128 = vpop.f32.mrf.mxu0
    %v3129 = vadd.f32 %v2903, %v3128
    %3130 = vmatmul.f32.gmra.mxu0 %v632
    %v3131 = vpop.f32.mrf.mxu0
    %v3132 = vadd.f32 %v2906, %v3131
    %3133 = vmatmul.f32.gmra.mxu0 %v635
    %v3134 = vpop.f32.mrf.mxu0
    %v3135 = vadd.f32 %v2909, %v3134
    %3136 = vmatmul.f32.gmra.mxu0 %v638
    %v3137 = vpop.f32.mrf.mxu0
    %v3138 = vadd.f32 %v2912, %v3137
    %3139 = vmatmul.f32.gmra.mxu0 %v641
    %v3140 = vpop.f32.mrf.mxu0
    %v3141 = vadd.f32 %v2915, %v3140
    %3142 = vmatmul.f32.gmra.mxu0 %v644
    %v3143 = vpop.f32.mrf.mxu0
    %v3144 = vadd.f32 %v2918, %v3143
    %3145 = vmatmul.f32.gmra.mxu0 %v647
    %v3146 = vpop.f32.mrf.mxu0
    %v3147 = vadd.f32 %v2921, %v3146
    %3148 = vmatmul.f32.gmra.mxu0 %v650
    %v3149 = vpop.f32.mrf.mxu0
    %v3150 = vadd.f32 %v2924, %v3149
    %3151 = vmatmul.f32.gmra.mxu0 %v653
    %v3152 = vpop.f32.mrf.mxu0
    %v3153 = vadd.f32 %v2927, %v3152
    %3154 = vmatmul.f32.gmra.mxu0 %v656
    %v3155 = vpop.f32.mrf.mxu0
    %v3156 = vadd.f32 %v2930, %v3155
    %3157 = vmatmul.f32.gmra.mxu0 %v659
    %v3158 = vpop.f32.mrf.mxu0
    %v3159 = vadd.f32 %v2933, %v3158
    %3160 = vmatmul.f32.gmra.mxu0 %v662
    %v3161 = vpop.f32.mrf.mxu0
    %v3162 = vadd.f32 %v2936, %v3161
    %3163 = vmatmul.f32.gmra.mxu0 %v665
    %v3164 = vpop.f32.mrf.mxu0
    %v3165 = vadd.f32 %v2939, %v3164
    %3166 = vmatmul.f32.gmra.mxu0 %v668
    %v3167 = vpop.f32.mrf.mxu0
    %v3168 = vadd.f32 %v2942, %v3167
    %3169 = vmatmul.f32.gmra.mxu0 %v671
    %v3170 = vpop.f32.mrf.mxu0
    %v3171 = vadd.f32 %v2945, %v3170
    %3172 = vmatmul.f32.gmra.mxu0 %v674
    %v3173 = vpop.f32.mrf.mxu0
    %v3174 = vadd.f32 %v2948, %v3173
    %3175 = vmatmul.f32.gmra.mxu0 %v677
    %v3176 = vpop.f32.mrf.mxu0
    %v3177 = vadd.f32 %v2951, %v3176
    %3178 = vmatmul.f32.gmra.mxu0 %v680
    %v3179 = vpop.f32.mrf.mxu0
    %v3180 = vadd.f32 %v2954, %v3179
    %3181 = vmatmul.f32.gmra.mxu0 %v683
    %v3182 = vpop.f32.mrf.mxu0
    %v3183 = vadd.f32 %v2957, %v3182
    %3184 = vmatmul.f32.gmra.mxu0 %v686
    %v3185 = vpop.f32.mrf.mxu0
    %v3186 = vadd.f32 %v2960, %v3185
    %3187 = vmatmul.f32.gmra.mxu0 %v689
    %v3188 = vpop.f32.mrf.mxu0
    %v3189 = vadd.f32 %v2963, %v3188
    %3190 = vmatmul.f32.gmra.mxu0 %v692
    %v3191 = vpop.f32.mrf.mxu0
    %v3192 = vadd.f32 %v2966, %v3191
    %3193 = vmatmul.f32.gmra.mxu0 %v695
    %v3194 = vpop.f32.mrf.mxu0
    %v3195 = vadd.f32 %v2969, %v3194
    %3196 = vmatmul.f32.gmra.mxu0 %v698
    %v3197 = vpop.f32.mrf.mxu0
    %v3198 = vadd.f32 %v2972, %v3197
    %3199 = vmatmul.f32.gmra.mxu0 %v701
    %v3200 = vpop.f32.mrf.mxu0
    %v3201 = vadd.f32 %v2975, %v3200
    %3202 = vmatmul.f32.gmra.mxu0 %v704
    %v3203 = vpop.f32.mrf.mxu0
    %v3204 = vadd.f32 %v2978, %v3203
    %3205 = vmatmul.f32.gmra.mxu0 %v707
    %v3206 = vpop.f32.mrf.mxu0
    %v3207 = vadd.f32 %v2981, %v3206
    %3208 = vmatmul.f32.gmra.mxu0 %v710
    %v3209 = vpop.f32.mrf.mxu0
    %v3210 = vadd.f32 %v2984, %v3209
    %3211 = vmatmul.f32.gmra.mxu0 %v713
    %v3212 = vpop.f32.mrf.mxu0
    %v3213 = vadd.f32 %v2987, %v3212
    %3214 = vmatmul.f32.gmra.mxu0 %v716
    %v3215 = vpop.f32.mrf.mxu0
    %v3216 = vadd.f32 %v2990, %v3215
    %3217 = vmatmul.f32.gmra.mxu0 %v719
    %v3218 = vpop.f32.mrf.mxu0
    %v3219 = vadd.f32 %v2993, %v3218
    %3220 = vdwg.mxu0
    %v3221 = vmul.f32 %v3013, 0.2
    %v3222 = vmul.f32 %v3126, 0.2
    %v3223 = vmul.f32 %v3016, 0.2
    %v3224 = vmul.f32 %v3129, 0.2
    %v3225 = vmul.f32 %v3019, 0.2
    %v3226 = vmul.f32 %v3132, 0.2
    %v3227 = vmul.f32 %v3022, 0.2
    %v3228 = vmul.f32 %v3135, 0.2
    %v3229 = vmul.f32 %v3025, 0.2
    %v3230 = vmul.f32 %v3138, 0.2
    %v3231 = vmul.f32 %v3028, 0.2
    %v3232 = vmul.f32 %v3141, 0.2
    %v3233 = vmul.f32 %v3031, 0.2
    %v3234 = vmul.f32 %v3144, 0.2
    %v3235 = vmul.f32 %v3034, 0.2
    %v3236 = vmul.f32 %v3147, 0.2
    %v3237 = vmul.f32 %v3037, 0.2
    %v3238 = vmul.f32 %v3150, 0.2
    %v3239 = vmul.f32 %v3040, 0.2
    %v3240 = vmul.f32 %v3153, 0.2
    %v3241 = vmul.f32 %v3043, 0.2
    %v3242 = vmul.f32 %v3156, 0.2
    %v3243 = vmul.f32 %v3046, 0.2
    %v3244 = vmul.f32 %v3159, 0.2
    %v3245 = vmul.f32 %v3049, 0.2
    %v3246 = vmul.f32 %v3162, 0.2
    %v3247 = vmul.f32 %v3052, 0.2
    %v3248 = vmul.f32 %v3165, 0.2
    %v3249 = vmul.f32 %v3055, 0.2
    %v3250 = vmul.f32 %v3168, 0.2
    %v3251 = vmul.f32 %v3058, 0.2
    %v3252 = vmul.f32 %v3171, 0.2
    %v3253 = vmul.f32 %v3061, 0.2
    %v3254 = vmul.f32 %v3174, 0.2
    %v3255 = vmul.f32 %v3064, 0.2
    %v3256 = vmul.f32 %v3177, 0.2
    %v3257 = vmul.f32 %v3067, 0.2
    %v3258 = vmul.f32 %v3180, 0.2
    %v3259 = vmul.f32 %v3070, 0.2
    %v3260 = vmul.f32 %v3183, 0.2
    %v3261 = vmul.f32 %v3073, 0.2
    %v3262 = vmul.f32 %v3186, 0.2
    %v3263 = vmul.f32 %v3076, 0.2
    %v3264 = vmul.f32 %v3189, 0.2
    %v3265 = vmul.f32 %v3079, 0.2
    %v3266 = vmul.f32 %v3192, 0.2
    %v3267 = vmul.f32 %v3082, 0.2
    %v3268 = vmul.f32 %v3195, 0.2
    %v3269 = vmul.f32 %v3085, 0.2
    %v3270 = vmul.f32 %v3198, 0.2
    %v3271 = vmul.f32 %v3088, 0.2
    %v3272 = vmul.f32 %v3201, 0.2
    %v3273 = vmul.f32 %v3091, 0.2
    %v3274 = vmul.f32 %v3204, 0.2
    %v3275 = vmul.f32 %v3094, 0.2
    %v3276 = vmul.f32 %v3207, 0.2
    %v3277 = vmul.f32 %v3097, 0.2
    %v3278 = vmul.f32 %v3210, 0.2
    %v3279 = vmul.f32 %v3100, 0.2
    %v3280 = vmul.f32 %v3213, 0.2
    %v3281 = vmul.f32 %v3103, 0.2
    %v3282 = vmul.f32 %v3216, 0.2
    %v3283 = vmul.f32 %v3106, 0.2
    %v3284 = vmul.f32 %v3219, 0.2
    %v3285 = vmax.f32 %v3013, %v3221
    %v3286 = vmax.f32 %v3126, %v3222
    %v3287 = vmax.f32 %v3016, %v3223
    %v3288 = vmax.f32 %v3129, %v3224
    %v3289 = vmax.f32 %v3019, %v3225
    %v3290 = vmax.f32 %v3132, %v3226
    %v3291 = vmax.f32 %v3022, %v3227
    %v3292 = vmax.f32 %v3135, %v3228
    %v3293 = vmax.f32 %v3025, %v3229
    %v3294 = vmax.f32 %v3138, %v3230
    %v3295 = vmax.f32 %v3028, %v3231
    %v3296 = vmax.f32 %v3141, %v3232
    %v3297 = vmax.f32 %v3031, %v3233
    %v3298 = vmax.f32 %v3144, %v3234
    %v3299 = vmax.f32 %v3034, %v3235
    %v3300 = vmax.f32 %v3147, %v3236
    %v3301 = vmax.f32 %v3037, %v3237
    %v3302 = vmax.f32 %v3150, %v3238
    %v3303 = vmax.f32 %v3040, %v3239
    %v3304 = vmax.f32 %v3153, %v3240
    %v3305 = vmax.f32 %v3043, %v3241
    %v3306 = vmax.f32 %v3156, %v3242
    %v3307 = vmax.f32 %v3046, %v3243
    %v3308 = vmax.f32 %v3159, %v3244
    %v3309 = vmax.f32 %v3049, %v3245
    %v3310 = vmax.f32 %v3162, %v3246
    %v3311 = vmax.f32 %v3052, %v3247
    %v3312 = vmax.f32 %v3165, %v3248
    %v3313 = vmax.f32 %v3055, %v3249
    %v3314 = vmax.f32 %v3168, %v3250
    %v3315 = vmax.f32 %v3058, %v3251
    %v3316 = vmax.f32 %v3171, %v3252
    %v3317 = vmax.f32 %v3061, %v3253
    %v3318 = vmax.f32 %v3174, %v3254
    %v3319 = vmax.f32 %v3064, %v3255
    %v3320 = vmax.f32 %v3177, %v3256
    %v3321 = vmax.f32 %v3067, %v3257
    %v3322 = vmax.f32 %v3180, %v3258
    %v3323 = vmax.f32 %v3070, %v3259
    %v3324 = vmax.f32 %v3183, %v3260
    %v3325 = vmax.f32 %v3073, %v3261
    %v3326 = vmax.f32 %v3186, %v3262
    %v3327 = vmax.f32 %v3076, %v3263
    %v3328 = vmax.f32 %v3189, %v3264
    %v3329 = vmax.f32 %v3079, %v3265
    %v3330 = vmax.f32 %v3192, %v3266
    %v3331 = vmax.f32 %v3082, %v3267
    %v3332 = vmax.f32 %v3195, %v3268
    %v3333 = vmax.f32 %v3085, %v3269
    %v3334 = vmax.f32 %v3198, %v3270
    %v3335 = vmax.f32 %v3088, %v3271
    %v3336 = vmax.f32 %v3201, %v3272
    %v3337 = vmax.f32 %v3091, %v3273
    %v3338 = vmax.f32 %v3204, %v3274
    %v3339 = vmax.f32 %v3094, %v3275
    %v3340 = vmax.f32 %v3207, %v3276
    %v3341 = vmax.f32 %v3097, %v3277
    %v3342 = vmax.f32 %v3210, %v3278
    %v3343 = vmax.f32 %v3100, %v3279
    %v3344 = vmax.f32 %v3213, %v3280
    %v3345 = vmax.f32 %v3103, %v3281
    %v3346 = vmax.f32 %v3216, %v3282
    %v3347 = vmax.f32 %v3106, %v3283
    %v3348 = vmax.f32 %v3219, %v3284
    %v3349 = vld [vmem:[%s13] sm:$0xff]
    %v3350 = vld [vmem:[%s13 + $0x8] sm:$0xff]
    %v3351 = vld [vmem:[%s13 + $0x10] sm:$0xff]
    %v3352 = vld [vmem:[%s13 + $0x18] sm:$0xff]
    %v3353 = vld [vmem:[%s13 + $0x20] sm:$0xff]
    %v3354 = vld [vmem:[%s13 + $0x28] sm:$0xff]
    %v3355 = vld [vmem:[%s13 + $0x30] sm:$0xff]
    %v3356 = vld [vmem:[%s13 + $0x38] sm:$0xff]
    %v3357 = vld [vmem:[%s13 + $0x40] sm:$0xff]
    %v3358 = vld [vmem:[%s13 + $0x48] sm:$0xff]
    %v3359 = vld [vmem:[%s13 + $0x50] sm:$0xff]
    %v3360 = vld [vmem:[%s13 + $0x58] sm:$0xff]
    %v3361 = vld [vmem:[%s13 + $0x60] sm:$0xff]
    %v3362 = vld [vmem:[%s13 + $0x68] sm:$0xff]
    %v3363 = vld [vmem:[%s13 + $0x70] sm:$0xff]
    %v3364 = vld [vmem:[%s13 + $0x78] sm:$0xff]
    %v3365 = vld [vmem:[%s13 + $0x80] sm:$0xff]
    %v3366 = vld [vmem:[%s13 + $0x88] sm:$0xff]
    %v3367 = vld [vmem:[%s13 + $0x90] sm:$0xff]
    %v3368 = vld [vmem:[%s13 + $0x98] sm:$0xff]
    %v3369 = vld [vmem:[%s13 + $0xa0] sm:$0xff]
    %v3370 = vld [vmem:[%s13 + $0xa8] sm:$0xff]
    %v3371 = vld [vmem:[%s13 + $0xb0] sm:$0xff]
    %v3372 = vld [vmem:[%s13 + $0xb8] sm:$0xff]
    %v3373 = vld [vmem:[%s13 + $0xc0] sm:$0xff]
    %v3374 = vld [vmem:[%s13 + $0xc8] sm:$0xff]
    %v3375 = vld [vmem:[%s13 + $0xd0] sm:$0xff]
    %v3376 = vld [vmem:[%s13 + $0xd8] sm:$0xff]
    %v3377 = vld [vmem:[%s13 + $0xe0] sm:$0xff]
    %v3378 = vld [vmem:[%s13 + $0xe8] sm:$0xff]
    %v3379 = vld [vmem:[%s13 + $0xf0] sm:$0xff]
    %v3380 = vld [vmem:[%s13 + $0xf8] sm:$0xff]
    %3381 = vmatpush.msra.mxu0 %v3364
    %3382 = vmatpush.msra.mxu0 %v3363
    %3383 = vmatpush.msra.mxu0 %v3362
    %3384 = vmatpush.msra.mxu0 %v3361
    %3385 = vmatpush.msra.mxu0 %v3360
    %3386 = vmatpush.msra.mxu0 %v3359
    %3387 = vmatpush.msra.mxu0 %v3358
    %3388 = vmatpush.msra.mxu0 %v3357
    %3389 = vmatpush.msra.mxu0 %v3356
    %3390 = vmatpush.msra.mxu0 %v3355
    %3391 = vmatpush.msra.mxu0 %v3354
    %3392 = vmatpush.msra.mxu0 %v3353
    %3393 = vmatpush.msra.mxu0 %v3352
    %3394 = vmatpush.msra.mxu0 %v3351
    %3395 = vmatpush.msra.mxu0 %v3350
    %3396 = vmatpush.msra.mxu0 %v3349
    %3397 = vmatmul.f32.gmra.mxu0 %v3285
    %v3398 = vpop.f32.mrf.mxu0
    %v3399 = vadd.f32 %v1110, %v3398
    %3400 = vmatmul.f32.gmra.mxu0 %v3287
    %v3401 = vpop.f32.mrf.mxu0
    %v3402 = vadd.f32 %v1115, %v3401
    %3403 = vmatmul.f32.gmra.mxu0 %v3289
    %v3404 = vpop.f32.mrf.mxu0
    %v3405 = vadd.f32 %v1120, %v3404
    %3406 = vmatmul.f32.gmra.mxu0 %v3291
    %v3407 = vpop.f32.mrf.mxu0
    %v3408 = vadd.f32 %v1125, %v3407
    %3409 = vmatmul.f32.gmra.mxu0 %v3293
    %v3410 = vpop.f32.mrf.mxu0
    %v3411 = vadd.f32 %v1130, %v3410
    %3412 = vmatmul.f32.gmra.mxu0 %v3295
    %v3413 = vpop.f32.mrf.mxu0
    %v3414 = vadd.f32 %v1135, %v3413
    %3415 = vmatmul.f32.gmra.mxu0 %v3297
    %v3416 = vpop.f32.mrf.mxu0
    %v3417 = vadd.f32 %v1140, %v3416
    %3418 = vmatmul.f32.gmra.mxu0 %v3299
    %v3419 = vpop.f32.mrf.mxu0
    %v3420 = vadd.f32 %v1145, %v3419
    %3421 = vmatmul.f32.gmra.mxu0 %v3301
    %v3422 = vpop.f32.mrf.mxu0
    %v3423 = vadd.f32 %v1150, %v3422
    %3424 = vmatmul.f32.gmra.mxu0 %v3303
    %v3425 = vpop.f32.mrf.mxu0
    %v3426 = vadd.f32 %v1155, %v3425
    %3427 = vmatmul.f32.gmra.mxu0 %v3305
    %v3428 = vpop.f32.mrf.mxu0
    %v3429 = vadd.f32 %v1160, %v3428
    %3430 = vmatmul.f32.gmra.mxu0 %v3307
    %v3431 = vpop.f32.mrf.mxu0
    %v3432 = vadd.f32 %v1165, %v3431
    %3433 = vmatmul.f32.gmra.mxu0 %v3309
    %v3434 = vpop.f32.mrf.mxu0
    %v3435 = vadd.f32 %v1170, %v3434
    %3436 = vmatmul.f32.gmra.mxu0 %v3311
    %v3437 = vpop.f32.mrf.mxu0
    %v3438 = vadd.f32 %v1175, %v3437
    %3439 = vmatmul.f32.gmra.mxu0 %v3313
    %v3440 = vpop.f32.mrf.mxu0
    %v3441 = vadd.f32 %v1180, %v3440
    %3442 = vmatmul.f32.gmra.mxu0 %v3315
    %v3443 = vpop.f32.mrf.mxu0
    %v3444 = vadd.f32 %v1185, %v3443
    %3445 = vmatmul.f32.gmra.mxu0 %v3317
    %v3446 = vpop.f32.mrf.mxu0
    %v3447 = vadd.f32 %v1190, %v3446
    %3448 = vmatmul.f32.gmra.mxu0 %v3319
    %v3449 = vpop.f32.mrf.mxu0
    %v3450 = vadd.f32 %v1195, %v3449
    %3451 = vmatmul.f32.gmra.mxu0 %v3321
    %v3452 = vpop.f32.mrf.mxu0
    %v3453 = vadd.f32 %v1200, %v3452
    %3454 = vmatmul.f32.gmra.mxu0 %v3323
    %v3455 = vpop.f32.mrf.mxu0
    %v3456 = vadd.f32 %v1205, %v3455
    %3457 = vmatmul.f32.gmra.mxu0 %v3325
    %v3458 = vpop.f32.mrf.mxu0
    %v3459 = vadd.f32 %v1210, %v3458
    %3460 = vmatmul.f32.gmra.mxu0 %v3327
    %v3461 = vpop.f32.mrf.mxu0
    %v3462 = vadd.f32 %v1215, %v3461
    %3463 = vmatmul.f32.gmra.mxu0 %v3329
    %v3464 = vpop.f32.mrf.mxu0
    %v3465 = vadd.f32 %v1220, %v3464
    %3466 = vmatmul.f32.gmra.mxu0 %v3331
    %v3467 = vpop.f32.mrf.mxu0
    %v3468 = vadd.f32 %v1225, %v3467
    %3469 = vmatmul.f32.gmra.mxu0 %v3333
    %v3470 = vpop.f32.mrf.mxu0
    %v3471 = vadd.f32 %v1230, %v3470
    %3472 = vmatmul.f32.gmra.mxu0 %v3335
    %v3473 = vpop.f32.mrf.mxu0
    %v3474 = vadd.f32 %v1235, %v3473
    %3475 = vmatmul.f32.gmra.mxu0 %v3337
    %v3476 = vpop.f32.mrf.mxu0
    %v3477 = vadd.f32 %v1240, %v3476
    %3478 = vmatmul.f32.gmra.mxu0 %v3339
    %v3479 = vpop.f32.mrf.mxu0
    %v3480 = vadd.f32 %v1245, %v3479
    %3481 = vmatmul.f32.gmra.mxu0 %v3341
    %v3482 = vpop.f32.mrf.mxu0
    %v3483 = vadd.f32 %v1250, %v3482
    %3484 = vmatmul.f32.gmra.mxu0 %v3343
    %v3485 = vpop.f32.mrf.mxu0
    %v3486 = vadd.f32 %v1255, %v3485
    %3487 = vmatmul.f32.gmra.mxu0 %v3345
    %v3488 = vpop.f32.mrf.mxu0
    %v3489 = vadd.f32 %v1260, %v3488
    %3490 = vmatmul.f32.gmra.mxu0 %v3347
    %v3491 = vpop.f32.mrf.mxu0
    %v3492 = vadd.f32 %v1265, %v3491
    %3493 = vdwg.mxu0
    %3494 = vmatpush.msra.mxu0 %v3380
    %3495 = vmatpush.msra.mxu0 %v3379
    %3496 = vmatpush.msra.mxu0 %v3378
    %3497 = vmatpush.msra.mxu0 %v3377
    %3498 = vmatpush.msra.mxu0 %v3376
    %3499 = vmatpush.msra.mxu0 %v3375
    %3500 = vmatpush.msra.mxu0 %v3374
    %3501 = vmatpush.msra.mxu0 %v3373
    %3502 = vmatpush.msra.mxu0 %v3372
    %3503 = vmatpush.msra.mxu0 %v3371
    %3504 = vmatpush.msra.mxu0 %v3370
    %3505 = vmatpush.msra.mxu0 %v3369
    %3506 = vmatpush.msra.mxu0 %v3368
    %3507 = vmatpush.msra.mxu0 %v3367
    %3508 = vmatpush.msra.mxu0 %v3366
    %3509 = vmatpush.msra.mxu0 %v3365
    %3510 = vmatmul.f32.gmra.mxu0 %v3286
    %v3511 = vpop.f32.mrf.mxu0
    %v3512 = vadd.f32 %v3399, %v3511
    %3513 = vmatmul.f32.gmra.mxu0 %v3288
    %v3514 = vpop.f32.mrf.mxu0
    %v3515 = vadd.f32 %v3402, %v3514
    %3516 = vmatmul.f32.gmra.mxu0 %v3290
    %v3517 = vpop.f32.mrf.mxu0
    %v3518 = vadd.f32 %v3405, %v3517
    %3519 = vmatmul.f32.gmra.mxu0 %v3292
    %v3520 = vpop.f32.mrf.mxu0
    %v3521 = vadd.f32 %v3408, %v3520
    %3522 = vmatmul.f32.gmra.mxu0 %v3294
    %v3523 = vpop.f32.mrf.mxu0
    %v3524 = vadd.f32 %v3411, %v3523
    %3525 = vmatmul.f32.gmra.mxu0 %v3296
    %v3526 = vpop.f32.mrf.mxu0
    %v3527 = vadd.f32 %v3414, %v3526
    %3528 = vmatmul.f32.gmra.mxu0 %v3298
    %v3529 = vpop.f32.mrf.mxu0
    %v3530 = vadd.f32 %v3417, %v3529
    %3531 = vmatmul.f32.gmra.mxu0 %v3300
    %v3532 = vpop.f32.mrf.mxu0
    %v3533 = vadd.f32 %v3420, %v3532
    %3534 = vmatmul.f32.gmra.mxu0 %v3302
    %v3535 = vpop.f32.mrf.mxu0
    %v3536 = vadd.f32 %v3423, %v3535
    %3537 = vmatmul.f32.gmra.mxu0 %v3304
    %v3538 = vpop.f32.mrf.mxu0
    %v3539 = vadd.f32 %v3426, %v3538
    %3540 = vmatmul.f32.gmra.mxu0 %v3306
    %v3541 = vpop.f32.mrf.mxu0
    %v3542 = vadd.f32 %v3429, %v3541
    %3543 = vmatmul.f32.gmra.mxu0 %v3308
    %v3544 = vpop.f32.mrf.mxu0
    %v3545 = vadd.f32 %v3432, %v3544
    %3546 = vmatmul.f32.gmra.mxu0 %v3310
    %v3547 = vpop.f32.mrf.mxu0
    %v3548 = vadd.f32 %v3435, %v3547
    %3549 = vmatmul.f32.gmra.mxu0 %v3312
    %v3550 = vpop.f32.mrf.mxu0
    %v3551 = vadd.f32 %v3438, %v3550
    %3552 = vmatmul.f32.gmra.mxu0 %v3314
    %v3553 = vpop.f32.mrf.mxu0
    %v3554 = vadd.f32 %v3441, %v3553
    %3555 = vmatmul.f32.gmra.mxu0 %v3316
    %v3556 = vpop.f32.mrf.mxu0
    %v3557 = vadd.f32 %v3444, %v3556
    %3558 = vmatmul.f32.gmra.mxu0 %v3318
    %v3559 = vpop.f32.mrf.mxu0
    %v3560 = vadd.f32 %v3447, %v3559
    %3561 = vmatmul.f32.gmra.mxu0 %v3320
    %v3562 = vpop.f32.mrf.mxu0
    %v3563 = vadd.f32 %v3450, %v3562
    %3564 = vmatmul.f32.gmra.mxu0 %v3322
    %v3565 = vpop.f32.mrf.mxu0
    %v3566 = vadd.f32 %v3453, %v3565
    %3567 = vmatmul.f32.gmra.mxu0 %v3324
    %v3568 = vpop.f32.mrf.mxu0
    %v3569 = vadd.f32 %v3456, %v3568
    %3570 = vmatmul.f32.gmra.mxu0 %v3326
    %v3571 = vpop.f32.mrf.mxu0
    %v3572 = vadd.f32 %v3459, %v3571
    %3573 = vmatmul.f32.gmra.mxu0 %v3328
    %v3574 = vpop.f32.mrf.mxu0
    %v3575 = vadd.f32 %v3462, %v3574
    %3576 = vmatmul.f32.gmra.mxu0 %v3330
    %v3577 = vpop.f32.mrf.mxu0
    %v3578 = vadd.f32 %v3465, %v3577
    %3579 = vmatmul.f32.gmra.mxu0 %v3332
    %v3580 = vpop.f32.mrf.mxu0
    %v3581 = vadd.f32 %v3468, %v3580
    %3582 = vmatmul.f32.gmra.mxu0 %v3334
    %v3583 = vpop.f32.mrf.mxu0
    %v3584 = vadd.f32 %v3471, %v3583
    %3585 = vmatmul.f32.gmra.mxu0 %v3336
    %v3586 = vpop.f32.mrf.mxu0
    %v3587 = vadd.f32 %v3474, %v3586
    %3588 = vmatmul.f32.gmra.mxu0 %v3338
    %v3589 = vpop.f32.mrf.mxu0
    %v3590 = vadd.f32 %v3477, %v3589
    %3591 = vmatmul.f32.gmra.mxu0 %v3340
    %v3592 = vpop.f32.mrf.mxu0
    %v3593 = vadd.f32 %v3480, %v3592
    %3594 = vmatmul.f32.gmra.mxu0 %v3342
    %v3595 = vpop.f32.mrf.mxu0
    %v3596 = vadd.f32 %v3483, %v3595
    %3597 = vmatmul.f32.gmra.mxu0 %v3344
    %v3598 = vpop.f32.mrf.mxu0
    %v3599 = vadd.f32 %v3486, %v3598
    %3600 = vmatmul.f32.gmra.mxu0 %v3346
    %v3601 = vpop.f32.mrf.mxu0
    %v3602 = vadd.f32 %v3489, %v3601
    %3603 = vmatmul.f32.gmra.mxu0 %v3348
    %v3604 = vpop.f32.mrf.mxu0
    %v3605 = vadd.f32 %v3492, %v3604
    %3606 = vdwg.mxu0
    %v3607 = vsel %vm1493, %v3512, -inf
    %v3608 = vsel %vm1493, %v3515, -inf
    %v3609 = vmax.f32 %v3607, %v3608
    %v3610 = vrot.slane %v3609, 4
    %v3611 = vmax.f32 %v3609, %v3610
    %v3612 = vrot.slane %v3611, 2
    %v3613 = vmax.f32 %v3611, %v3612
    %v3614 = vrot.slane %v3613, 1
    %v3615 = vmax.f32 %v3613, %v3614
    %v3616 = vsel %vm1493, %v3518, -inf
    %v3617 = vsel %vm1493, %v3521, -inf
    %v3618 = vmax.f32 %v3616, %v3617
    %v3619 = vrot.slane %v3618, 4
    %v3620 = vmax.f32 %v3618, %v3619
    %v3621 = vrot.slane %v3620, 2
    %v3622 = vmax.f32 %v3620, %v3621
    %v3623 = vrot.slane %v3622, 1
    %v3624 = vmax.f32 %v3622, %v3623
    %v3625 = vsel %vm1493, %v3524, -inf
    %v3626 = vsel %vm1493, %v3527, -inf
    %v3627 = vmax.f32 %v3625, %v3626
    %v3628 = vrot.slane %v3627, 4
    %v3629 = vmax.f32 %v3627, %v3628
    %v3630 = vrot.slane %v3629, 2
    %v3631 = vmax.f32 %v3629, %v3630
    %v3632 = vrot.slane %v3631, 1
    %v3633 = vmax.f32 %v3631, %v3632
    %v3634 = vsel %vm1493, %v3530, -inf
    %v3635 = vsel %vm1493, %v3533, -inf
    %v3636 = vmax.f32 %v3634, %v3635
    %v3637 = vrot.slane %v3636, 4
    %v3638 = vmax.f32 %v3636, %v3637
    %v3639 = vrot.slane %v3638, 2
    %v3640 = vmax.f32 %v3638, %v3639
    %v3641 = vrot.slane %v3640, 1
    %v3642 = vmax.f32 %v3640, %v3641
    %v3643 = vsel %vm1493, %v3536, -inf
    %v3644 = vsel %vm1493, %v3539, -inf
    %v3645 = vmax.f32 %v3643, %v3644
    %v3646 = vrot.slane %v3645, 4
    %v3647 = vmax.f32 %v3645, %v3646
    %v3648 = vrot.slane %v3647, 2
    %v3649 = vmax.f32 %v3647, %v3648
    %v3650 = vrot.slane %v3649, 1
    %v3651 = vmax.f32 %v3649, %v3650
    %v3652 = vsel %vm1493, %v3542, -inf
    %v3653 = vsel %vm1493, %v3545, -inf
    %v3654 = vmax.f32 %v3652, %v3653
    %v3655 = vrot.slane %v3654, 4
    %v3656 = vmax.f32 %v3654, %v3655
    %v3657 = vrot.slane %v3656, 2
    %v3658 = vmax.f32 %v3656, %v3657
    %v3659 = vrot.slane %v3658, 1
    %v3660 = vmax.f32 %v3658, %v3659
    %v3661 = vsel %vm1493, %v3548, -inf
    %v3662 = vsel %vm1493, %v3551, -inf
    %v3663 = vmax.f32 %v3661, %v3662
    %v3664 = vrot.slane %v3663, 4
    %v3665 = vmax.f32 %v3663, %v3664
    %v3666 = vrot.slane %v3665, 2
    %v3667 = vmax.f32 %v3665, %v3666
    %v3668 = vrot.slane %v3667, 1
    %v3669 = vmax.f32 %v3667, %v3668
    %v3670 = vsel %vm1493, %v3554, -inf
    %v3671 = vsel %vm1493, %v3557, -inf
    %v3672 = vmax.f32 %v3670, %v3671
    %v3673 = vrot.slane %v3672, 4
    %v3674 = vmax.f32 %v3672, %v3673
    %v3675 = vrot.slane %v3674, 2
    %v3676 = vmax.f32 %v3674, %v3675
    %v3677 = vrot.slane %v3676, 1
    %v3678 = vmax.f32 %v3676, %v3677
    %v3679 = vsel %vm1493, %v3560, -inf
    %v3680 = vsel %vm1493, %v3563, -inf
    %v3681 = vmax.f32 %v3679, %v3680
    %v3682 = vrot.slane %v3681, 4
    %v3683 = vmax.f32 %v3681, %v3682
    %v3684 = vrot.slane %v3683, 2
    %v3685 = vmax.f32 %v3683, %v3684
    %v3686 = vrot.slane %v3685, 1
    %v3687 = vmax.f32 %v3685, %v3686
    %v3688 = vsel %vm1493, %v3566, -inf
    %v3689 = vsel %vm1493, %v3569, -inf
    %v3690 = vmax.f32 %v3688, %v3689
    %v3691 = vrot.slane %v3690, 4
    %v3692 = vmax.f32 %v3690, %v3691
    %v3693 = vrot.slane %v3692, 2
    %v3694 = vmax.f32 %v3692, %v3693
    %v3695 = vrot.slane %v3694, 1
    %v3696 = vmax.f32 %v3694, %v3695
    %v3697 = vsel %vm1493, %v3572, -inf
    %v3698 = vsel %vm1493, %v3575, -inf
    %v3699 = vmax.f32 %v3697, %v3698
    %v3700 = vrot.slane %v3699, 4
    %v3701 = vmax.f32 %v3699, %v3700
    %v3702 = vrot.slane %v3701, 2
    %v3703 = vmax.f32 %v3701, %v3702
    %v3704 = vrot.slane %v3703, 1
    %v3705 = vmax.f32 %v3703, %v3704
    %v3706 = vsel %vm1493, %v3578, -inf
    %v3707 = vsel %vm1493, %v3581, -inf
    %v3708 = vmax.f32 %v3706, %v3707
    %v3709 = vrot.slane %v3708, 4
    %v3710 = vmax.f32 %v3708, %v3709
    %v3711 = vrot.slane %v3710, 2
    %v3712 = vmax.f32 %v3710, %v3711
    %v3713 = vrot.slane %v3712, 1
    %v3714 = vmax.f32 %v3712, %v3713
    %v3715 = vsel %vm1493, %v3584, -inf
    %v3716 = vsel %vm1493, %v3587, -inf
    %v3717 = vmax.f32 %v3715, %v3716
    %v3718 = vrot.slane %v3717, 4
    %v3719 = vmax.f32 %v3717, %v3718
    %v3720 = vrot.slane %v3719, 2
    %v3721 = vmax.f32 %v3719, %v3720
    %v3722 = vrot.slane %v3721, 1
    %v3723 = vmax.f32 %v3721, %v3722
    %v3724 = vsel %vm1493, %v3590, -inf
    %v3725 = vsel %vm1493, %v3593, -inf
    %v3726 = vmax.f32 %v3724, %v3725
    %v3727 = vrot.slane %v3726, 4
    %v3728 = vmax.f32 %v3726, %v3727
    %v3729 = vrot.slane %v3728, 2
    %v3730 = vmax.f32 %v3728, %v3729
    %v3731 = vrot.slane %v3730, 1
    %v3732 = vmax.f32 %v3730, %v3731
    %v3733 = vsel %vm1493, %v3596, -inf
    %v3734 = vsel %vm1493, %v3599, -inf
    %v3735 = vmax.f32 %v3733, %v3734
    %v3736 = vrot.slane %v3735, 4
    %v3737 = vmax.f32 %v3735, %v3736
    %v3738 = vrot.slane %v3737, 2
    %v3739 = vmax.f32 %v3737, %v3738
    %v3740 = vrot.slane %v3739, 1
    %v3741 = vmax.f32 %v3739, %v3740
    %v3742 = vsel %vm1493, %v3602, -inf
    %v3743 = vsel %vm1493, %v3605, -inf
    %v3744 = vmax.f32 %v3742, %v3743
    %v3745 = vrot.slane %v3744, 4
    %v3746 = vmax.f32 %v3744, %v3745
    %v3747 = vrot.slane %v3746, 2
    %v3748 = vmax.f32 %v3746, %v3747
    %v3749 = vrot.slane %v3748, 1
    %v3750 = vmax.f32 %v3748, %v3749
    %v3767 = vsel %vm1654, %v3624, %v3615
    %v3768 = vsel %vm1656, %v3633, %v3767
    %v3769 = vsel %vm1658, %v3642, %v3768
    %v3770 = vsel %vm1660, %v3651, %v3769
    %v3771 = vsel %vm1662, %v3660, %v3770
    %v3772 = vsel %vm1664, %v3669, %v3771
    %v3773 = vsel %vm1666, %v3678, %v3772
    %v3774 = vsel %vm1654, %v3696, %v3687
    %v3775 = vsel %vm1656, %v3705, %v3774
    %v3776 = vsel %vm1658, %v3714, %v3775
    %v3777 = vsel %vm1660, %v3723, %v3776
    %v3778 = vsel %vm1662, %v3732, %v3777
    %v3779 = vsel %vm1664, %v3741, %v3778
    %v3780 = vsel %vm1666, %v3750, %v3779
    %3783 = vmatpush.msra.mxu0 0.0
    %3784 = vmatpush.msra.mxu0 0.0
    %3785 = vmatpush.msra.mxu0 0.0
    %3786 = vmatpush.msra.mxu0 0.0
    %3787 = vmatpush.msra.mxu0 0.0
    %3788 = vmatpush.msra.mxu0 0.0
    %3789 = vmatpush.msra.mxu0 0.0
    %3790 = vmatpush.msra.mxu0 0.0
    %3791 = vmatpush.msra.mxu0 0.0
    %3792 = vmatpush.msra.mxu0 0.0
    %3793 = vmatpush.msra.mxu0 0.0
    %3794 = vmatpush.msra.mxu0 0.0
    %3795 = vmatpush.msra.mxu0 0.0
    %3796 = vmatpush.msra.mxu0 0.0
    %3797 = vmatpush.msra.mxu0 %v3780
    %3798 = vmatpush.msra.mxu0 %v3773
    %3799 = vmatmul.f32.gmra.mxu0 %v626
    %v3800 = vpop.f32.mrf.mxu0
    %v3801 = vadd.f32 0.0, %v3800
    %3802 = vmatmul.f32.gmra.mxu0 %v629
    %v3803 = vpop.f32.mrf.mxu0
    %v3804 = vadd.f32 0.0, %v3803
    %3805 = vmatmul.f32.gmra.mxu0 %v632
    %v3806 = vpop.f32.mrf.mxu0
    %v3807 = vadd.f32 0.0, %v3806
    %3808 = vmatmul.f32.gmra.mxu0 %v635
    %v3809 = vpop.f32.mrf.mxu0
    %v3810 = vadd.f32 0.0, %v3809
    %3811 = vmatmul.f32.gmra.mxu0 %v638
    %v3812 = vpop.f32.mrf.mxu0
    %v3813 = vadd.f32 0.0, %v3812
    %3814 = vmatmul.f32.gmra.mxu0 %v641
    %v3815 = vpop.f32.mrf.mxu0
    %v3816 = vadd.f32 0.0, %v3815
    %3817 = vmatmul.f32.gmra.mxu0 %v644
    %v3818 = vpop.f32.mrf.mxu0
    %v3819 = vadd.f32 0.0, %v3818
    %3820 = vmatmul.f32.gmra.mxu0 %v647
    %v3821 = vpop.f32.mrf.mxu0
    %v3822 = vadd.f32 0.0, %v3821
    %3823 = vmatmul.f32.gmra.mxu0 %v650
    %v3824 = vpop.f32.mrf.mxu0
    %v3825 = vadd.f32 0.0, %v3824
    %3826 = vmatmul.f32.gmra.mxu0 %v653
    %v3827 = vpop.f32.mrf.mxu0
    %v3828 = vadd.f32 0.0, %v3827
    %3829 = vmatmul.f32.gmra.mxu0 %v656
    %v3830 = vpop.f32.mrf.mxu0
    %v3831 = vadd.f32 0.0, %v3830
    %3832 = vmatmul.f32.gmra.mxu0 %v659
    %v3833 = vpop.f32.mrf.mxu0
    %v3834 = vadd.f32 0.0, %v3833
    %3835 = vmatmul.f32.gmra.mxu0 %v662
    %v3836 = vpop.f32.mrf.mxu0
    %v3837 = vadd.f32 0.0, %v3836
    %3838 = vmatmul.f32.gmra.mxu0 %v665
    %v3839 = vpop.f32.mrf.mxu0
    %v3840 = vadd.f32 0.0, %v3839
    %3841 = vmatmul.f32.gmra.mxu0 %v668
    %v3842 = vpop.f32.mrf.mxu0
    %v3843 = vadd.f32 0.0, %v3842
    %3844 = vmatmul.f32.gmra.mxu0 %v671
    %v3845 = vpop.f32.mrf.mxu0
    %v3846 = vadd.f32 0.0, %v3845
    %3847 = vmatmul.f32.gmra.mxu0 %v674
    %v3848 = vpop.f32.mrf.mxu0
    %v3849 = vadd.f32 0.0, %v3848
    %3850 = vmatmul.f32.gmra.mxu0 %v677
    %v3851 = vpop.f32.mrf.mxu0
    %v3852 = vadd.f32 0.0, %v3851
    %3853 = vmatmul.f32.gmra.mxu0 %v680
    %v3854 = vpop.f32.mrf.mxu0
    %v3855 = vadd.f32 0.0, %v3854
    %3856 = vmatmul.f32.gmra.mxu0 %v683
    %v3857 = vpop.f32.mrf.mxu0
    %v3858 = vadd.f32 0.0, %v3857
    %3859 = vmatmul.f32.gmra.mxu0 %v686
    %v3860 = vpop.f32.mrf.mxu0
    %v3861 = vadd.f32 0.0, %v3860
    %3862 = vmatmul.f32.gmra.mxu0 %v689
    %v3863 = vpop.f32.mrf.mxu0
    %v3864 = vadd.f32 0.0, %v3863
    %3865 = vmatmul.f32.gmra.mxu0 %v692
    %v3866 = vpop.f32.mrf.mxu0
    %v3867 = vadd.f32 0.0, %v3866
    %3868 = vmatmul.f32.gmra.mxu0 %v695
    %v3869 = vpop.f32.mrf.mxu0
    %v3870 = vadd.f32 0.0, %v3869
    %3871 = vmatmul.f32.gmra.mxu0 %v698
    %v3872 = vpop.f32.mrf.mxu0
    %v3873 = vadd.f32 0.0, %v3872
    %3874 = vmatmul.f32.gmra.mxu0 %v701
    %v3875 = vpop.f32.mrf.mxu0
    %v3876 = vadd.f32 0.0, %v3875
    %3877 = vmatmul.f32.gmra.mxu0 %v704
    %v3878 = vpop.f32.mrf.mxu0
    %v3879 = vadd.f32 0.0, %v3878
    %3880 = vmatmul.f32.gmra.mxu0 %v707
    %v3881 = vpop.f32.mrf.mxu0
    %v3882 = vadd.f32 0.0, %v3881
    %3883 = vmatmul.f32.gmra.mxu0 %v710
    %v3884 = vpop.f32.mrf.mxu0
    %v3885 = vadd.f32 0.0, %v3884
    %3886 = vmatmul.f32.gmra.mxu0 %v713
    %v3887 = vpop.f32.mrf.mxu0
    %v3888 = vadd.f32 0.0, %v3887
    %3889 = vmatmul.f32.gmra.mxu0 %v716
    %v3890 = vpop.f32.mrf.mxu0
    %v3891 = vadd.f32 0.0, %v3890
    %3892 = vmatmul.f32.gmra.mxu0 %v719
    %v3893 = vpop.f32.mrf.mxu0
    %v3894 = vadd.f32 0.0, %v3893
    %3895 = vdwg.mxu0
    %v3896 = vsub.f32 %v3512, %v3801
    %v3897 = vsub.f32 %v3515, %v3804
    %v3898 = vsub.f32 %v3518, %v3807
    %v3899 = vsub.f32 %v3521, %v3810
    %v3900 = vsub.f32 %v3524, %v3813
    %v3901 = vsub.f32 %v3527, %v3816
    %v3902 = vsub.f32 %v3530, %v3819
    %v3903 = vsub.f32 %v3533, %v3822
    %v3904 = vsub.f32 %v3536, %v3825
    %v3905 = vsub.f32 %v3539, %v3828
    %v3906 = vsub.f32 %v3542, %v3831
    %v3907 = vsub.f32 %v3545, %v3834
    %v3908 = vsub.f32 %v3548, %v3837
    %v3909 = vsub.f32 %v3551, %v3840
    %v3910 = vsub.f32 %v3554, %v3843
    %v3911 = vsub.f32 %v3557, %v3846
    %v3912 = vsub.f32 %v3560, %v3849
    %v3913 = vsub.f32 %v3563, %v3852
    %v3914 = vsub.f32 %v3566, %v3855
    %v3915 = vsub.f32 %v3569, %v3858
    %v3916 = vsub.f32 %v3572, %v3861
    %v3917 = vsub.f32 %v3575, %v3864
    %v3918 = vsub.f32 %v3578, %v3867
    %v3919 = vsub.f32 %v3581, %v3870
    %v3920 = vsub.f32 %v3584, %v3873
    %v3921 = vsub.f32 %v3587, %v3876
    %v3922 = vsub.f32 %v3590, %v3879
    %v3923 = vsub.f32 %v3593, %v3882
    %v3924 = vsub.f32 %v3596, %v3885
    %v3925 = vsub.f32 %v3599, %v3888
    %v3926 = vsub.f32 %v3602, %v3891
    %v3927 = vsub.f32 %v3605, %v3894
    %v3928 = vmul.f32 %v3896, 1.442695
    %v3929 = vpow.pop %v3928
    %v3930 = vmul.f32 %v3897, 1.442695
    %v3931 = vpow.pop %v3930
    %v3932 = vmul.f32 %v3898, 1.442695
    %v3933 = vpow.pop %v3932
    %v3934 = vmul.f32 %v3899, 1.442695
    %v3935 = vpow.pop %v3934
    %v3936 = vmul.f32 %v3900, 1.442695
    %v3937 = vpow.pop %v3936
    %v3938 = vmul.f32 %v3901, 1.442695
    %v3939 = vpow.pop %v3938
    %v3940 = vmul.f32 %v3902, 1.442695
    %v3941 = vpow.pop %v3940
    %v3942 = vmul.f32 %v3903, 1.442695
    %v3943 = vpow.pop %v3942
    %v3944 = vmul.f32 %v3904, 1.442695
    %v3945 = vpow.pop %v3944
    %v3946 = vmul.f32 %v3905, 1.442695
    %v3947 = vpow.pop %v3946
    %v3948 = vmul.f32 %v3906, 1.442695
    %v3949 = vpow.pop %v3948
    %v3950 = vmul.f32 %v3907, 1.442695
    %v3951 = vpow.pop %v3950
    %v3952 = vmul.f32 %v3908, 1.442695
    %v3953 = vpow.pop %v3952
    %v3954 = vmul.f32 %v3909, 1.442695
    %v3955 = vpow.pop %v3954
    %v3956 = vmul.f32 %v3910, 1.442695
    %v3957 = vpow.pop %v3956
    %v3958 = vmul.f32 %v3911, 1.442695
    %v3959 = vpow.pop %v3958
    %v3960 = vmul.f32 %v3912, 1.442695
    %v3961 = vpow.pop %v3960
    %v3962 = vmul.f32 %v3913, 1.442695
    %v3963 = vpow.pop %v3962
    %v3964 = vmul.f32 %v3914, 1.442695
    %v3965 = vpow.pop %v3964
    %v3966 = vmul.f32 %v3915, 1.442695
    %v3967 = vpow.pop %v3966
    %v3968 = vmul.f32 %v3916, 1.442695
    %v3969 = vpow.pop %v3968
    %v3970 = vmul.f32 %v3917, 1.442695
    %v3971 = vpow.pop %v3970
    %v3972 = vmul.f32 %v3918, 1.442695
    %v3973 = vpow.pop %v3972
    %v3974 = vmul.f32 %v3919, 1.442695
    %v3975 = vpow.pop %v3974
    %v3976 = vmul.f32 %v3920, 1.442695
    %v3977 = vpow.pop %v3976
    %v3978 = vmul.f32 %v3921, 1.442695
    %v3979 = vpow.pop %v3978
    %v3980 = vmul.f32 %v3922, 1.442695
    %v3981 = vpow.pop %v3980
    %v3982 = vmul.f32 %v3923, 1.442695
    %v3983 = vpow.pop %v3982
    %v3984 = vmul.f32 %v3924, 1.442695
    %v3985 = vpow.pop %v3984
    %v3986 = vmul.f32 %v3925, 1.442695
    %v3987 = vpow.pop %v3986
    %v3988 = vmul.f32 %v3926, 1.442695
    %v3989 = vpow.pop %v3988
    %v3990 = vmul.f32 %v3927, 1.442695
    %v3991 = vpow.pop %v3990
    %3992 = vmatpush.msra.mxu0 %v3959
    %3993 = vmatpush.msra.mxu0 %v3957
    %3994 = vmatpush.msra.mxu0 %v3955
    %3995 = vmatpush.msra.mxu0 %v3953
    %3996 = vmatpush.msra.mxu0 %v3951
    %3997 = vmatpush.msra.mxu0 %v3949
    %3998 = vmatpush.msra.mxu0 %v3947
    %3999 = vmatpush.msra.mxu0 %v3945
    %4000 = vmatpush.msra.mxu0 %v3943
    %4001 = vmatpush.msra.mxu0 %v3941
    %4002 = vmatpush.msra.mxu0 %v3939
    %4003 = vmatpush.msra.mxu0 %v3937
    %4004 = vmatpush.msra.mxu0 %v3935
    %4005 = vmatpush.msra.mxu0 %v3933
    %4006 = vmatpush.msra.mxu0 %v3931
    %4007 = vmatpush.msra.mxu0 %v3929
    %4008 = vmatmul.f32.gmra.mxu0 %v171
    %v4009 = vpop.f32.mrf.mxu0
    %v4010 = vadd.f32 0.0, %v4009
    %4011 = vmatmul.f32.gmra.mxu0 %v173
    %v4012 = vpop.f32.mrf.mxu0
    %v4013 = vadd.f32 0.0, %v4012
    %4014 = vdwg.mxu0
    %4015 = vmatpush.msra.mxu0 %v3991
    %4016 = vmatpush.msra.mxu0 %v3989
    %4017 = vmatpush.msra.mxu0 %v3987
    %4018 = vmatpush.msra.mxu0 %v3985
    %4019 = vmatpush.msra.mxu0 %v3983
    %4020 = vmatpush.msra.mxu0 %v3981
    %4021 = vmatpush.msra.mxu0 %v3979
    %4022 = vmatpush.msra.mxu0 %v3977
    %4023 = vmatpush.msra.mxu0 %v3975
    %4024 = vmatpush.msra.mxu0 %v3973
    %4025 = vmatpush.msra.mxu0 %v3971
    %4026 = vmatpush.msra.mxu0 %v3969
    %4027 = vmatpush.msra.mxu0 %v3967
    %4028 = vmatpush.msra.mxu0 %v3965
    %4029 = vmatpush.msra.mxu0 %v3963
    %4030 = vmatpush.msra.mxu0 %v3961
    %4031 = vmatmul.f32.gmra.mxu0 %v172
    %v4032 = vpop.f32.mrf.mxu0
    %v4033 = vadd.f32 %v4010, %v4032
    %4034 = vmatmul.f32.gmra.mxu0 %v174
    %v4035 = vpop.f32.mrf.mxu0
    %v4036 = vadd.f32 %v4013, %v4035
    %4037 = vdwg.mxu0
    %v4038 = vrcp.pop %v4033
    %v4039 = vrcp.pop %v4036
    %4040 = vmatpush.msra.mxu0 0.0
    %4041 = vmatpush.msra.mxu0 0.0
    %4042 = vmatpush.msra.mxu0 0.0
    %4043 = vmatpush.msra.mxu0 0.0
    %4044 = vmatpush.msra.mxu0 0.0
    %4045 = vmatpush.msra.mxu0 0.0
    %4046 = vmatpush.msra.mxu0 0.0
    %4047 = vmatpush.msra.mxu0 0.0
    %4048 = vmatpush.msra.mxu0 0.0
    %4049 = vmatpush.msra.mxu0 0.0
    %4050 = vmatpush.msra.mxu0 0.0
    %4051 = vmatpush.msra.mxu0 0.0
    %4052 = vmatpush.msra.mxu0 0.0
    %4053 = vmatpush.msra.mxu0 0.0
    %4054 = vmatpush.msra.mxu0 %v4039
    %4055 = vmatpush.msra.mxu0 %v4038
    %4056 = vmatmul.f32.gmra.mxu0 %v626
    %v4057 = vpop.f32.mrf.mxu0
    %v4058 = vadd.f32 0.0, %v4057
    %4059 = vmatmul.f32.gmra.mxu0 %v629
    %v4060 = vpop.f32.mrf.mxu0
    %v4061 = vadd.f32 0.0, %v4060
    %4062 = vmatmul.f32.gmra.mxu0 %v632
    %v4063 = vpop.f32.mrf.mxu0
    %v4064 = vadd.f32 0.0, %v4063
    %4065 = vmatmul.f32.gmra.mxu0 %v635
    %v4066 = vpop.f32.mrf.mxu0
    %v4067 = vadd.f32 0.0, %v4066
    %4068 = vmatmul.f32.gmra.mxu0 %v638
    %v4069 = vpop.f32.mrf.mxu0
    %v4070 = vadd.f32 0.0, %v4069
    %4071 = vmatmul.f32.gmra.mxu0 %v641
    %v4072 = vpop.f32.mrf.mxu0
    %v4073 = vadd.f32 0.0, %v4072
    %4074 = vmatmul.f32.gmra.mxu0 %v644
    %v4075 = vpop.f32.mrf.mxu0
    %v4076 = vadd.f32 0.0, %v4075
    %4077 = vmatmul.f32.gmra.mxu0 %v647
    %v4078 = vpop.f32.mrf.mxu0
    %v4079 = vadd.f32 0.0, %v4078
    %4080 = vmatmul.f32.gmra.mxu0 %v650
    %v4081 = vpop.f32.mrf.mxu0
    %v4082 = vadd.f32 0.0, %v4081
    %4083 = vmatmul.f32.gmra.mxu0 %v653
    %v4084 = vpop.f32.mrf.mxu0
    %v4085 = vadd.f32 0.0, %v4084
    %4086 = vmatmul.f32.gmra.mxu0 %v656
    %v4087 = vpop.f32.mrf.mxu0
    %v4088 = vadd.f32 0.0, %v4087
    %4089 = vmatmul.f32.gmra.mxu0 %v659
    %v4090 = vpop.f32.mrf.mxu0
    %v4091 = vadd.f32 0.0, %v4090
    %4092 = vmatmul.f32.gmra.mxu0 %v662
    %v4093 = vpop.f32.mrf.mxu0
    %v4094 = vadd.f32 0.0, %v4093
    %4095 = vmatmul.f32.gmra.mxu0 %v665
    %v4096 = vpop.f32.mrf.mxu0
    %v4097 = vadd.f32 0.0, %v4096
    %4098 = vmatmul.f32.gmra.mxu0 %v668
    %v4099 = vpop.f32.mrf.mxu0
    %v4100 = vadd.f32 0.0, %v4099
    %4101 = vmatmul.f32.gmra.mxu0 %v671
    %v4102 = vpop.f32.mrf.mxu0
    %v4103 = vadd.f32 0.0, %v4102
    %4104 = vmatmul.f32.gmra.mxu0 %v674
    %v4105 = vpop.f32.mrf.mxu0
    %v4106 = vadd.f32 0.0, %v4105
    %4107 = vmatmul.f32.gmra.mxu0 %v677
    %v4108 = vpop.f32.mrf.mxu0
    %v4109 = vadd.f32 0.0, %v4108
    %4110 = vmatmul.f32.gmra.mxu0 %v680
    %v4111 = vpop.f32.mrf.mxu0
    %v4112 = vadd.f32 0.0, %v4111
    %4113 = vmatmul.f32.gmra.mxu0 %v683
    %v4114 = vpop.f32.mrf.mxu0
    %v4115 = vadd.f32 0.0, %v4114
    %4116 = vmatmul.f32.gmra.mxu0 %v686
    %v4117 = vpop.f32.mrf.mxu0
    %v4118 = vadd.f32 0.0, %v4117
    %4119 = vmatmul.f32.gmra.mxu0 %v689
    %v4120 = vpop.f32.mrf.mxu0
    %v4121 = vadd.f32 0.0, %v4120
    %4122 = vmatmul.f32.gmra.mxu0 %v692
    %v4123 = vpop.f32.mrf.mxu0
    %v4124 = vadd.f32 0.0, %v4123
    %4125 = vmatmul.f32.gmra.mxu0 %v695
    %v4126 = vpop.f32.mrf.mxu0
    %v4127 = vadd.f32 0.0, %v4126
    %4128 = vmatmul.f32.gmra.mxu0 %v698
    %v4129 = vpop.f32.mrf.mxu0
    %v4130 = vadd.f32 0.0, %v4129
    %4131 = vmatmul.f32.gmra.mxu0 %v701
    %v4132 = vpop.f32.mrf.mxu0
    %v4133 = vadd.f32 0.0, %v4132
    %4134 = vmatmul.f32.gmra.mxu0 %v704
    %v4135 = vpop.f32.mrf.mxu0
    %v4136 = vadd.f32 0.0, %v4135
    %4137 = vmatmul.f32.gmra.mxu0 %v707
    %v4138 = vpop.f32.mrf.mxu0
    %v4139 = vadd.f32 0.0, %v4138
    %4140 = vmatmul.f32.gmra.mxu0 %v710
    %v4141 = vpop.f32.mrf.mxu0
    %v4142 = vadd.f32 0.0, %v4141
    %4143 = vmatmul.f32.gmra.mxu0 %v713
    %v4144 = vpop.f32.mrf.mxu0
    %v4145 = vadd.f32 0.0, %v4144
    %4146 = vmatmul.f32.gmra.mxu0 %v716
    %v4147 = vpop.f32.mrf.mxu0
    %v4148 = vadd.f32 0.0, %v4147
    %4149 = vmatmul.f32.gmra.mxu0 %v719
    %v4150 = vpop.f32.mrf.mxu0
    %v4151 = vadd.f32 0.0, %v4150
    %4152 = vdwg.mxu0
    %v4153 = vmul.f32 %v3929, %v4058
    %v4154 = vmul.f32 %v3931, %v4061
    %v4155 = vmul.f32 %v3933, %v4064
    %v4156 = vmul.f32 %v3935, %v4067
    %v4157 = vmul.f32 %v3937, %v4070
    %v4158 = vmul.f32 %v3939, %v4073
    %v4159 = vmul.f32 %v3941, %v4076
    %v4160 = vmul.f32 %v3943, %v4079
    %v4161 = vmul.f32 %v3945, %v4082
    %v4162 = vmul.f32 %v3947, %v4085
    %v4163 = vmul.f32 %v3949, %v4088
    %v4164 = vmul.f32 %v3951, %v4091
    %v4165 = vmul.f32 %v3953, %v4094
    %v4166 = vmul.f32 %v3955, %v4097
    %v4167 = vmul.f32 %v3957, %v4100
    %v4168 = vmul.f32 %v3959, %v4103
    %v4169 = vmul.f32 %v3961, %v4106
    %v4170 = vmul.f32 %v3963, %v4109
    %v4171 = vmul.f32 %v3965, %v4112
    %v4172 = vmul.f32 %v3967, %v4115
    %v4173 = vmul.f32 %v3969, %v4118
    %v4174 = vmul.f32 %v3971, %v4121
    %v4175 = vmul.f32 %v3973, %v4124
    %v4176 = vmul.f32 %v3975, %v4127
    %v4177 = vmul.f32 %v3977, %v4130
    %v4178 = vmul.f32 %v3979, %v4133
    %v4179 = vmul.f32 %v3981, %v4136
    %v4180 = vmul.f32 %v3983, %v4139
    %v4181 = vmul.f32 %v3985, %v4142
    %v4182 = vmul.f32 %v3987, %v4145
    %v4183 = vmul.f32 %v3989, %v4148
    %v4184 = vmul.f32 %v3991, %v4151
    %v4185 = vld [vmem:[%s14] sm:$0xff]
    %v4186 = vld [vmem:[%s14 + $0x8] sm:$0xff]
    %v4188 = vsel %vm1493, %v4153, 0
    %v4191 = vsel %vm1493, %v4154, 0
    %v4194 = vsel %vm1493, %v4155, 0
    %v4197 = vsel %vm1493, %v4156, 0
    %v4200 = vsel %vm1493, %v4157, 0
    %v4203 = vsel %vm1493, %v4158, 0
    %v4206 = vsel %vm1493, %v4159, 0
    %v4209 = vsel %vm1493, %v4160, 0
    %v4212 = vsel %vm1493, %v4161, 0
    %v4215 = vsel %vm1493, %v4162, 0
    %v4218 = vsel %vm1493, %v4163, 0
    %v4221 = vsel %vm1493, %v4164, 0
    %v4224 = vsel %vm1493, %v4165, 0
    %v4227 = vsel %vm1493, %v4166, 0
    %v4230 = vsel %vm1493, %v4167, 0
    %v4233 = vsel %vm1493, %v4168, 0
    %v4236 = vsel %vm1493, %v4169, 0
    %v4239 = vsel %vm1493, %v4170, 0
    %v4242 = vsel %vm1493, %v4171, 0
    %v4245 = vsel %vm1493, %v4172, 0
    %v4248 = vsel %vm1493, %v4173, 0
    %v4251 = vsel %vm1493, %v4174, 0
    %v4254 = vsel %vm1493, %v4175, 0
    %v4257 = vsel %vm1493, %v4176, 0
    %v4260 = vsel %vm1493, %v4177, 0
    %v4263 = vsel %vm1493, %v4178, 0
    %v4266 = vsel %vm1493, %v4179, 0
    %v4269 = vsel %vm1493, %v4180, 0
    %v4272 = vsel %vm1493, %v4181, 0
    %v4275 = vsel %vm1493, %v4182, 0
    %v4278 = vsel %vm1493, %v4183, 0
    %v4281 = vsel %vm1493, %v4184, 0
    %4283 = vmatpush.msra.mxu0 0.0
    %4284 = vmatpush.msra.mxu0 0.0
    %4285 = vmatpush.msra.mxu0 0.0
    %4286 = vmatpush.msra.mxu0 0.0
    %4287 = vmatpush.msra.mxu0 0.0
    %4288 = vmatpush.msra.mxu0 0.0
    %4289 = vmatpush.msra.mxu0 0.0
    %4290 = vmatpush.msra.mxu0 0.0
    %4291 = vmatpush.msra.mxu0 0.0
    %4292 = vmatpush.msra.mxu0 0.0
    %4293 = vmatpush.msra.mxu0 0.0
    %4294 = vmatpush.msra.mxu0 0.0
    %4295 = vmatpush.msra.mxu0 0.0
    %4296 = vmatpush.msra.mxu0 0.0
    %4297 = vmatpush.msra.mxu0 0.0
    %4298 = vmatpush.msra.mxu0 %v4185
    %4299 = vmatmul.f32.gmra.mxu0 %v4188
    %v4300 = vpop.f32.mrf.mxu0
    %v4301 = vadd.f32 0.0, %v4300
    %4302 = vmatmul.f32.gmra.mxu0 %v4191
    %v4303 = vpop.f32.mrf.mxu0
    %v4304 = vadd.f32 0.0, %v4303
    %4305 = vmatmul.f32.gmra.mxu0 %v4194
    %v4306 = vpop.f32.mrf.mxu0
    %v4307 = vadd.f32 0.0, %v4306
    %4308 = vmatmul.f32.gmra.mxu0 %v4197
    %v4309 = vpop.f32.mrf.mxu0
    %v4310 = vadd.f32 0.0, %v4309
    %4311 = vmatmul.f32.gmra.mxu0 %v4200
    %v4312 = vpop.f32.mrf.mxu0
    %v4313 = vadd.f32 0.0, %v4312
    %4314 = vmatmul.f32.gmra.mxu0 %v4203
    %v4315 = vpop.f32.mrf.mxu0
    %v4316 = vadd.f32 0.0, %v4315
    %4317 = vmatmul.f32.gmra.mxu0 %v4206
    %v4318 = vpop.f32.mrf.mxu0
    %v4319 = vadd.f32 0.0, %v4318
    %4320 = vmatmul.f32.gmra.mxu0 %v4209
    %v4321 = vpop.f32.mrf.mxu0
    %v4322 = vadd.f32 0.0, %v4321
    %4323 = vmatmul.f32.gmra.mxu0 %v4212
    %v4324 = vpop.f32.mrf.mxu0
    %v4325 = vadd.f32 0.0, %v4324
    %4326 = vmatmul.f32.gmra.mxu0 %v4215
    %v4327 = vpop.f32.mrf.mxu0
    %v4328 = vadd.f32 0.0, %v4327
    %4329 = vmatmul.f32.gmra.mxu0 %v4218
    %v4330 = vpop.f32.mrf.mxu0
    %v4331 = vadd.f32 0.0, %v4330
    %4332 = vmatmul.f32.gmra.mxu0 %v4221
    %v4333 = vpop.f32.mrf.mxu0
    %v4334 = vadd.f32 0.0, %v4333
    %4335 = vmatmul.f32.gmra.mxu0 %v4224
    %v4336 = vpop.f32.mrf.mxu0
    %v4337 = vadd.f32 0.0, %v4336
    %4338 = vmatmul.f32.gmra.mxu0 %v4227
    %v4339 = vpop.f32.mrf.mxu0
    %v4340 = vadd.f32 0.0, %v4339
    %4341 = vmatmul.f32.gmra.mxu0 %v4230
    %v4342 = vpop.f32.mrf.mxu0
    %v4343 = vadd.f32 0.0, %v4342
    %4344 = vmatmul.f32.gmra.mxu0 %v4233
    %v4345 = vpop.f32.mrf.mxu0
    %v4346 = vadd.f32 0.0, %v4345
    %4347 = vmatmul.f32.gmra.mxu0 %v4236
    %v4348 = vpop.f32.mrf.mxu0
    %v4349 = vadd.f32 0.0, %v4348
    %4350 = vmatmul.f32.gmra.mxu0 %v4239
    %v4351 = vpop.f32.mrf.mxu0
    %v4352 = vadd.f32 0.0, %v4351
    %4353 = vmatmul.f32.gmra.mxu0 %v4242
    %v4354 = vpop.f32.mrf.mxu0
    %v4355 = vadd.f32 0.0, %v4354
    %4356 = vmatmul.f32.gmra.mxu0 %v4245
    %v4357 = vpop.f32.mrf.mxu0
    %v4358 = vadd.f32 0.0, %v4357
    %4359 = vmatmul.f32.gmra.mxu0 %v4248
    %v4360 = vpop.f32.mrf.mxu0
    %v4361 = vadd.f32 0.0, %v4360
    %4362 = vmatmul.f32.gmra.mxu0 %v4251
    %v4363 = vpop.f32.mrf.mxu0
    %v4364 = vadd.f32 0.0, %v4363
    %4365 = vmatmul.f32.gmra.mxu0 %v4254
    %v4366 = vpop.f32.mrf.mxu0
    %v4367 = vadd.f32 0.0, %v4366
    %4368 = vmatmul.f32.gmra.mxu0 %v4257
    %v4369 = vpop.f32.mrf.mxu0
    %v4370 = vadd.f32 0.0, %v4369
    %4371 = vmatmul.f32.gmra.mxu0 %v4260
    %v4372 = vpop.f32.mrf.mxu0
    %v4373 = vadd.f32 0.0, %v4372
    %4374 = vmatmul.f32.gmra.mxu0 %v4263
    %v4375 = vpop.f32.mrf.mxu0
    %v4376 = vadd.f32 0.0, %v4375
    %4377 = vmatmul.f32.gmra.mxu0 %v4266
    %v4378 = vpop.f32.mrf.mxu0
    %v4379 = vadd.f32 0.0, %v4378
    %4380 = vmatmul.f32.gmra.mxu0 %v4269
    %v4381 = vpop.f32.mrf.mxu0
    %v4382 = vadd.f32 0.0, %v4381
    %4383 = vmatmul.f32.gmra.mxu0 %v4272
    %v4384 = vpop.f32.mrf.mxu0
    %v4385 = vadd.f32 0.0, %v4384
    %4386 = vmatmul.f32.gmra.mxu0 %v4275
    %v4387 = vpop.f32.mrf.mxu0
    %v4388 = vadd.f32 0.0, %v4387
    %4389 = vmatmul.f32.gmra.mxu0 %v4278
    %v4390 = vpop.f32.mrf.mxu0
    %v4391 = vadd.f32 0.0, %v4390
    %4392 = vmatmul.f32.gmra.mxu0 %v4281
    %v4393 = vpop.f32.mrf.mxu0
    %v4394 = vadd.f32 0.0, %v4393
    %4395 = vdwg.mxu0
    %4396 = vmatpush.msra.mxu0 0.0
    %4397 = vmatpush.msra.mxu0 0.0
    %4398 = vmatpush.msra.mxu0 0.0
    %4399 = vmatpush.msra.mxu0 0.0
    %4400 = vmatpush.msra.mxu0 0.0
    %4401 = vmatpush.msra.mxu0 0.0
    %4402 = vmatpush.msra.mxu0 0.0
    %4403 = vmatpush.msra.mxu0 0.0
    %4404 = vmatpush.msra.mxu0 0.0
    %4405 = vmatpush.msra.mxu0 0.0
    %4406 = vmatpush.msra.mxu0 0.0
    %4407 = vmatpush.msra.mxu0 0.0
    %4408 = vmatpush.msra.mxu0 0.0
    %4409 = vmatpush.msra.mxu0 0.0
    %4410 = vmatpush.msra.mxu0 0.0
    %4411 = vmatpush.msra.mxu0 %v4186
    %4412 = vmatmul.f32.gmra.mxu0 %v4188
    %v4413 = vpop.f32.mrf.mxu0
    %v4414 = vadd.f32 0.0, %v4413
    %4415 = vmatmul.f32.gmra.mxu0 %v4191
    %v4416 = vpop.f32.mrf.mxu0
    %v4417 = vadd.f32 0.0, %v4416
    %4418 = vmatmul.f32.gmra.mxu0 %v4194
    %v4419 = vpop.f32.mrf.mxu0
    %v4420 = vadd.f32 0.0, %v4419
    %4421 = vmatmul.f32.gmra.mxu0 %v4197
    %v4422 = vpop.f32.mrf.mxu0
    %v4423 = vadd.f32 0.0, %v4422
    %4424 = vmatmul.f32.gmra.mxu0 %v4200
    %v4425 = vpop.f32.mrf.mxu0
    %v4426 = vadd.f32 0.0, %v4425
    %4427 = vmatmul.f32.gmra.mxu0 %v4203
    %v4428 = vpop.f32.mrf.mxu0
    %v4429 = vadd.f32 0.0, %v4428
    %4430 = vmatmul.f32.gmra.mxu0 %v4206
    %v4431 = vpop.f32.mrf.mxu0
    %v4432 = vadd.f32 0.0, %v4431
    %4433 = vmatmul.f32.gmra.mxu0 %v4209
    %v4434 = vpop.f32.mrf.mxu0
    %v4435 = vadd.f32 0.0, %v4434
    %4436 = vmatmul.f32.gmra.mxu0 %v4212
    %v4437 = vpop.f32.mrf.mxu0
    %v4438 = vadd.f32 0.0, %v4437
    %4439 = vmatmul.f32.gmra.mxu0 %v4215
    %v4440 = vpop.f32.mrf.mxu0
    %v4441 = vadd.f32 0.0, %v4440
    %4442 = vmatmul.f32.gmra.mxu0 %v4218
    %v4443 = vpop.f32.mrf.mxu0
    %v4444 = vadd.f32 0.0, %v4443
    %4445 = vmatmul.f32.gmra.mxu0 %v4221
    %v4446 = vpop.f32.mrf.mxu0
    %v4447 = vadd.f32 0.0, %v4446
    %4448 = vmatmul.f32.gmra.mxu0 %v4224
    %v4449 = vpop.f32.mrf.mxu0
    %v4450 = vadd.f32 0.0, %v4449
    %4451 = vmatmul.f32.gmra.mxu0 %v4227
    %v4452 = vpop.f32.mrf.mxu0
    %v4453 = vadd.f32 0.0, %v4452
    %4454 = vmatmul.f32.gmra.mxu0 %v4230
    %v4455 = vpop.f32.mrf.mxu0
    %v4456 = vadd.f32 0.0, %v4455
    %4457 = vmatmul.f32.gmra.mxu0 %v4233
    %v4458 = vpop.f32.mrf.mxu0
    %v4459 = vadd.f32 0.0, %v4458
    %4460 = vmatmul.f32.gmra.mxu0 %v4236
    %v4461 = vpop.f32.mrf.mxu0
    %v4462 = vadd.f32 0.0, %v4461
    %4463 = vmatmul.f32.gmra.mxu0 %v4239
    %v4464 = vpop.f32.mrf.mxu0
    %v4465 = vadd.f32 0.0, %v4464
    %4466 = vmatmul.f32.gmra.mxu0 %v4242
    %v4467 = vpop.f32.mrf.mxu0
    %v4468 = vadd.f32 0.0, %v4467
    %4469 = vmatmul.f32.gmra.mxu0 %v4245
    %v4470 = vpop.f32.mrf.mxu0
    %v4471 = vadd.f32 0.0, %v4470
    %4472 = vmatmul.f32.gmra.mxu0 %v4248
    %v4473 = vpop.f32.mrf.mxu0
    %v4474 = vadd.f32 0.0, %v4473
    %4475 = vmatmul.f32.gmra.mxu0 %v4251
    %v4476 = vpop.f32.mrf.mxu0
    %v4477 = vadd.f32 0.0, %v4476
    %4478 = vmatmul.f32.gmra.mxu0 %v4254
    %v4479 = vpop.f32.mrf.mxu0
    %v4480 = vadd.f32 0.0, %v4479
    %4481 = vmatmul.f32.gmra.mxu0 %v4257
    %v4482 = vpop.f32.mrf.mxu0
    %v4483 = vadd.f32 0.0, %v4482
    %4484 = vmatmul.f32.gmra.mxu0 %v4260
    %v4485 = vpop.f32.mrf.mxu0
    %v4486 = vadd.f32 0.0, %v4485
    %4487 = vmatmul.f32.gmra.mxu0 %v4263
    %v4488 = vpop.f32.mrf.mxu0
    %v4489 = vadd.f32 0.0, %v4488
    %4490 = vmatmul.f32.gmra.mxu0 %v4266
    %v4491 = vpop.f32.mrf.mxu0
    %v4492 = vadd.f32 0.0, %v4491
    %4493 = vmatmul.f32.gmra.mxu0 %v4269
    %v4494 = vpop.f32.mrf.mxu0
    %v4495 = vadd.f32 0.0, %v4494
    %4496 = vmatmul.f32.gmra.mxu0 %v4272
    %v4497 = vpop.f32.mrf.mxu0
    %v4498 = vadd.f32 0.0, %v4497
    %4499 = vmatmul.f32.gmra.mxu0 %v4275
    %v4500 = vpop.f32.mrf.mxu0
    %v4501 = vadd.f32 0.0, %v4500
    %4502 = vmatmul.f32.gmra.mxu0 %v4278
    %v4503 = vpop.f32.mrf.mxu0
    %v4504 = vadd.f32 0.0, %v4503
    %4505 = vmatmul.f32.gmra.mxu0 %v4281
    %v4506 = vpop.f32.mrf.mxu0
    %v4507 = vadd.f32 0.0, %v4506
    %4508 = vdwg.mxu0
    %v4509 = vmul.f32 %v4301, %v2787
    %v4510 = vmul.f32 %v4414, %v2900
    %v4511 = vmul.f32 %v4304, %v2790
    %v4512 = vmul.f32 %v4417, %v2903
    %v4513 = vmul.f32 %v4307, %v2793
    %v4514 = vmul.f32 %v4420, %v2906
    %v4515 = vmul.f32 %v4310, %v2796
    %v4516 = vmul.f32 %v4423, %v2909
    %v4517 = vmul.f32 %v4313, %v2799
    %v4518 = vmul.f32 %v4426, %v2912
    %v4519 = vmul.f32 %v4316, %v2802
    %v4520 = vmul.f32 %v4429, %v2915
    %v4521 = vmul.f32 %v4319, %v2805
    %v4522 = vmul.f32 %v4432, %v2918
    %v4523 = vmul.f32 %v4322, %v2808
    %v4524 = vmul.f32 %v4435, %v2921
    %v4525 = vmul.f32 %v4325, %v2811
    %v4526 = vmul.f32 %v4438, %v2924
    %v4527 = vmul.f32 %v4328, %v2814
    %v4528 = vmul.f32 %v4441, %v2927
    %v4529 = vmul.f32 %v4331, %v2817
    %v4530 = vmul.f32 %v4444, %v2930
    %v4531 = vmul.f32 %v4334, %v2820
    %v4532 = vmul.f32 %v4447, %v2933
    %v4533 = vmul.f32 %v4337, %v2823
    %v4534 = vmul.f32 %v4450, %v2936
    %v4535 = vmul.f32 %v4340, %v2826
    %v4536 = vmul.f32 %v4453, %v2939
    %v4537 = vmul.f32 %v4343, %v2829
    %v4538 = vmul.f32 %v4456, %v2942
    %v4539 = vmul.f32 %v4346, %v2832
    %v4540 = vmul.f32 %v4459, %v2945
    %v4541 = vmul.f32 %v4349, %v2835
    %v4542 = vmul.f32 %v4462, %v2948
    %v4543 = vmul.f32 %v4352, %v2838
    %v4544 = vmul.f32 %v4465, %v2951
    %v4545 = vmul.f32 %v4355, %v2841
    %v4546 = vmul.f32 %v4468, %v2954
    %v4547 = vmul.f32 %v4358, %v2844
    %v4548 = vmul.f32 %v4471, %v2957
    %v4549 = vmul.f32 %v4361, %v2847
    %v4550 = vmul.f32 %v4474, %v2960
    %v4551 = vmul.f32 %v4364, %v2850
    %v4552 = vmul.f32 %v4477, %v2963
    %v4553 = vmul.f32 %v4367, %v2853
    %v4554 = vmul.f32 %v4480, %v2966
    %v4555 = vmul.f32 %v4370, %v2856
    %v4556 = vmul.f32 %v4483, %v2969
    %v4557 = vmul.f32 %v4373, %v2859
    %v4558 = vmul.f32 %v4486, %v2972
    %v4559 = vmul.f32 %v4376, %v2862
    %v4560 = vmul.f32 %v4489, %v2975
    %v4561 = vmul.f32 %v4379, %v2865
    %v4562 = vmul.f32 %v4492, %v2978
    %v4563 = vmul.f32 %v4382, %v2868
    %v4564 = vmul.f32 %v4495, %v2981
    %v4565 = vmul.f32 %v4385, %v2871
    %v4566 = vmul.f32 %v4498, %v2984
    %v4567 = vmul.f32 %v4388, %v2874
    %v4568 = vmul.f32 %v4501, %v2987
    %v4569 = vmul.f32 %v4391, %v2877
    %v4570 = vmul.f32 %v4504, %v2990
    %v4571 = vmul.f32 %v4394, %v2880
    %v4572 = vmul.f32 %v4507, %v2993
    %4573 = vmatpush.msra.mxu0 %v4539
    %4574 = vmatpush.msra.mxu0 %v4537
    %4575 = vmatpush.msra.mxu0 %v4535
    %4576 = vmatpush.msra.mxu0 %v4533
    %4577 = vmatpush.msra.mxu0 %v4531
    %4578 = vmatpush.msra.mxu0 %v4529
    %4579 = vmatpush.msra.mxu0 %v4527
    %4580 = vmatpush.msra.mxu0 %v4525
    %4581 = vmatpush.msra.mxu0 %v4523
    %4582 = vmatpush.msra.mxu0 %v4521
    %4583 = vmatpush.msra.mxu0 %v4519
    %4584 = vmatpush.msra.mxu0 %v4517
    %4585 = vmatpush.msra.mxu0 %v4515
    %4586 = vmatpush.msra.mxu0 %v4513
    %4587 = vmatpush.msra.mxu0 %v4511
    %4588 = vmatpush.msra.mxu0 %v4509
    %4589 = vmatmul.f32.gmra.mxu0 %v171
    %v4590 = vpop.f32.mrf.mxu0
    %v4591 = vadd.f32 0.0, %v4590
    %4592 = vmatmul.f32.gmra.mxu0 %v173
    %v4593 = vpop.f32.mrf.mxu0
    %v4594 = vadd.f32 0.0, %v4593
    %4595 = vdwg.mxu0
    %4596 = vmatpush.msra.mxu0 %v4571
    %4597 = vmatpush.msra.mxu0 %v4569
    %4598 = vmatpush.msra.mxu0 %v4567
    %4599 = vmatpush.msra.mxu0 %v4565
    %4600 = vmatpush.msra.mxu0 %v4563
    %4601 = vmatpush.msra.mxu0 %v4561
    %4602 = vmatpush.msra.mxu0 %v4559
    %4603 = vmatpush.msra.mxu0 %v4557
    %4604 = vmatpush.msra.mxu0 %v4555
    %4605 = vmatpush.msra.mxu0 %v4553
    %4606 = vmatpush.msra.mxu0 %v4551
    %4607 = vmatpush.msra.mxu0 %v4549
    %4608 = vmatpush.msra.mxu0 %v4547
    %4609 = vmatpush.msra.mxu0 %v4545
    %4610 = vmatpush.msra.mxu0 %v4543
    %4611 = vmatpush.msra.mxu0 %v4541
    %4612 = vmatmul.f32.gmra.mxu0 %v172
    %v4613 = vpop.f32.mrf.mxu0
    %v4614 = vadd.f32 %v4591, %v4613
    %4615 = vmatmul.f32.gmra.mxu0 %v174
    %v4616 = vpop.f32.mrf.mxu0
    %v4617 = vadd.f32 %v4594, %v4616
    %4618 = vdwg.mxu0
    %4619 = vmatpush.msra.mxu0 %v4540
    %4620 = vmatpush.msra.mxu0 %v4538
    %4621 = vmatpush.msra.mxu0 %v4536
    %4622 = vmatpush.msra.mxu0 %v4534
    %4623 = vmatpush.msra.mxu0 %v4532
    %4624 = vmatpush.msra.mxu0 %v4530
    %4625 = vmatpush.msra.mxu0 %v4528
    %4626 = vmatpush.msra.mxu0 %v4526
    %4627 = vmatpush.msra.mxu0 %v4524
    %4628 = vmatpush.msra.mxu0 %v4522
    %4629 = vmatpush.msra.mxu0 %v4520
    %4630 = vmatpush.msra.mxu0 %v4518
    %4631 = vmatpush.msra.mxu0 %v4516
    %4632 = vmatpush.msra.mxu0 %v4514
    %4633 = vmatpush.msra.mxu0 %v4512
    %4634 = vmatpush.msra.mxu0 %v4510
    %4635 = vmatmul.f32.gmra.mxu0 %v171
    %v4636 = vpop.f32.mrf.mxu0
    %v4637 = vadd.f32 0.0, %v4636
    %4638 = vmatmul.f32.gmra.mxu0 %v173
    %v4639 = vpop.f32.mrf.mxu0
    %v4640 = vadd.f32 0.0, %v4639
    %4641 = vdwg.mxu0
    %4642 = vmatpush.msra.mxu0 %v4572
    %4643 = vmatpush.msra.mxu0 %v4570
    %4644 = vmatpush.msra.mxu0 %v4568
    %4645 = vmatpush.msra.mxu0 %v4566
    %4646 = vmatpush.msra.mxu0 %v4564
    %4647 = vmatpush.msra.mxu0 %v4562
    %4648 = vmatpush.msra.mxu0 %v4560
    %4649 = vmatpush.msra.mxu0 %v4558
    %4650 = vmatpush.msra.mxu0 %v4556
    %4651 = vmatpush.msra.mxu0 %v4554
    %4652 = vmatpush.msra.mxu0 %v4552
    %4653 = vmatpush.msra.mxu0 %v4550
    %4654 = vmatpush.msra.mxu0 %v4548
    %4655 = vmatpush.msra.mxu0 %v4546
    %4656 = vmatpush.msra.mxu0 %v4544
    %4657 = vmatpush.msra.mxu0 %v4542
    %4658 = vmatmul.f32.gmra.mxu0 %v172
    %v4659 = vpop.f32.mrf.mxu0
    %v4660 = vadd.f32 %v4637, %v4659
    %4661 = vmatmul.f32.gmra.mxu0 %v174
    %v4662 = vpop.f32.mrf.mxu0
    %v4663 = vadd.f32 %v4640, %v4662
    %4664 = vdwg.mxu0
    %v4665 = vld [vmem:[%s15] sm:$0xff]
    %v4666 = vld [vmem:[%s15 + $0x8] sm:$0xff]
    %v4667 = vld [vmem:[%s15 + $0x10] sm:$0xff]
    %v4668 = vld [vmem:[%s15 + $0x18] sm:$0xff]
    %v4669 = vld [vmem:[%s15 + $0x20] sm:$0xff]
    %v4670 = vld [vmem:[%s15 + $0x28] sm:$0xff]
    %v4671 = vld [vmem:[%s15 + $0x30] sm:$0xff]
    %v4672 = vld [vmem:[%s15 + $0x38] sm:$0xff]
    %v4673 = vld [vmem:[%s15 + $0x40] sm:$0xff]
    %v4674 = vld [vmem:[%s15 + $0x48] sm:$0xff]
    %v4675 = vld [vmem:[%s15 + $0x50] sm:$0xff]
    %v4676 = vld [vmem:[%s15 + $0x58] sm:$0xff]
    %v4677 = vld [vmem:[%s15 + $0x60] sm:$0xff]
    %v4678 = vld [vmem:[%s15 + $0x68] sm:$0xff]
    %v4679 = vld [vmem:[%s15 + $0x70] sm:$0xff]
    %v4680 = vld [vmem:[%s15 + $0x78] sm:$0xff]
    %v4681 = vld [vmem:[%s15 + $0x80] sm:$0xff]
    %v4682 = vld [vmem:[%s15 + $0x88] sm:$0xff]
    %v4683 = vld [vmem:[%s15 + $0x90] sm:$0xff]
    %v4684 = vld [vmem:[%s15 + $0x98] sm:$0xff]
    %v4685 = vld [vmem:[%s15 + $0xa0] sm:$0xff]
    %v4686 = vld [vmem:[%s15 + $0xa8] sm:$0xff]
    %v4687 = vld [vmem:[%s15 + $0xb0] sm:$0xff]
    %v4688 = vld [vmem:[%s15 + $0xb8] sm:$0xff]
    %v4689 = vld [vmem:[%s15 + $0xc0] sm:$0xff]
    %v4690 = vld [vmem:[%s15 + $0xc8] sm:$0xff]
    %v4691 = vld [vmem:[%s15 + $0xd0] sm:$0xff]
    %v4692 = vld [vmem:[%s15 + $0xd8] sm:$0xff]
    %v4693 = vld [vmem:[%s15 + $0xe0] sm:$0xff]
    %v4694 = vld [vmem:[%s15 + $0xe8] sm:$0xff]
    %v4695 = vld [vmem:[%s15 + $0xf0] sm:$0xff]
    %v4696 = vld [vmem:[%s15 + $0xf8] sm:$0xff]
    %v4697 = vld [vmem:[%s16] sm:$0x1]
    %v4699 = vperm.slane %v4697, 0
    %4701 = vmatpush.msra.mxu0 %v4680
    %4702 = vmatpush.msra.mxu0 %v4679
    %4703 = vmatpush.msra.mxu0 %v4678
    %4704 = vmatpush.msra.mxu0 %v4677
    %4705 = vmatpush.msra.mxu0 %v4676
    %4706 = vmatpush.msra.mxu0 %v4675
    %4707 = vmatpush.msra.mxu0 %v4674
    %4708 = vmatpush.msra.mxu0 %v4673
    %4709 = vmatpush.msra.mxu0 %v4672
    %4710 = vmatpush.msra.mxu0 %v4671
    %4711 = vmatpush.msra.mxu0 %v4670
    %4712 = vmatpush.msra.mxu0 %v4669
    %4713 = vmatpush.msra.mxu0 %v4668
    %4714 = vmatpush.msra.mxu0 %v4667
    %4715 = vmatpush.msra.mxu0 %v4666
    %4716 = vmatpush.msra.mxu0 %v4665
    %4717 = vmatmul.f32.gmra.mxu0 %v4614
    %v4718 = vpop.f32.mrf.mxu0
    %v4719 = vadd.f32 %v4699, %v4718
    %4720 = vmatmul.f32.gmra.mxu0 %v4617
    %v4721 = vpop.f32.mrf.mxu0
    %v4722 = vadd.f32 %v4699, %v4721
    %4723 = vdwg.mxu0
    %4724 = vmatpush.msra.mxu0 %v4696
    %4725 = vmatpush.msra.mxu0 %v4695
    %4726 = vmatpush.msra.mxu0 %v4694
    %4727 = vmatpush.msra.mxu0 %v4693
    %4728 = vmatpush.msra.mxu0 %v4692
    %4729 = vmatpush.msra.mxu0 %v4691
    %4730 = vmatpush.msra.mxu0 %v4690
    %4731 = vmatpush.msra.mxu0 %v4689
    %4732 = vmatpush.msra.mxu0 %v4688
    %4733 = vmatpush.msra.mxu0 %v4687
    %4734 = vmatpush.msra.mxu0 %v4686
    %4735 = vmatpush.msra.mxu0 %v4685
    %4736 = vmatpush.msra.mxu0 %v4684
    %4737 = vmatpush.msra.mxu0 %v4683
    %4738 = vmatpush.msra.mxu0 %v4682
    %4739 = vmatpush.msra.mxu0 %v4681
    %4740 = vmatmul.f32.gmra.mxu0 %v4660
    %v4741 = vpop.f32.mrf.mxu0
    %v4742 = vadd.f32 %v4719, %v4741
    %4743 = vmatmul.f32.gmra.mxu0 %v4663
    %v4744 = vpop.f32.mrf.mxu0
    %v4745 = vadd.f32 %v4722, %v4744
    %4746 = vdwg.mxu0
    %v4747 = vmax.f32 %v4742, 0.0
    %v4748 = vmax.f32 %v4745, 0.0
    %v4749 = vadd.f32 %v4747, %v2643
    %v4750 = vadd.f32 %v4748, %v2644
    %v4751 = vld [vmem:[%s17] sm:$0xff]
    %v4752 = vld [vmem:[%s17 + $0x8] sm:$0xff]
    %v4753 = vld [vmem:[%s17 + $0x10] sm:$0xff]
    %v4754 = vld [vmem:[%s17 + $0x18] sm:$0xff]
    %v4755 = vld [vmem:[%s17 + $0x20] sm:$0xff]
    %v4756 = vld [vmem:[%s17 + $0x28] sm:$0xff]
    %v4757 = vld [vmem:[%s17 + $0x30] sm:$0xff]
    %v4758 = vld [vmem:[%s17 + $0x38] sm:$0xff]
    %v4759 = vld [vmem:[%s18] sm:$0x3]
    %v4761 = vperm.slane %v4759, 0
    %v4762 = vperm.slane %v4759, 1
    %v4766 = vsel %vm203, %v4749, 0
    %v4769 = vsel %vm203, %v4750, 0
    %4771 = vmatpush.msra.mxu0 0.0
    %4772 = vmatpush.msra.mxu0 0.0
    %4773 = vmatpush.msra.mxu0 0.0
    %4774 = vmatpush.msra.mxu0 0.0
    %4775 = vmatpush.msra.mxu0 0.0
    %4776 = vmatpush.msra.mxu0 0.0
    %4777 = vmatpush.msra.mxu0 0.0
    %4778 = vmatpush.msra.mxu0 0.0
    %4779 = vmatpush.msra.mxu0 0.0
    %4780 = vmatpush.msra.mxu0 0.0
    %4781 = vmatpush.msra.mxu0 0.0
    %4782 = vmatpush.msra.mxu0 0.0
    %4783 = vmatpush.msra.mxu0 %v4757
    %4784 = vmatpush.msra.mxu0 %v4755
    %4785 = vmatpush.msra.mxu0 %v4753
    %4786 = vmatpush.msra.mxu0 %v4751
    %4787 = vmatmul.f32.gmra.mxu0 %v4766
    %v4788 = vpop.f32.mrf.mxu0
    %v4789 = vadd.f32 %v4761, %v4788
    %4790 = vmatmul.f32.gmra.mxu0 %v4769
    %v4791 = vpop.f32.mrf.mxu0
    %v4792 = vadd.f32 %v4761, %v4791
    %4793 = vdwg.mxu0
    %4794 = vmatpush.msra.mxu0 0.0
    %4795 = vmatpush.msra.mxu0 0.0
    %4796 = vmatpush.msra.mxu0 0.0
    %4797 = vmatpush.msra.mxu0 0.0
    %4798 = vmatpush.msra.mxu0 0.0
    %4799 = vmatpush.msra.mxu0 0.0
    %4800 = vmatpush.msra.mxu0 0.0
    %4801 = vmatpush.msra.mxu0 0.0
    %4802 = vmatpush.msra.mxu0 0.0
    %4803 = vmatpush.msra.mxu0 0.0
    %4804 = vmatpush.msra.mxu0 0.0
    %4805 = vmatpush.msra.mxu0 0.0
    %4806 = vmatpush.msra.mxu0 %v4758
    %4807 = vmatpush.msra.mxu0 %v4756
    %4808 = vmatpush.msra.mxu0 %v4754
    %4809 = vmatpush.msra.mxu0 %v4752
    %4810 = vmatmul.f32.gmra.mxu0 %v4766
    %v4811 = vpop.f32.mrf.mxu0
    %v4812 = vadd.f32 %v4762, %v4811
    %4813 = vmatmul.f32.gmra.mxu0 %v4769
    %v4814 = vpop.f32.mrf.mxu0
    %v4815 = vadd.f32 %v4762, %v4814
    %4816 = vdwg.mxu0
    %4817 = vmatpush.msra.mxu0 0.0
    %4818 = vmatpush.msra.mxu0 0.0
    %4819 = vmatpush.msra.mxu0 0.0
    %4820 = vmatpush.msra.mxu0 0.0
    %4821 = vmatpush.msra.mxu0 0.0
    %4822 = vmatpush.msra.mxu0 0.0
    %4823 = vmatpush.msra.mxu0 0.0
    %4824 = vmatpush.msra.mxu0 0.0
    %4825 = vmatpush.msra.mxu0 0.0
    %4826 = vmatpush.msra.mxu0 0.0
    %4827 = vmatpush.msra.mxu0 0.0
    %4828 = vmatpush.msra.mxu0 0.0
    %4829 = vmatpush.msra.mxu0 0.0
    %4830 = vmatpush.msra.mxu0 0.0
    %4831 = vmatpush.msra.mxu0 %v4792
    %4832 = vmatpush.msra.mxu0 %v4789
    %4833 = vmatmul.f32.gmra.mxu0 %v304
    %v4834 = vpop.f32.mrf.mxu0
    %v4835 = vadd.f32 0.0, %v4834
    %4836 = vmatmul.f32.gmra.mxu0 %v307
    %v4837 = vpop.f32.mrf.mxu0
    %v4838 = vadd.f32 0.0, %v4837
    %4839 = vmatmul.f32.gmra.mxu0 %v310
    %v4840 = vpop.f32.mrf.mxu0
    %v4841 = vadd.f32 0.0, %v4840
    %4842 = vmatmul.f32.gmra.mxu0 %v313
    %v4843 = vpop.f32.mrf.mxu0
    %v4844 = vadd.f32 0.0, %v4843
    %4845 = vmatmul.f32.gmra.mxu0 %v316
    %v4846 = vpop.f32.mrf.mxu0
    %v4847 = vadd.f32 0.0, %v4846
    %4848 = vmatmul.f32.gmra.mxu0 %v319
    %v4849 = vpop.f32.mrf.mxu0
    %v4850 = vadd.f32 0.0, %v4849
    %4851 = vmatmul.f32.gmra.mxu0 %v322
    %v4852 = vpop.f32.mrf.mxu0
    %v4853 = vadd.f32 0.0, %v4852
    %4854 = vmatmul.f32.gmra.mxu0 %v325
    %v4855 = vpop.f32.mrf.mxu0
    %v4856 = vadd.f32 0.0, %v4855
    %4857 = vmatmul.f32.gmra.mxu0 %v328
    %v4858 = vpop.f32.mrf.mxu0
    %v4859 = vadd.f32 0.0, %v4858
    %4860 = vmatmul.f32.gmra.mxu0 %v331
    %v4861 = vpop.f32.mrf.mxu0
    %v4862 = vadd.f32 0.0, %v4861
    %4863 = vmatmul.f32.gmra.mxu0 %v334
    %v4864 = vpop.f32.mrf.mxu0
    %v4865 = vadd.f32 0.0, %v4864
    %4866 = vmatmul.f32.gmra.mxu0 %v337
    %v4867 = vpop.f32.mrf.mxu0
    %v4868 = vadd.f32 0.0, %v4867
    %4869 = vmatmul.f32.gmra.mxu0 %v340
    %v4870 = vpop.f32.mrf.mxu0
    %v4871 = vadd.f32 0.0, %v4870
    %4872 = vmatmul.f32.gmra.mxu0 %v343
    %v4873 = vpop.f32.mrf.mxu0
    %v4874 = vadd.f32 0.0, %v4873
    %4875 = vmatmul.f32.gmra.mxu0 %v346
    %v4876 = vpop.f32.mrf.mxu0
    %v4877 = vadd.f32 0.0, %v4876
    %4878 = vmatmul.f32.gmra.mxu0 %v349
    %v4879 = vpop.f32.mrf.mxu0
    %v4880 = vadd.f32 0.0, %v4879
    %4881 = vmatmul.f32.gmra.mxu0 %v352
    %v4882 = vpop.f32.mrf.mxu0
    %v4883 = vadd.f32 0.0, %v4882
    %4884 = vmatmul.f32.gmra.mxu0 %v355
    %v4885 = vpop.f32.mrf.mxu0
    %v4886 = vadd.f32 0.0, %v4885
    %4887 = vmatmul.f32.gmra.mxu0 %v358
    %v4888 = vpop.f32.mrf.mxu0
    %v4889 = vadd.f32 0.0, %v4888
    %4890 = vmatmul.f32.gmra.mxu0 %v361
    %v4891 = vpop.f32.mrf.mxu0
    %v4892 = vadd.f32 0.0, %v4891
    %4893 = vmatmul.f32.gmra.mxu0 %v364
    %v4894 = vpop.f32.mrf.mxu0
    %v4895 = vadd.f32 0.0, %v4894
    %4896 = vmatmul.f32.gmra.mxu0 %v367
    %v4897 = vpop.f32.mrf.mxu0
    %v4898 = vadd.f32 0.0, %v4897
    %4899 = vmatmul.f32.gmra.mxu0 %v370
    %v4900 = vpop.f32.mrf.mxu0
    %v4901 = vadd.f32 0.0, %v4900
    %4902 = vmatmul.f32.gmra.mxu0 %v373
    %v4903 = vpop.f32.mrf.mxu0
    %v4904 = vadd.f32 0.0, %v4903
    %4905 = vmatmul.f32.gmra.mxu0 %v376
    %v4906 = vpop.f32.mrf.mxu0
    %v4907 = vadd.f32 0.0, %v4906
    %4908 = vmatmul.f32.gmra.mxu0 %v379
    %v4909 = vpop.f32.mrf.mxu0
    %v4910 = vadd.f32 0.0, %v4909
    %4911 = vmatmul.f32.gmra.mxu0 %v382
    %v4912 = vpop.f32.mrf.mxu0
    %v4913 = vadd.f32 0.0, %v4912
    %4914 = vmatmul.f32.gmra.mxu0 %v385
    %v4915 = vpop.f32.mrf.mxu0
    %v4916 = vadd.f32 0.0, %v4915
    %4917 = vmatmul.f32.gmra.mxu0 %v388
    %v4918 = vpop.f32.mrf.mxu0
    %v4919 = vadd.f32 0.0, %v4918
    %4920 = vmatmul.f32.gmra.mxu0 %v391
    %v4921 = vpop.f32.mrf.mxu0
    %v4922 = vadd.f32 0.0, %v4921
    %4923 = vmatmul.f32.gmra.mxu0 %v394
    %v4924 = vpop.f32.mrf.mxu0
    %v4925 = vadd.f32 0.0, %v4924
    %4926 = vmatmul.f32.gmra.mxu0 %v397
    %v4927 = vpop.f32.mrf.mxu0
    %v4928 = vadd.f32 0.0, %v4927
    %4929 = vdwg.mxu0
    %4930 = vmatpush.msra.mxu0 0.0
    %4931 = vmatpush.msra.mxu0 0.0
    %4932 = vmatpush.msra.mxu0 0.0
    %4933 = vmatpush.msra.mxu0 0.0
    %4934 = vmatpush.msra.mxu0 0.0
    %4935 = vmatpush.msra.mxu0 0.0
    %4936 = vmatpush.msra.mxu0 0.0
    %4937 = vmatpush.msra.mxu0 0.0
    %4938 = vmatpush.msra.mxu0 0.0
    %4939 = vmatpush.msra.mxu0 0.0
    %4940 = vmatpush.msra.mxu0 0.0
    %4941 = vmatpush.msra.mxu0 0.0
    %4942 = vmatpush.msra.mxu0 0.0
    %4943 = vmatpush.msra.mxu0 0.0
    %4944 = vmatpush.msra.mxu0 %v4815
    %4945 = vmatpush.msra.mxu0 %v4812
    %4946 = vmatmul.f32.gmra.mxu0 %v626
    %v4947 = vpop.f32.mrf.mxu0
    %v4948 = vadd.f32 %v4835, %v4947
    %4949 = vmatmul.f32.gmra.mxu0 %v629
    %v4950 = vpop.f32.mrf.mxu0
    %v4951 = vadd.f32 %v4838, %v4950
    %4952 = vmatmul.f32.gmra.mxu0 %v632
    %v4953 = vpop.f32.mrf.mxu0
    %v4954 = vadd.f32 %v4841, %v4953
    %4955 = vmatmul.f32.gmra.mxu0 %v635
    %v4956 = vpop.f32.mrf.mxu0
    %v4957 = vadd.f32 %v4844, %v4956
    %4958 = vmatmul.f32.gmra.mxu0 %v638
    %v4959 = vpop.f32.mrf.mxu0
    %v4960 = vadd.f32 %v4847, %v4959
    %4961 = vmatmul.f32.gmra.mxu0 %v641
    %v4962 = vpop.f32.mrf.mxu0
    %v4963 = vadd.f32 %v4850, %v4962
    %4964 = vmatmul.f32.gmra.mxu0 %v644
    %v4965 = vpop.f32.mrf.mxu0
    %v4966 = vadd.f32 %v4853, %v4965
    %4967 = vmatmul.f32.gmra.mxu0 %v647
    %v4968 = vpop.f32.mrf.mxu0
    %v4969 = vadd.f32 %v4856, %v4968
    %4970 = vmatmul.f32.gmra.mxu0 %v650
    %v4971 = vpop.f32.mrf.mxu0
    %v4972 = vadd.f32 %v4859, %v4971
    %4973 = vmatmul.f32.gmra.mxu0 %v653
    %v4974 = vpop.f32.mrf.mxu0
    %v4975 = vadd.f32 %v4862, %v4974
    %4976 = vmatmul.f32.gmra.mxu0 %v656
    %v4977 = vpop.f32.mrf.mxu0
    %v4978 = vadd.f32 %v4865, %v4977
    %4979 = vmatmul.f32.gmra.mxu0 %v659
    %v4980 = vpop.f32.mrf.mxu0
    %v4981 = vadd.f32 %v4868, %v4980
    %4982 = vmatmul.f32.gmra.mxu0 %v662
    %v4983 = vpop.f32.mrf.mxu0
    %v4984 = vadd.f32 %v4871, %v4983
    %4985 = vmatmul.f32.gmra.mxu0 %v665
    %v4986 = vpop.f32.mrf.mxu0
    %v4987 = vadd.f32 %v4874, %v4986
    %4988 = vmatmul.f32.gmra.mxu0 %v668
    %v4989 = vpop.f32.mrf.mxu0
    %v4990 = vadd.f32 %v4877, %v4989
    %4991 = vmatmul.f32.gmra.mxu0 %v671
    %v4992 = vpop.f32.mrf.mxu0
    %v4993 = vadd.f32 %v4880, %v4992
    %4994 = vmatmul.f32.gmra.mxu0 %v674
    %v4995 = vpop.f32.mrf.mxu0
    %v4996 = vadd.f32 %v4883, %v4995
    %4997 = vmatmul.f32.gmra.mxu0 %v677
    %v4998 = vpop.f32.mrf.mxu0
    %v4999 = vadd.f32 %v4886, %v4998
    %5000 = vmatmul.f32.gmra.mxu0 %v680
    %v5001 = vpop.f32.mrf.mxu0
    %v5002 = vadd.f32 %v4889, %v5001
    %5003 = vmatmul.f32.gmra.mxu0 %v683
    %v5004 = vpop.f32.mrf.mxu0
    %v5005 = vadd.f32 %v4892, %v5004
    %5006 = vmatmul.f32.gmra.mxu0 %v686
    %v5007 = vpop.f32.mrf.mxu0
    %v5008 = vadd.f32 %v4895, %v5007
    %5009 = vmatmul.f32.gmra.mxu0 %v689
    %v5010 = vpop.f32.mrf.mxu0
    %v5011 = vadd.f32 %v4898, %v5010
    %5012 = vmatmul.f32.gmra.mxu0 %v692
    %v5013 = vpop.f32.mrf.mxu0
    %v5014 = vadd.f32 %v4901, %v5013
    %5015 = vmatmul.f32.gmra.mxu0 %v695
    %v5016 = vpop.f32.mrf.mxu0
    %v5017 = vadd.f32 %v4904, %v5016
    %5018 = vmatmul.f32.gmra.mxu0 %v698
    %v5019 = vpop.f32.mrf.mxu0
    %v5020 = vadd.f32 %v4907, %v5019
    %5021 = vmatmul.f32.gmra.mxu0 %v701
    %v5022 = vpop.f32.mrf.mxu0
    %v5023 = vadd.f32 %v4910, %v5022
    %5024 = vmatmul.f32.gmra.mxu0 %v704
    %v5025 = vpop.f32.mrf.mxu0
    %v5026 = vadd.f32 %v4913, %v5025
    %5027 = vmatmul.f32.gmra.mxu0 %v707
    %v5028 = vpop.f32.mrf.mxu0
    %v5029 = vadd.f32 %v4916, %v5028
    %5030 = vmatmul.f32.gmra.mxu0 %v710
    %v5031 = vpop.f32.mrf.mxu0
    %v5032 = vadd.f32 %v4919, %v5031
    %5033 = vmatmul.f32.gmra.mxu0 %v713
    %v5034 = vpop.f32.mrf.mxu0
    %v5035 = vadd.f32 %v4922, %v5034
    %5036 = vmatmul.f32.gmra.mxu0 %v716
    %v5037 = vpop.f32.mrf.mxu0
    %v5038 = vadd.f32 %v4925, %v5037
    %5039 = vmatmul.f32.gmra.mxu0 %v719
    %v5040 = vpop.f32.mrf.mxu0
    %v5041 = vadd.f32 %v4928, %v5040
    %5042 = vdwg.mxu0
    %v5043 = vmul.f32 %v4948, 0.2
    %v5044 = vmul.f32 %v4951, 0.2
    %v5045 = vmul.f32 %v4954, 0.2
    %v5046 = vmul.f32 %v4957, 0.2
    %v5047 = vmul.f32 %v4960, 0.2
    %v5048 = vmul.f32 %v4963, 0.2
    %v5049 = vmul.f32 %v4966, 0.2
    %v5050 = vmul.f32 %v4969, 0.2
    %v5051 = vmul.f32 %v4972, 0.2
    %v5052 = vmul.f32 %v4975, 0.2
    %v5053 = vmul.f32 %v4978, 0.2
    %v5054 = vmul.f32 %v4981, 0.2
    %v5055 = vmul.f32 %v4984, 0.2
    %v5056 = vmul.f32 %v4987, 0.2
    %v5057 = vmul.f32 %v4990, 0.2
    %v5058 = vmul.f32 %v4993, 0.2
    %v5059 = vmul.f32 %v4996, 0.2
    %v5060 = vmul.f32 %v4999, 0.2
    %v5061 = vmul.f32 %v5002, 0.2
    %v5062 = vmul.f32 %v5005, 0.2
    %v5063 = vmul.f32 %v5008, 0.2
    %v5064 = vmul.f32 %v5011, 0.2
    %v5065 = vmul.f32 %v5014, 0.2
    %v5066 = vmul.f32 %v5017, 0.2
    %v5067 = vmul.f32 %v5020, 0.2
    %v5068 = vmul.f32 %v5023, 0.2
    %v5069 = vmul.f32 %v5026, 0.2
    %v5070 = vmul.f32 %v5029, 0.2
    %v5071 = vmul.f32 %v5032, 0.2
    %v5072 = vmul.f32 %v5035, 0.2
    %v5073 = vmul.f32 %v5038, 0.2
    %v5074 = vmul.f32 %v5041, 0.2
    %v5075 = vmax.f32 %v4948, %v5043
    %v5076 = vmax.f32 %v4951, %v5044
    %v5077 = vmax.f32 %v4954, %v5045
    %v5078 = vmax.f32 %v4957, %v5046
    %v5079 = vmax.f32 %v4960, %v5047
    %v5080 = vmax.f32 %v4963, %v5048
    %v5081 = vmax.f32 %v4966, %v5049
    %v5082 = vmax.f32 %v4969, %v5050
    %v5083 = vmax.f32 %v4972, %v5051
    %v5084 = vmax.f32 %v4975, %v5052
    %v5085 = vmax.f32 %v4978, %v5053
    %v5086 = vmax.f32 %v4981, %v5054
    %v5087 = vmax.f32 %v4984, %v5055
    %v5088 = vmax.f32 %v4987, %v5056
    %v5089 = vmax.f32 %v4990, %v5057
    %v5090 = vmax.f32 %v4993, %v5058
    %v5091 = vmax.f32 %v4996, %v5059
    %v5092 = vmax.f32 %v4999, %v5060
    %v5093 = vmax.f32 %v5002, %v5061
    %v5094 = vmax.f32 %v5005, %v5062
    %v5095 = vmax.f32 %v5008, %v5063
    %v5096 = vmax.f32 %v5011, %v5064
    %v5097 = vmax.f32 %v5014, %v5065
    %v5098 = vmax.f32 %v5017, %v5066
    %v5099 = vmax.f32 %v5020, %v5067
    %v5100 = vmax.f32 %v5023, %v5068
    %v5101 = vmax.f32 %v5026, %v5069
    %v5102 = vmax.f32 %v5029, %v5070
    %v5103 = vmax.f32 %v5032, %v5071
    %v5104 = vmax.f32 %v5035, %v5072
    %v5105 = vmax.f32 %v5038, %v5073
    %v5106 = vmax.f32 %v5041, %v5074
    %v5107 = vld [vmem:[%s19] sm:$0xff]
    %v5108 = vld [vmem:[%s19 + $0x8] sm:$0xff]
    %v5109 = vld [vmem:[%s19 + $0x10] sm:$0xff]
    %v5110 = vld [vmem:[%s19 + $0x18] sm:$0xff]
    %v5111 = vld [vmem:[%s19 + $0x20] sm:$0xff]
    %v5112 = vld [vmem:[%s19 + $0x28] sm:$0xff]
    %v5113 = vld [vmem:[%s19 + $0x30] sm:$0xff]
    %v5114 = vld [vmem:[%s19 + $0x38] sm:$0xff]
    %v5115 = vld [vmem:[%s19 + $0x40] sm:$0xff]
    %v5116 = vld [vmem:[%s19 + $0x48] sm:$0xff]
    %v5117 = vld [vmem:[%s19 + $0x50] sm:$0xff]
    %v5118 = vld [vmem:[%s19 + $0x58] sm:$0xff]
    %v5119 = vld [vmem:[%s19 + $0x60] sm:$0xff]
    %v5120 = vld [vmem:[%s19 + $0x68] sm:$0xff]
    %v5121 = vld [vmem:[%s19 + $0x70] sm:$0xff]
    %v5122 = vld [vmem:[%s19 + $0x78] sm:$0xff]
    %5123 = vmatpush.msra.mxu0 %v5122
    %5124 = vmatpush.msra.mxu0 %v5121
    %5125 = vmatpush.msra.mxu0 %v5120
    %5126 = vmatpush.msra.mxu0 %v5119
    %5127 = vmatpush.msra.mxu0 %v5118
    %5128 = vmatpush.msra.mxu0 %v5117
    %5129 = vmatpush.msra.mxu0 %v5116
    %5130 = vmatpush.msra.mxu0 %v5115
    %5131 = vmatpush.msra.mxu0 %v5114
    %5132 = vmatpush.msra.mxu0 %v5113
    %5133 = vmatpush.msra.mxu0 %v5112
    %5134 = vmatpush.msra.mxu0 %v5111
    %5135 = vmatpush.msra.mxu0 %v5110
    %5136 = vmatpush.msra.mxu0 %v5109
    %5137 = vmatpush.msra.mxu0 %v5108
    %5138 = vmatpush.msra.mxu0 %v5107
    %5139 = vmatmul.f32.gmra.mxu0 %v5075
    %v5140 = vpop.f32.mrf.mxu0
    %v5141 = vadd.f32 %v1110, %v5140
    %5142 = vmatmul.f32.gmra.mxu0 %v5076
    %v5143 = vpop.f32.mrf.mxu0
    %v5144 = vadd.f32 %v1115, %v5143
    %5145 = vmatmul.f32.gmra.mxu0 %v5077
    %v5146 = vpop.f32.mrf.mxu0
    %v5147 = vadd.f32 %v1120, %v5146
    %5148 = vmatmul.f32.gmra.mxu0 %v5078
    %v5149 = vpop.f32.mrf.mxu0
    %v5150 = vadd.f32 %v1125, %v5149
    %5151 = vmatmul.f32.gmra.mxu0 %v5079
    %v5152 = vpop.f32.mrf.mxu0
    %v5153 = vadd.f32 %v1130, %v5152
    %5154 = vmatmul.f32.gmra.mxu0 %v5080
    %v5155 = vpop.f32.mrf.mxu0
    %v5156 = vadd.f32 %v1135, %v5155
    %5157 = vmatmul.f32.gmra.mxu0 %v5081
    %v5158 = vpop.f32.mrf.mxu0
    %v5159 = vadd.f32 %v1140, %v5158
    %5160 = vmatmul.f32.gmra.mxu0 %v5082
    %v5161 = vpop.f32.mrf.mxu0
    %v5162 = vadd.f32 %v1145, %v5161
    %5163 = vmatmul.f32.gmra.mxu0 %v5083
    %v5164 = vpop.f32.mrf.mxu0
    %v5165 = vadd.f32 %v1150, %v5164
    %5166 = vmatmul.f32.gmra.mxu0 %v5084
    %v5167 = vpop.f32.mrf.mxu0
    %v5168 = vadd.f32 %v1155, %v5167
    %5169 = vmatmul.f32.gmra.mxu0 %v5085
    %v5170 = vpop.f32.mrf.mxu0
    %v5171 = vadd.f32 %v1160, %v5170
    %5172 = vmatmul.f32.gmra.mxu0 %v5086
    %v5173 = vpop.f32.mrf.mxu0
    %v5174 = vadd.f32 %v1165, %v5173
    %5175 = vmatmul.f32.gmra.mxu0 %v5087
    %v5176 = vpop.f32.mrf.mxu0
    %v5177 = vadd.f32 %v1170, %v5176
    %5178 = vmatmul.f32.gmra.mxu0 %v5088
    %v5179 = vpop.f32.mrf.mxu0
    %v5180 = vadd.f32 %v1175, %v5179
    %5181 = vmatmul.f32.gmra.mxu0 %v5089
    %v5182 = vpop.f32.mrf.mxu0
    %v5183 = vadd.f32 %v1180, %v5182
    %5184 = vmatmul.f32.gmra.mxu0 %v5090
    %v5185 = vpop.f32.mrf.mxu0
    %v5186 = vadd.f32 %v1185, %v5185
    %5187 = vmatmul.f32.gmra.mxu0 %v5091
    %v5188 = vpop.f32.mrf.mxu0
    %v5189 = vadd.f32 %v1190, %v5188
    %5190 = vmatmul.f32.gmra.mxu0 %v5092
    %v5191 = vpop.f32.mrf.mxu0
    %v5192 = vadd.f32 %v1195, %v5191
    %5193 = vmatmul.f32.gmra.mxu0 %v5093
    %v5194 = vpop.f32.mrf.mxu0
    %v5195 = vadd.f32 %v1200, %v5194
    %5196 = vmatmul.f32.gmra.mxu0 %v5094
    %v5197 = vpop.f32.mrf.mxu0
    %v5198 = vadd.f32 %v1205, %v5197
    %5199 = vmatmul.f32.gmra.mxu0 %v5095
    %v5200 = vpop.f32.mrf.mxu0
    %v5201 = vadd.f32 %v1210, %v5200
    %5202 = vmatmul.f32.gmra.mxu0 %v5096
    %v5203 = vpop.f32.mrf.mxu0
    %v5204 = vadd.f32 %v1215, %v5203
    %5205 = vmatmul.f32.gmra.mxu0 %v5097
    %v5206 = vpop.f32.mrf.mxu0
    %v5207 = vadd.f32 %v1220, %v5206
    %5208 = vmatmul.f32.gmra.mxu0 %v5098
    %v5209 = vpop.f32.mrf.mxu0
    %v5210 = vadd.f32 %v1225, %v5209
    %5211 = vmatmul.f32.gmra.mxu0 %v5099
    %v5212 = vpop.f32.mrf.mxu0
    %v5213 = vadd.f32 %v1230, %v5212
    %5214 = vmatmul.f32.gmra.mxu0 %v5100
    %v5215 = vpop.f32.mrf.mxu0
    %v5216 = vadd.f32 %v1235, %v5215
    %5217 = vmatmul.f32.gmra.mxu0 %v5101
    %v5218 = vpop.f32.mrf.mxu0
    %v5219 = vadd.f32 %v1240, %v5218
    %5220 = vmatmul.f32.gmra.mxu0 %v5102
    %v5221 = vpop.f32.mrf.mxu0
    %v5222 = vadd.f32 %v1245, %v5221
    %5223 = vmatmul.f32.gmra.mxu0 %v5103
    %v5224 = vpop.f32.mrf.mxu0
    %v5225 = vadd.f32 %v1250, %v5224
    %5226 = vmatmul.f32.gmra.mxu0 %v5104
    %v5227 = vpop.f32.mrf.mxu0
    %v5228 = vadd.f32 %v1255, %v5227
    %5229 = vmatmul.f32.gmra.mxu0 %v5105
    %v5230 = vpop.f32.mrf.mxu0
    %v5231 = vadd.f32 %v1260, %v5230
    %5232 = vmatmul.f32.gmra.mxu0 %v5106
    %v5233 = vpop.f32.mrf.mxu0
    %v5234 = vadd.f32 %v1265, %v5233
    %5235 = vdwg.mxu0
    %vm5236 = vcmask 31744
    %v5237 = vsel %vm5236, %v5141, -inf
    %v5238 = vsel %vm5236, %v5144, -inf
    %v5239 = vmax.f32 %v5237, %v5238
    %v5240 = vrot.slane %v5239, 4
    %v5241 = vmax.f32 %v5239, %v5240
    %v5242 = vrot.slane %v5241, 2
    %v5243 = vmax.f32 %v5241, %v5242
    %v5244 = vrot.slane %v5243, 1
    %v5245 = vmax.f32 %v5243, %v5244
    %v5246 = vsel %vm5236, %v5147, -inf
    %v5247 = vsel %vm5236, %v5150, -inf
    %v5248 = vmax.f32 %v5246, %v5247
    %v5249 = vrot.slane %v5248, 4
    %v5250 = vmax.f32 %v5248, %v5249
    %v5251 = vrot.slane %v5250, 2
    %v5252 = vmax.f32 %v5250, %v5251
    %v5253 = vrot.slane %v5252, 1
    %v5254 = vmax.f32 %v5252, %v5253
    %v5255 = vsel %vm5236, %v5153, -inf
    %v5256 = vsel %vm5236, %v5156, -inf
    %v5257 = vmax.f32 %v5255, %v5256
    %v5258 = vrot.slane %v5257, 4
    %v5259 = vmax.f32 %v5257, %v5258
    %v5260 = vrot.slane %v5259, 2
    %v5261 = vmax.f32 %v5259, %v5260
    %v5262 = vrot.slane %v5261, 1
    %v5263 = vmax.f32 %v5261, %v5262
    %v5264 = vsel %vm5236, %v5159, -inf
    %v5265 = vsel %vm5236, %v5162, -inf
    %v5266 = vmax.f32 %v5264, %v5265
    %v5267 = vrot.slane %v5266, 4
    %v5268 = vmax.f32 %v5266, %v5267
    %v5269 = vrot.slane %v5268, 2
    %v5270 = vmax.f32 %v5268, %v5269
    %v5271 = vrot.slane %v5270, 1
    %v5272 = vmax.f32 %v5270, %v5271
    %v5273 = vsel %vm5236, %v5165, -inf
    %v5274 = vsel %vm5236, %v5168, -inf
    %v5275 = vmax.f32 %v5273, %v5274
    %v5276 = vrot.slane %v5275, 4
    %v5277 = vmax.f32 %v5275, %v5276
    %v5278 = vrot.slane %v5277, 2
    %v5279 = vmax.f32 %v5277, %v5278
    %v5280 = vrot.slane %v5279, 1
    %v5281 = vmax.f32 %v5279, %v5280
    %v5282 = vsel %vm5236, %v5171, -inf
    %v5283 = vsel %vm5236, %v5174, -inf
    %v5284 = vmax.f32 %v5282, %v5283
    %v5285 = vrot.slane %v5284, 4
    %v5286 = vmax.f32 %v5284, %v5285
    %v5287 = vrot.slane %v5286, 2
    %v5288 = vmax.f32 %v5286, %v5287
    %v5289 = vrot.slane %v5288, 1
    %v5290 = vmax.f32 %v5288, %v5289
    %v5291 = vsel %vm5236, %v5177, -inf
    %v5292 = vsel %vm5236, %v5180, -inf
    %v5293 = vmax.f32 %v5291, %v5292
    %v5294 = vrot.slane %v5293, 4
    %v5295 = vmax.f32 %v5293, %v5294
    %v5296 = vrot.slane %v5295, 2
    %v5297 = vmax.f32 %v5295, %v5296
    %v5298 = vrot.slane %v5297, 1
    %v5299 = vmax.f32 %v5297, %v5298
    %v5300 = vsel %vm5236, %v5183, -inf
    %v5301 = vsel %vm5236, %v5186, -inf
    %v5302 = vmax.f32 %v5300, %v5301
    %v5303 = vrot.slane %v5302, 4
    %v5304 = vmax.f32 %v5302, %v5303
    %v5305 = vrot.slane %v5304, 2
    %v5306 = vmax.f32 %v5304, %v5305
    %v5307 = vrot.slane %v5306, 1
    %v5308 = vmax.f32 %v5306, %v5307
    %v5309 = vsel %vm5236, %v5189, -inf
    %v5310 = vsel %vm5236, %v5192, -inf
    %v5311 = vmax.f32 %v5309, %v5310
    %v5312 = vrot.slane %v5311, 4
    %v5313 = vmax.f32 %v5311, %v5312
    %v5314 = vrot.slane %v5313, 2
    %v5315 = vmax.f32 %v5313, %v5314
    %v5316 = vrot.slane %v5315, 1
    %v5317 = vmax.f32 %v5315, %v5316
    %v5318 = vsel %vm5236, %v5195, -inf
    %v5319 = vsel %vm5236, %v5198, -inf
    %v5320 = vmax.f32 %v5318, %v5319
    %v5321 = vrot.slane %v5320, 4
    %v5322 = vmax.f32 %v5320, %v5321
    %v5323 = vrot.slane %v5322, 2
    %v5324 = vmax.f32 %v5322, %v5323
    %v5325 = vrot.slane %v5324, 1
    %v5326 = vmax.f32 %v5324, %v5325
    %v5327 = vsel %vm5236, %v5201, -inf
    %v5328 = vsel %vm5236, %v5204, -inf
    %v5329 = vmax.f32 %v5327, %v5328
    %v5330 = vrot.slane %v5329, 4
    %v5331 = vmax.f32 %v5329, %v5330
    %v5332 = vrot.slane %v5331, 2
    %v5333 = vmax.f32 %v5331, %v5332
    %v5334 = vrot.slane %v5333, 1
    %v5335 = vmax.f32 %v5333, %v5334
    %v5336 = vsel %vm5236, %v5207, -inf
    %v5337 = vsel %vm5236, %v5210, -inf
    %v5338 = vmax.f32 %v5336, %v5337
    %v5339 = vrot.slane %v5338, 4
    %v5340 = vmax.f32 %v5338, %v5339
    %v5341 = vrot.slane %v5340, 2
    %v5342 = vmax.f32 %v5340, %v5341
    %v5343 = vrot.slane %v5342, 1
    %v5344 = vmax.f32 %v5342, %v5343
    %v5345 = vsel %vm5236, %v5213, -inf
    %v5346 = vsel %vm5236, %v5216, -inf
    %v5347 = vmax.f32 %v5345, %v5346
    %v5348 = vrot.slane %v5347, 4
    %v5349 = vmax.f32 %v5347, %v5348
    %v5350 = vrot.slane %v5349, 2
    %v5351 = vmax.f32 %v5349, %v5350
    %v5352 = vrot.slane %v5351, 1
    %v5353 = vmax.f32 %v5351, %v5352
    %v5354 = vsel %vm5236, %v5219, -inf
    %v5355 = vsel %vm5236, %v5222, -inf
    %v5356 = vmax.f32 %v5354, %v5355
    %v5357 = vrot.slane %v5356, 4
    %v5358 = vmax.f32 %v5356, %v5357
    %v5359 = vrot.slane %v5358, 2
    %v5360 = vmax.f32 %v5358, %v5359
    %v5361 = vrot.slane %v5360, 1
    %v5362 = vmax.f32 %v5360, %v5361
    %v5363 = vsel %vm5236, %v5225, -inf
    %v5364 = vsel %vm5236, %v5228, -inf
    %v5365 = vmax.f32 %v5363, %v5364
    %v5366 = vrot.slane %v5365, 4
    %v5367 = vmax.f32 %v5365, %v5366
    %v5368 = vrot.slane %v5367, 2
    %v5369 = vmax.f32 %v5367, %v5368
    %v5370 = vrot.slane %v5369, 1
    %v5371 = vmax.f32 %v5369, %v5370
    %v5372 = vsel %vm5236, %v5231, -inf
    %v5373 = vsel %vm5236, %v5234, -inf
    %v5374 = vmax.f32 %v5372, %v5373
    %v5375 = vrot.slane %v5374, 4
    %v5376 = vmax.f32 %v5374, %v5375
    %v5377 = vrot.slane %v5376, 2
    %v5378 = vmax.f32 %v5376, %v5377
    %v5379 = vrot.slane %v5378, 1
    %v5380 = vmax.f32 %v5378, %v5379
    %v5397 = vsel %vm1654, %v5254, %v5245
    %v5398 = vsel %vm1656, %v5263, %v5397
    %v5399 = vsel %vm1658, %v5272, %v5398
    %v5400 = vsel %vm1660, %v5281, %v5399
    %v5401 = vsel %vm1662, %v5290, %v5400
    %v5402 = vsel %vm1664, %v5299, %v5401
    %v5403 = vsel %vm1666, %v5308, %v5402
    %v5404 = vsel %vm1654, %v5326, %v5317
    %v5405 = vsel %vm1656, %v5335, %v5404
    %v5406 = vsel %vm1658, %v5344, %v5405
    %v5407 = vsel %vm1660, %v5353, %v5406
    %v5408 = vsel %vm1662, %v5362, %v5407
    %v5409 = vsel %vm1664, %v5371, %v5408
    %v5410 = vsel %vm1666, %v5380, %v5409
    %5413 = vmatpush.msra.mxu0 0.0
    %5414 = vmatpush.msra.mxu0 0.0
    %5415 = vmatpush.msra.mxu0 0.0
    %5416 = vmatpush.msra.mxu0 0.0
    %5417 = vmatpush.msra.mxu0 0.0
    %5418 = vmatpush.msra.mxu0 0.0
    %5419 = vmatpush.msra.mxu0 0.0
    %5420 = vmatpush.msra.mxu0 0.0
    %5421 = vmatpush.msra.mxu0 0.0
    %5422 = vmatpush.msra.mxu0 0.0
    %5423 = vmatpush.msra.mxu0 0.0
    %5424 = vmatpush.msra.mxu0 0.0
    %5425 = vmatpush.msra.mxu0 0.0
    %5426 = vmatpush.msra.mxu0 0.0
    %5427 = vmatpush.msra.mxu0 %v5410
    %5428 = vmatpush.msra.mxu0 %v5403
    %5429 = vmatmul.f32.gmra.mxu0 %v626
    %v5430 = vpop.f32.mrf.mxu0
    %v5431 = vadd.f32 0.0, %v5430
    %5432 = vmatmul.f32.gmra.mxu0 %v629
    %v5433 = vpop.f32.mrf.mxu0
    %v5434 = vadd.f32 0.0, %v5433
    %5435 = vmatmul.f32.gmra.mxu0 %v632
    %v5436 = vpop.f32.mrf.mxu0
    %v5437 = vadd.f32 0.0, %v5436
    %5438 = vmatmul.f32.gmra.mxu0 %v635
    %v5439 = vpop.f32.mrf.mxu0
    %v5440 = vadd.f32 0.0, %v5439
    %5441 = vmatmul.f32.gmra.mxu0 %v638
    %v5442 = vpop.f32.mrf.mxu0
    %v5443 = vadd.f32 0.0, %v5442
    %5444 = vmatmul.f32.gmra.mxu0 %v641
    %v5445 = vpop.f32.mrf.mxu0
    %v5446 = vadd.f32 0.0, %v5445
    %5447 = vmatmul.f32.gmra.mxu0 %v644
    %v5448 = vpop.f32.mrf.mxu0
    %v5449 = vadd.f32 0.0, %v5448
    %5450 = vmatmul.f32.gmra.mxu0 %v647
    %v5451 = vpop.f32.mrf.mxu0
    %v5452 = vadd.f32 0.0, %v5451
    %5453 = vmatmul.f32.gmra.mxu0 %v650
    %v5454 = vpop.f32.mrf.mxu0
    %v5455 = vadd.f32 0.0, %v5454
    %5456 = vmatmul.f32.gmra.mxu0 %v653
    %v5457 = vpop.f32.mrf.mxu0
    %v5458 = vadd.f32 0.0, %v5457
    %5459 = vmatmul.f32.gmra.mxu0 %v656
    %v5460 = vpop.f32.mrf.mxu0
    %v5461 = vadd.f32 0.0, %v5460
    %5462 = vmatmul.f32.gmra.mxu0 %v659
    %v5463 = vpop.f32.mrf.mxu0
    %v5464 = vadd.f32 0.0, %v5463
    %5465 = vmatmul.f32.gmra.mxu0 %v662
    %v5466 = vpop.f32.mrf.mxu0
    %v5467 = vadd.f32 0.0, %v5466
    %5468 = vmatmul.f32.gmra.mxu0 %v665
    %v5469 = vpop.f32.mrf.mxu0
    %v5470 = vadd.f32 0.0, %v5469
    %5471 = vmatmul.f32.gmra.mxu0 %v668
    %v5472 = vpop.f32.mrf.mxu0
    %v5473 = vadd.f32 0.0, %v5472
    %5474 = vmatmul.f32.gmra.mxu0 %v671
    %v5475 = vpop.f32.mrf.mxu0
    %v5476 = vadd.f32 0.0, %v5475
    %5477 = vmatmul.f32.gmra.mxu0 %v674
    %v5478 = vpop.f32.mrf.mxu0
    %v5479 = vadd.f32 0.0, %v5478
    %5480 = vmatmul.f32.gmra.mxu0 %v677
    %v5481 = vpop.f32.mrf.mxu0
    %v5482 = vadd.f32 0.0, %v5481
    %5483 = vmatmul.f32.gmra.mxu0 %v680
    %v5484 = vpop.f32.mrf.mxu0
    %v5485 = vadd.f32 0.0, %v5484
    %5486 = vmatmul.f32.gmra.mxu0 %v683
    %v5487 = vpop.f32.mrf.mxu0
    %v5488 = vadd.f32 0.0, %v5487
    %5489 = vmatmul.f32.gmra.mxu0 %v686
    %v5490 = vpop.f32.mrf.mxu0
    %v5491 = vadd.f32 0.0, %v5490
    %5492 = vmatmul.f32.gmra.mxu0 %v689
    %v5493 = vpop.f32.mrf.mxu0
    %v5494 = vadd.f32 0.0, %v5493
    %5495 = vmatmul.f32.gmra.mxu0 %v692
    %v5496 = vpop.f32.mrf.mxu0
    %v5497 = vadd.f32 0.0, %v5496
    %5498 = vmatmul.f32.gmra.mxu0 %v695
    %v5499 = vpop.f32.mrf.mxu0
    %v5500 = vadd.f32 0.0, %v5499
    %5501 = vmatmul.f32.gmra.mxu0 %v698
    %v5502 = vpop.f32.mrf.mxu0
    %v5503 = vadd.f32 0.0, %v5502
    %5504 = vmatmul.f32.gmra.mxu0 %v701
    %v5505 = vpop.f32.mrf.mxu0
    %v5506 = vadd.f32 0.0, %v5505
    %5507 = vmatmul.f32.gmra.mxu0 %v704
    %v5508 = vpop.f32.mrf.mxu0
    %v5509 = vadd.f32 0.0, %v5508
    %5510 = vmatmul.f32.gmra.mxu0 %v707
    %v5511 = vpop.f32.mrf.mxu0
    %v5512 = vadd.f32 0.0, %v5511
    %5513 = vmatmul.f32.gmra.mxu0 %v710
    %v5514 = vpop.f32.mrf.mxu0
    %v5515 = vadd.f32 0.0, %v5514
    %5516 = vmatmul.f32.gmra.mxu0 %v713
    %v5517 = vpop.f32.mrf.mxu0
    %v5518 = vadd.f32 0.0, %v5517
    %5519 = vmatmul.f32.gmra.mxu0 %v716
    %v5520 = vpop.f32.mrf.mxu0
    %v5521 = vadd.f32 0.0, %v5520
    %5522 = vmatmul.f32.gmra.mxu0 %v719
    %v5523 = vpop.f32.mrf.mxu0
    %v5524 = vadd.f32 0.0, %v5523
    %5525 = vdwg.mxu0
    %v5526 = vsub.f32 %v5141, %v5431
    %v5527 = vsub.f32 %v5144, %v5434
    %v5528 = vsub.f32 %v5147, %v5437
    %v5529 = vsub.f32 %v5150, %v5440
    %v5530 = vsub.f32 %v5153, %v5443
    %v5531 = vsub.f32 %v5156, %v5446
    %v5532 = vsub.f32 %v5159, %v5449
    %v5533 = vsub.f32 %v5162, %v5452
    %v5534 = vsub.f32 %v5165, %v5455
    %v5535 = vsub.f32 %v5168, %v5458
    %v5536 = vsub.f32 %v5171, %v5461
    %v5537 = vsub.f32 %v5174, %v5464
    %v5538 = vsub.f32 %v5177, %v5467
    %v5539 = vsub.f32 %v5180, %v5470
    %v5540 = vsub.f32 %v5183, %v5473
    %v5541 = vsub.f32 %v5186, %v5476
    %v5542 = vsub.f32 %v5189, %v5479
    %v5543 = vsub.f32 %v5192, %v5482
    %v5544 = vsub.f32 %v5195, %v5485
    %v5545 = vsub.f32 %v5198, %v5488
    %v5546 = vsub.f32 %v5201, %v5491
    %v5547 = vsub.f32 %v5204, %v5494
    %v5548 = vsub.f32 %v5207, %v5497
    %v5549 = vsub.f32 %v5210, %v5500
    %v5550 = vsub.f32 %v5213, %v5503
    %v5551 = vsub.f32 %v5216, %v5506
    %v5552 = vsub.f32 %v5219, %v5509
    %v5553 = vsub.f32 %v5222, %v5512
    %v5554 = vsub.f32 %v5225, %v5515
    %v5555 = vsub.f32 %v5228, %v5518
    %v5556 = vsub.f32 %v5231, %v5521
    %v5557 = vsub.f32 %v5234, %v5524
    %v5558 = vmul.f32 %v5526, 1.442695
    %v5559 = vpow.pop %v5558
    %v5560 = vmul.f32 %v5527, 1.442695
    %v5561 = vpow.pop %v5560
    %v5562 = vmul.f32 %v5528, 1.442695
    %v5563 = vpow.pop %v5562
    %v5564 = vmul.f32 %v5529, 1.442695
    %v5565 = vpow.pop %v5564
    %v5566 = vmul.f32 %v5530, 1.442695
    %v5567 = vpow.pop %v5566
    %v5568 = vmul.f32 %v5531, 1.442695
    %v5569 = vpow.pop %v5568
    %v5570 = vmul.f32 %v5532, 1.442695
    %v5571 = vpow.pop %v5570
    %v5572 = vmul.f32 %v5533, 1.442695
    %v5573 = vpow.pop %v5572
    %v5574 = vmul.f32 %v5534, 1.442695
    %v5575 = vpow.pop %v5574
    %v5576 = vmul.f32 %v5535, 1.442695
    %v5577 = vpow.pop %v5576
    %v5578 = vmul.f32 %v5536, 1.442695
    %v5579 = vpow.pop %v5578
    %v5580 = vmul.f32 %v5537, 1.442695
    %v5581 = vpow.pop %v5580
    %v5582 = vmul.f32 %v5538, 1.442695
    %v5583 = vpow.pop %v5582
    %v5584 = vmul.f32 %v5539, 1.442695
    %v5585 = vpow.pop %v5584
    %v5586 = vmul.f32 %v5540, 1.442695
    %v5587 = vpow.pop %v5586
    %v5588 = vmul.f32 %v5541, 1.442695
    %v5589 = vpow.pop %v5588
    %v5590 = vmul.f32 %v5542, 1.442695
    %v5591 = vpow.pop %v5590
    %v5592 = vmul.f32 %v5543, 1.442695
    %v5593 = vpow.pop %v5592
    %v5594 = vmul.f32 %v5544, 1.442695
    %v5595 = vpow.pop %v5594
    %v5596 = vmul.f32 %v5545, 1.442695
    %v5597 = vpow.pop %v5596
    %v5598 = vmul.f32 %v5546, 1.442695
    %v5599 = vpow.pop %v5598
    %v5600 = vmul.f32 %v5547, 1.442695
    %v5601 = vpow.pop %v5600
    %v5602 = vmul.f32 %v5548, 1.442695
    %v5603 = vpow.pop %v5602
    %v5604 = vmul.f32 %v5549, 1.442695
    %v5605 = vpow.pop %v5604
    %v5606 = vmul.f32 %v5550, 1.442695
    %v5607 = vpow.pop %v5606
    %v5608 = vmul.f32 %v5551, 1.442695
    %v5609 = vpow.pop %v5608
    %v5610 = vmul.f32 %v5552, 1.442695
    %v5611 = vpow.pop %v5610
    %v5612 = vmul.f32 %v5553, 1.442695
    %v5613 = vpow.pop %v5612
    %v5614 = vmul.f32 %v5554, 1.442695
    %v5615 = vpow.pop %v5614
    %v5616 = vmul.f32 %v5555, 1.442695
    %v5617 = vpow.pop %v5616
    %v5618 = vmul.f32 %v5556, 1.442695
    %v5619 = vpow.pop %v5618
    %v5620 = vmul.f32 %v5557, 1.442695
    %v5621 = vpow.pop %v5620
    %5622 = vmatpush.msra.mxu0 %v5589
    %5623 = vmatpush.msra.mxu0 %v5587
    %5624 = vmatpush.msra.mxu0 %v5585
    %5625 = vmatpush.msra.mxu0 %v5583
    %5626 = vmatpush.msra.mxu0 %v5581
    %5627 = vmatpush.msra.mxu0 %v5579
    %5628 = vmatpush.msra.mxu0 %v5577
    %5629 = vmatpush.msra.mxu0 %v5575
    %5630 = vmatpush.msra.mxu0 %v5573
    %5631 = vmatpush.msra.mxu0 %v5571
    %5632 = vmatpush.msra.mxu0 %v5569
    %5633 = vmatpush.msra.mxu0 %v5567
    %5634 = vmatpush.msra.mxu0 %v5565
    %5635 = vmatpush.msra.mxu0 %v5563
    %5636 = vmatpush.msra.mxu0 %v5561
    %5637 = vmatpush.msra.mxu0 %v5559
    %5638 = vmatmul.f32.gmra.mxu0 %v171
    %v5639 = vpop.f32.mrf.mxu0
    %v5640 = vadd.f32 0.0, %v5639
    %5641 = vmatmul.f32.gmra.mxu0 %v173
    %v5642 = vpop.f32.mrf.mxu0
    %v5643 = vadd.f32 0.0, %v5642
    %5644 = vdwg.mxu0
    %5645 = vmatpush.msra.mxu0 %v5621
    %5646 = vmatpush.msra.mxu0 %v5619
    %5647 = vmatpush.msra.mxu0 %v5617
    %5648 = vmatpush.msra.mxu0 %v5615
    %5649 = vmatpush.msra.mxu0 %v5613
    %5650 = vmatpush.msra.mxu0 %v5611
    %5651 = vmatpush.msra.mxu0 %v5609
    %5652 = vmatpush.msra.mxu0 %v5607
    %5653 = vmatpush.msra.mxu0 %v5605
    %5654 = vmatpush.msra.mxu0 %v5603
    %5655 = vmatpush.msra.mxu0 %v5601
    %5656 = vmatpush.msra.mxu0 %v5599
    %5657 = vmatpush.msra.mxu0 %v5597
    %5658 = vmatpush.msra.mxu0 %v5595
    %5659 = vmatpush.msra.mxu0 %v5593
    %5660 = vmatpush.msra.mxu0 %v5591
    %5661 = vmatmul.f32.gmra.mxu0 %v172
    %v5662 = vpop.f32.mrf.mxu0
    %v5663 = vadd.f32 %v5640, %v5662
    %5664 = vmatmul.f32.gmra.mxu0 %v174
    %v5665 = vpop.f32.mrf.mxu0
    %v5666 = vadd.f32 %v5643, %v5665
    %5667 = vdwg.mxu0
    %v5668 = vrcp.pop %v5663
    %v5669 = vrcp.pop %v5666
    %5670 = vmatpush.msra.mxu0 0.0
    %5671 = vmatpush.msra.mxu0 0.0
    %5672 = vmatpush.msra.mxu0 0.0
    %5673 = vmatpush.msra.mxu0 0.0
    %5674 = vmatpush.msra.mxu0 0.0
    %5675 = vmatpush.msra.mxu0 0.0
    %5676 = vmatpush.msra.mxu0 0.0
    %5677 = vmatpush.msra.mxu0 0.0
    %5678 = vmatpush.msra.mxu0 0.0
    %5679 = vmatpush.msra.mxu0 0.0
    %5680 = vmatpush.msra.mxu0 0.0
    %5681 = vmatpush.msra.mxu0 0.0
    %5682 = vmatpush.msra.mxu0 0.0
    %5683 = vmatpush.msra.mxu0 0.0
    %5684 = vmatpush.msra.mxu0 %v5669
    %5685 = vmatpush.msra.mxu0 %v5668
    %5686 = vmatmul.f32.gmra.mxu0 %v626
    %v5687 = vpop.f32.mrf.mxu0
    %v5688 = vadd.f32 0.0, %v5687
    %5689 = vmatmul.f32.gmra.mxu0 %v629
    %v5690 = vpop.f32.mrf.mxu0
    %v5691 = vadd.f32 0.0, %v5690
    %5692 = vmatmul.f32.gmra.mxu0 %v632
    %v5693 = vpop.f32.mrf.mxu0
    %v5694 = vadd.f32 0.0, %v5693
    %5695 = vmatmul.f32.gmra.mxu0 %v635
    %v5696 = vpop.f32.mrf.mxu0
    %v5697 = vadd.f32 0.0, %v5696
    %5698 = vmatmul.f32.gmra.mxu0 %v638
    %v5699 = vpop.f32.mrf.mxu0
    %v5700 = vadd.f32 0.0, %v5699
    %5701 = vmatmul.f32.gmra.mxu0 %v641
    %v5702 = vpop.f32.mrf.mxu0
    %v5703 = vadd.f32 0.0, %v5702
    %5704 = vmatmul.f32.gmra.mxu0 %v644
    %v5705 = vpop.f32.mrf.mxu0
    %v5706 = vadd.f32 0.0, %v5705
    %5707 = vmatmul.f32.gmra.mxu0 %v647
    %v5708 = vpop.f32.mrf.mxu0
    %v5709 = vadd.f32 0.0, %v5708
    %5710 = vmatmul.f32.gmra.mxu0 %v650
    %v5711 = vpop.f32.mrf.mxu0
    %v5712 = vadd.f32 0.0, %v5711
    %5713 = vmatmul.f32.gmra.mxu0 %v653
    %v5714 = vpop.f32.mrf.mxu0
    %v5715 = vadd.f32 0.0, %v5714
    %5716 = vmatmul.f32.gmra.mxu0 %v656
    %v5717 = vpop.f32.mrf.mxu0
    %v5718 = vadd.f32 0.0, %v5717
    %5719 = vmatmul.f32.gmra.mxu0 %v659
    %v5720 = vpop.f32.mrf.mxu0
    %v5721 = vadd.f32 0.0, %v5720
    %5722 = vmatmul.f32.gmra.mxu0 %v662
    %v5723 = vpop.f32.mrf.mxu0
    %v5724 = vadd.f32 0.0, %v5723
    %5725 = vmatmul.f32.gmra.mxu0 %v665
    %v5726 = vpop.f32.mrf.mxu0
    %v5727 = vadd.f32 0.0, %v5726
    %5728 = vmatmul.f32.gmra.mxu0 %v668
    %v5729 = vpop.f32.mrf.mxu0
    %v5730 = vadd.f32 0.0, %v5729
    %5731 = vmatmul.f32.gmra.mxu0 %v671
    %v5732 = vpop.f32.mrf.mxu0
    %v5733 = vadd.f32 0.0, %v5732
    %5734 = vmatmul.f32.gmra.mxu0 %v674
    %v5735 = vpop.f32.mrf.mxu0
    %v5736 = vadd.f32 0.0, %v5735
    %5737 = vmatmul.f32.gmra.mxu0 %v677
    %v5738 = vpop.f32.mrf.mxu0
    %v5739 = vadd.f32 0.0, %v5738
    %5740 = vmatmul.f32.gmra.mxu0 %v680
    %v5741 = vpop.f32.mrf.mxu0
    %v5742 = vadd.f32 0.0, %v5741
    %5743 = vmatmul.f32.gmra.mxu0 %v683
    %v5744 = vpop.f32.mrf.mxu0
    %v5745 = vadd.f32 0.0, %v5744
    %5746 = vmatmul.f32.gmra.mxu0 %v686
    %v5747 = vpop.f32.mrf.mxu0
    %v5748 = vadd.f32 0.0, %v5747
    %5749 = vmatmul.f32.gmra.mxu0 %v689
    %v5750 = vpop.f32.mrf.mxu0
    %v5751 = vadd.f32 0.0, %v5750
    %5752 = vmatmul.f32.gmra.mxu0 %v692
    %v5753 = vpop.f32.mrf.mxu0
    %v5754 = vadd.f32 0.0, %v5753
    %5755 = vmatmul.f32.gmra.mxu0 %v695
    %v5756 = vpop.f32.mrf.mxu0
    %v5757 = vadd.f32 0.0, %v5756
    %5758 = vmatmul.f32.gmra.mxu0 %v698
    %v5759 = vpop.f32.mrf.mxu0
    %v5760 = vadd.f32 0.0, %v5759
    %5761 = vmatmul.f32.gmra.mxu0 %v701
    %v5762 = vpop.f32.mrf.mxu0
    %v5763 = vadd.f32 0.0, %v5762
    %5764 = vmatmul.f32.gmra.mxu0 %v704
    %v5765 = vpop.f32.mrf.mxu0
    %v5766 = vadd.f32 0.0, %v5765
    %5767 = vmatmul.f32.gmra.mxu0 %v707
    %v5768 = vpop.f32.mrf.mxu0
    %v5769 = vadd.f32 0.0, %v5768
    %5770 = vmatmul.f32.gmra.mxu0 %v710
    %v5771 = vpop.f32.mrf.mxu0
    %v5772 = vadd.f32 0.0, %v5771
    %5773 = vmatmul.f32.gmra.mxu0 %v713
    %v5774 = vpop.f32.mrf.mxu0
    %v5775 = vadd.f32 0.0, %v5774
    %5776 = vmatmul.f32.gmra.mxu0 %v716
    %v5777 = vpop.f32.mrf.mxu0
    %v5778 = vadd.f32 0.0, %v5777
    %5779 = vmatmul.f32.gmra.mxu0 %v719
    %v5780 = vpop.f32.mrf.mxu0
    %v5781 = vadd.f32 0.0, %v5780
    %5782 = vdwg.mxu0
    %v5783 = vmul.f32 %v5559, %v5688
    %v5784 = vmul.f32 %v5561, %v5691
    %v5785 = vmul.f32 %v5563, %v5694
    %v5786 = vmul.f32 %v5565, %v5697
    %v5787 = vmul.f32 %v5567, %v5700
    %v5788 = vmul.f32 %v5569, %v5703
    %v5789 = vmul.f32 %v5571, %v5706
    %v5790 = vmul.f32 %v5573, %v5709
    %v5791 = vmul.f32 %v5575, %v5712
    %v5792 = vmul.f32 %v5577, %v5715
    %v5793 = vmul.f32 %v5579, %v5718
    %v5794 = vmul.f32 %v5581, %v5721
    %v5795 = vmul.f32 %v5583, %v5724
    %v5796 = vmul.f32 %v5585, %v5727
    %v5797 = vmul.f32 %v5587, %v5730
    %v5798 = vmul.f32 %v5589, %v5733
    %v5799 = vmul.f32 %v5591, %v5736
    %v5800 = vmul.f32 %v5593, %v5739
    %v5801 = vmul.f32 %v5595, %v5742
    %v5802 = vmul.f32 %v5597, %v5745
    %v5803 = vmul.f32 %v5599, %v5748
    %v5804 = vmul.f32 %v5601, %v5751
    %v5805 = vmul.f32 %v5603, %v5754
    %v5806 = vmul.f32 %v5605, %v5757
    %v5807 = vmul.f32 %v5607, %v5760
    %v5808 = vmul.f32 %v5609, %v5763
    %v5809 = vmul.f32 %v5611, %v5766
    %v5810 = vmul.f32 %v5613, %v5769
    %v5811 = vmul.f32 %v5615, %v5772
    %v5812 = vmul.f32 %v5617, %v5775
    %v5813 = vmul.f32 %v5619, %v5778
    %v5814 = vmul.f32 %v5621, %v5781
    %v5815 = vld [vmem:[%s20] sm:$0xf]
    %v5817 = vsel %vm5236, %v5783, 0
    %v5820 = vsel %vm5236, %v5784, 0
    %v5823 = vsel %vm5236, %v5785, 0
    %v5826 = vsel %vm5236, %v5786, 0
    %v5829 = vsel %vm5236, %v5787, 0
    %v5832 = vsel %vm5236, %v5788, 0
    %v5835 = vsel %vm5236, %v5789, 0
    %v5838 = vsel %vm5236, %v5790, 0
    %v5841 = vsel %vm5236, %v5791, 0
    %v5844 = vsel %vm5236, %v5792, 0
    %v5847 = vsel %vm5236, %v5793, 0
    %v5850 = vsel %vm5236, %v5794, 0
    %v5853 = vsel %vm5236, %v5795, 0
    %v5856 = vsel %vm5236, %v5796, 0
    %v5859 = vsel %vm5236, %v5797, 0
    %v5862 = vsel %vm5236, %v5798, 0
    %v5865 = vsel %vm5236, %v5799, 0
    %v5868 = vsel %vm5236, %v5800, 0
    %v5871 = vsel %vm5236, %v5801, 0
    %v5874 = vsel %vm5236, %v5802, 0
    %v5877 = vsel %vm5236, %v5803, 0
    %v5880 = vsel %vm5236, %v5804, 0
    %v5883 = vsel %vm5236, %v5805, 0
    %v5886 = vsel %vm5236, %v5806, 0
    %v5889 = vsel %vm5236, %v5807, 0
    %v5892 = vsel %vm5236, %v5808, 0
    %v5895 = vsel %vm5236, %v5809, 0
    %v5898 = vsel %vm5236, %v5810, 0
    %v5901 = vsel %vm5236, %v5811, 0
    %v5904 = vsel %vm5236, %v5812, 0
    %v5907 = vsel %vm5236, %v5813, 0
    %v5910 = vsel %vm5236, %v5814, 0
    %vm5912 = vcmask 1043456
    %v5914 = vsel %vm5912, %v5815, 0
    %5916 = vmatpush.msra.mxu0 0.0
    %5917 = vmatpush.msra.mxu0 0.0
    %5918 = vmatpush.msra.mxu0 0.0
    %5919 = vmatpush.msra.mxu0 0.0
    %5920 = vmatpush.msra.mxu0 0.0
    %5921 = vmatpush.msra.mxu0 0.0
    %5922 = vmatpush.msra.mxu0 0.0
    %5923 = vmatpush.msra.mxu0 0.0
    %5924 = vmatpush.msra.mxu0 0.0
    %5925 = vmatpush.msra.mxu0 0.0
    %5926 = vmatpush.msra.mxu0 0.0
    %5927 = vmatpush.msra.mxu0 0.0
    %5928 = vmatpush.msra.mxu0 0.0
    %5929 = vmatpush.msra.mxu0 0.0
    %5930 = vmatpush.msra.mxu0 0.0
    %5931 = vmatpush.msra.mxu0 %v5914
    %5932 = vmatmul.f32.gmra.mxu0 %v5817
    %v5933 = vpop.f32.mrf.mxu0
    %v5934 = vadd.f32 0.0, %v5933
    %5935 = vmatmul.f32.gmra.mxu0 %v5820
    %v5936 = vpop.f32.mrf.mxu0
    %v5937 = vadd.f32 0.0, %v5936
    %5938 = vmatmul.f32.gmra.mxu0 %v5823
    %v5939 = vpop.f32.mrf.mxu0
    %v5940 = vadd.f32 0.0, %v5939
    %5941 = vmatmul.f32.gmra.mxu0 %v5826
    %v5942 = vpop.f32.mrf.mxu0
    %v5943 = vadd.f32 0.0, %v5942
    %5944 = vmatmul.f32.gmra.mxu0 %v5829
    %v5945 = vpop.f32.mrf.mxu0
    %v5946 = vadd.f32 0.0, %v5945
    %5947 = vmatmul.f32.gmra.mxu0 %v5832
    %v5948 = vpop.f32.mrf.mxu0
    %v5949 = vadd.f32 0.0, %v5948
    %5950 = vmatmul.f32.gmra.mxu0 %v5835
    %v5951 = vpop.f32.mrf.mxu0
    %v5952 = vadd.f32 0.0, %v5951
    %5953 = vmatmul.f32.gmra.mxu0 %v5838
    %v5954 = vpop.f32.mrf.mxu0
    %v5955 = vadd.f32 0.0, %v5954
    %5956 = vmatmul.f32.gmra.mxu0 %v5841
    %v5957 = vpop.f32.mrf.mxu0
    %v5958 = vadd.f32 0.0, %v5957
    %5959 = vmatmul.f32.gmra.mxu0 %v5844
    %v5960 = vpop.f32.mrf.mxu0
    %v5961 = vadd.f32 0.0, %v5960
    %5962 = vmatmul.f32.gmra.mxu0 %v5847
    %v5963 = vpop.f32.mrf.mxu0
    %v5964 = vadd.f32 0.0, %v5963
    %5965 = vmatmul.f32.gmra.mxu0 %v5850
    %v5966 = vpop.f32.mrf.mxu0
    %v5967 = vadd.f32 0.0, %v5966
    %5968 = vmatmul.f32.gmra.mxu0 %v5853
    %v5969 = vpop.f32.mrf.mxu0
    %v5970 = vadd.f32 0.0, %v5969
    %5971 = vmatmul.f32.gmra.mxu0 %v5856
    %v5972 = vpop.f32.mrf.mxu0
    %v5973 = vadd.f32 0.0, %v5972
    %5974 = vmatmul.f32.gmra.mxu0 %v5859
    %v5975 = vpop.f32.mrf.mxu0
    %v5976 = vadd.f32 0.0, %v5975
    %5977 = vmatmul.f32.gmra.mxu0 %v5862
    %v5978 = vpop.f32.mrf.mxu0
    %v5979 = vadd.f32 0.0, %v5978
    %5980 = vmatmul.f32.gmra.mxu0 %v5865
    %v5981 = vpop.f32.mrf.mxu0
    %v5982 = vadd.f32 0.0, %v5981
    %5983 = vmatmul.f32.gmra.mxu0 %v5868
    %v5984 = vpop.f32.mrf.mxu0
    %v5985 = vadd.f32 0.0, %v5984
    %5986 = vmatmul.f32.gmra.mxu0 %v5871
    %v5987 = vpop.f32.mrf.mxu0
    %v5988 = vadd.f32 0.0, %v5987
    %5989 = vmatmul.f32.gmra.mxu0 %v5874
    %v5990 = vpop.f32.mrf.mxu0
    %v5991 = vadd.f32 0.0, %v5990
    %5992 = vmatmul.f32.gmra.mxu0 %v5877
    %v5993 = vpop.f32.mrf.mxu0
    %v5994 = vadd.f32 0.0, %v5993
    %5995 = vmatmul.f32.gmra.mxu0 %v5880
    %v5996 = vpop.f32.mrf.mxu0
    %v5997 = vadd.f32 0.0, %v5996
    %5998 = vmatmul.f32.gmra.mxu0 %v5883
    %v5999 = vpop.f32.mrf.mxu0
    %v6000 = vadd.f32 0.0, %v5999
    %6001 = vmatmul.f32.gmra.mxu0 %v5886
    %v6002 = vpop.f32.mrf.mxu0
    %v6003 = vadd.f32 0.0, %v6002
    %6004 = vmatmul.f32.gmra.mxu0 %v5889
    %v6005 = vpop.f32.mrf.mxu0
    %v6006 = vadd.f32 0.0, %v6005
    %6007 = vmatmul.f32.gmra.mxu0 %v5892
    %v6008 = vpop.f32.mrf.mxu0
    %v6009 = vadd.f32 0.0, %v6008
    %6010 = vmatmul.f32.gmra.mxu0 %v5895
    %v6011 = vpop.f32.mrf.mxu0
    %v6012 = vadd.f32 0.0, %v6011
    %6013 = vmatmul.f32.gmra.mxu0 %v5898
    %v6014 = vpop.f32.mrf.mxu0
    %v6015 = vadd.f32 0.0, %v6014
    %6016 = vmatmul.f32.gmra.mxu0 %v5901
    %v6017 = vpop.f32.mrf.mxu0
    %v6018 = vadd.f32 0.0, %v6017
    %6019 = vmatmul.f32.gmra.mxu0 %v5904
    %v6020 = vpop.f32.mrf.mxu0
    %v6021 = vadd.f32 0.0, %v6020
    %6022 = vmatmul.f32.gmra.mxu0 %v5907
    %v6023 = vpop.f32.mrf.mxu0
    %v6024 = vadd.f32 0.0, %v6023
    %6025 = vmatmul.f32.gmra.mxu0 %v5910
    %v6026 = vpop.f32.mrf.mxu0
    %v6027 = vadd.f32 0.0, %v6026
    %6028 = vdwg.mxu0
    %v6029 = vmul.f32 %v5934, %v4835
    %v6030 = vmul.f32 %v5937, %v4838
    %v6031 = vmul.f32 %v5940, %v4841
    %v6032 = vmul.f32 %v5943, %v4844
    %v6033 = vmul.f32 %v5946, %v4847
    %v6034 = vmul.f32 %v5949, %v4850
    %v6035 = vmul.f32 %v5952, %v4853
    %v6036 = vmul.f32 %v5955, %v4856
    %v6037 = vmul.f32 %v5958, %v4859
    %v6038 = vmul.f32 %v5961, %v4862
    %v6039 = vmul.f32 %v5964, %v4865
    %v6040 = vmul.f32 %v5967, %v4868
    %v6041 = vmul.f32 %v5970, %v4871
    %v6042 = vmul.f32 %v5973, %v4874
    %v6043 = vmul.f32 %v5976, %v4877
    %v6044 = vmul.f32 %v5979, %v4880
    %v6045 = vmul.f32 %v5982, %v4883
    %v6046 = vmul.f32 %v5985, %v4886
    %v6047 = vmul.f32 %v5988, %v4889
    %v6048 = vmul.f32 %v5991, %v4892
    %v6049 = vmul.f32 %v5994, %v4895
    %v6050 = vmul.f32 %v5997, %v4898
    %v6051 = vmul.f32 %v6000, %v4901
    %v6052 = vmul.f32 %v6003, %v4904
    %v6053 = vmul.f32 %v6006, %v4907
    %v6054 = vmul.f32 %v6009, %v4910
    %v6055 = vmul.f32 %v6012, %v4913
    %v6056 = vmul.f32 %v6015, %v4916
    %v6057 = vmul.f32 %v6018, %v4919
    %v6058 = vmul.f32 %v6021, %v4922
    %v6059 = vmul.f32 %v6024, %v4925
    %v6060 = vmul.f32 %v6027, %v4928
    %6061 = vmatpush.msra.mxu0 %v6044
    %6062 = vmatpush.msra.mxu0 %v6043
    %6063 = vmatpush.msra.mxu0 %v6042
    %6064 = vmatpush.msra.mxu0 %v6041
    %6065 = vmatpush.msra.mxu0 %v6040
    %6066 = vmatpush.msra.mxu0 %v6039
    %6067 = vmatpush.msra.mxu0 %v6038
    %6068 = vmatpush.msra.mxu0 %v6037
    %6069 = vmatpush.msra.mxu0 %v6036
    %6070 = vmatpush.msra.mxu0 %v6035
    %6071 = vmatpush.msra.mxu0 %v6034
    %6072 = vmatpush.msra.mxu0 %v6033
    %6073 = vmatpush.msra.mxu0 %v6032
    %6074 = vmatpush.msra.mxu0 %v6031
    %6075 = vmatpush.msra.mxu0 %v6030
    %6076 = vmatpush.msra.mxu0 %v6029
    %6077 = vmatmul.f32.gmra.mxu0 %v171
    %v6078 = vpop.f32.mrf.mxu0
    %v6079 = vadd.f32 0.0, %v6078
    %6080 = vmatmul.f32.gmra.mxu0 %v173
    %v6081 = vpop.f32.mrf.mxu0
    %v6082 = vadd.f32 0.0, %v6081
    %6083 = vdwg.mxu0
    %6084 = vmatpush.msra.mxu0 %v6060
    %6085 = vmatpush.msra.mxu0 %v6059
    %6086 = vmatpush.msra.mxu0 %v6058
    %6087 = vmatpush.msra.mxu0 %v6057
    %6088 = vmatpush.msra.mxu0 %v6056
    %6089 = vmatpush.msra.mxu0 %v6055
    %6090 = vmatpush.msra.mxu0 %v6054
    %6091 = vmatpush.msra.mxu0 %v6053
    %6092 = vmatpush.msra.mxu0 %v6052
    %6093 = vmatpush.msra.mxu0 %v6051
    %6094 = vmatpush.msra.mxu0 %v6050
    %6095 = vmatpush.msra.mxu0 %v6049
    %6096 = vmatpush.msra.mxu0 %v6048
    %6097 = vmatpush.msra.mxu0 %v6047
    %6098 = vmatpush.msra.mxu0 %v6046
    %6099 = vmatpush.msra.mxu0 %v6045
    %6100 = vmatmul.f32.gmra.mxu0 %v172
    %v6101 = vpop.f32.mrf.mxu0
    %v6102 = vadd.f32 %v6079, %v6101
    %6103 = vmatmul.f32.gmra.mxu0 %v174
    %v6104 = vpop.f32.mrf.mxu0
    %v6105 = vadd.f32 %v6082, %v6104
    %6106 = vdwg.mxu0
    %v6107 = vld [vmem:[%s21] sm:$0xff]
    %v6108 = vld [vmem:[%s21 + $0x8] sm:$0xff]
    %v6109 = vld [vmem:[%s21 + $0x10] sm:$0xff]
    %v6110 = vld [vmem:[%s21 + $0x18] sm:$0xff]
    %v6111 = vld [vmem:[%s21 + $0x20] sm:$0xff]
    %v6112 = vld [vmem:[%s21 + $0x28] sm:$0xff]
    %v6113 = vld [vmem:[%s21 + $0x30] sm:$0xff]
    %v6114 = vld [vmem:[%s21 + $0x38] sm:$0xff]
    %v6115 = vld [vmem:[%s21 + $0x40] sm:$0xff]
    %v6116 = vld [vmem:[%s21 + $0x48] sm:$0xff]
    %v6117 = vld [vmem:[%s21 + $0x50] sm:$0xff]
    %v6118 = vld [vmem:[%s21 + $0x58] sm:$0xff]
    %v6119 = vld [vmem:[%s21 + $0x60] sm:$0xff]
    %v6120 = vld [vmem:[%s21 + $0x68] sm:$0xff]
    %v6121 = vld [vmem:[%s21 + $0x70] sm:$0xff]
    %v6122 = vld [vmem:[%s21 + $0x78] sm:$0xff]
    %v6123 = vld [vmem:[%s22] sm:$0x1]
    %v6125 = vperm.slane %v6123, 0
    %6127 = vmatpush.msra.mxu0 %v6122
    %6128 = vmatpush.msra.mxu0 %v6121
    %6129 = vmatpush.msra.mxu0 %v6120
    %6130 = vmatpush.msra.mxu0 %v6119
    %6131 = vmatpush.msra.mxu0 %v6118
    %6132 = vmatpush.msra.mxu0 %v6117
    %6133 = vmatpush.msra.mxu0 %v6116
    %6134 = vmatpush.msra.mxu0 %v6115
    %6135 = vmatpush.msra.mxu0 %v6114
    %6136 = vmatpush.msra.mxu0 %v6113
    %6137 = vmatpush.msra.mxu0 %v6112
    %6138 = vmatpush.msra.mxu0 %v6111
    %6139 = vmatpush.msra.mxu0 %v6110
    %6140 = vmatpush.msra.mxu0 %v6109
    %6141 = vmatpush.msra.mxu0 %v6108
    %6142 = vmatpush.msra.mxu0 %v6107
    %6143 = vmatmul.f32.gmra.mxu0 %v6102
    %v6144 = vpop.f32.mrf.mxu0
    %v6145 = vadd.f32 %v6125, %v6144
    %6146 = vmatmul.f32.gmra.mxu0 %v6105
    %v6147 = vpop.f32.mrf.mxu0
    %v6148 = vadd.f32 %v6125, %v6147
    %6149 = vdwg.mxu0
    %v6150 = vadd.f32 %v6145, %v4749
    %v6151 = vadd.f32 %v6148, %v4750
    %6152 = vst.msk [vmem:[#allocation2] sm:$0xff] %vm203, %v6150
    %6153 = vst.msk [vmem:[#allocation2 + $0x8] sm:$0xff] %vm203, %v6151
    // Predicated region
    $region94: #{tpu_custom_call.1} parent=1 // pred_check
      _
    $region95: #{tpu_custom_call.1} parent=1 // pred_check_branch
      %6155 = sbr.rel (0) target = $region97
    $region96: #{tpu_custom_call.1} parent=1 // pred_region
      %6157 = vsyncadd [#allocation3], 0
      %s6158 = sshll.u32 [#allocation2], 4
      %s6159 = int_to_ptr.vmem [resolvable:$true] %s6158
      %s6160 = sshll.u32 %s23, 4
      %s6161 = int_to_ptr.hbm [resolvable:$true] %s6160
      %6166 = dma.vmem_to_hbm [thread:$0]  %s6159, 256, %s6161, [#allocation3], 128, 128, 8
    $region97: #{tpu_custom_call.1} parent=1 // pred_fallthru
      _
    // Predicated region
    $region98: #{tpu_custom_call.1} parent=1 // pred_check
      _
    $region99: #{tpu_custom_call.1} parent=1 // pred_check_branch
      %6168 = sbr.rel (0) target = $region101
    $region100: #{tpu_custom_call.1} parent=1 // pred_region
      %6170 = dma.done [#allocation3], 256
    $region101: #{tpu_custom_call.1} parent=1 // pred_fallthru
      _
    %6171 = vsyncpa [#allocation3], 1

</llo_original>
